<compile_context>
chip_gen: v7x
topology: tpu7x:2x2x1
jax: 0.10.0
libtpu: 0.0.40
codegen_flags: <defaults>
</compile_context>

<pallas_src>
import numpy as np
import jax
import jax.numpy as jnp
from jax import lax
from jax.experimental import pallas as pl
from jax.experimental.pallas import tpu as pltpu

# ---- hyperparameters (hp) ----
NZ_DEC = 8
DEC_INPUT_DIM = 5
DEC_HIDDEN = 32
DEC_LAYERS = 2          # fused kernel below is written for exactly 2 layers
DROPOUT = 0.0           # TODO(synk): inter-layer dropout not implemented; hp.dropout = 0.0 so it is a no-op
M = 16
PEN_STYLE_DIM = 4       # must be <= 6 so torch.split(y, 6, 1) yields M mixture chunks + pen chunk
NMAX = 7
BATCH = 2
SEQ = NMAX + 1          # training mode: len_out = hp.Nmax + 1

LSTM_IN = NZ_DEC + DEC_INPUT_DIM
GATE_PAD = 128                   # each gate / hidden state padded to one full 128-lane vreg
B_PAD = 8                        # batch padded to the 8-sublane granule
NOUT = 6 * M + PEN_STYLE_DIM     # 100 real mixture-head columns
Y_PAD = 128                      # lane-dense head-output slab width

assert DEC_LAYERS == 2
assert PEN_STYLE_DIM <= 6
assert DEC_HIDDEN <= GATE_PAD and NOUT <= Y_PAD and BATCH <= B_PAD


# ---------------- fused kernel: fc_hc + 2-layer LSTM + fc_params head ----------------
def _decoder_kernel(z_ref, x_ref,
                    whc_ref, bhc_ref,
                    wih0_ref, whh0_ref, b0_ref,
                    wihh1_ref, b1_ref,
                    wp_ref, bp_ref,
                    y_ref, hN_ref, cN_ref):
    H, GP = DEC_HIDDEN, GATE_PAD
    BP = z_ref.shape[0]                 # padded batch (8 sublanes)
    S = x_ref.shape[0] // BP

    # ---- init_hc: tanh(z @ W_hc + b). Columns pre-arranged at prep time as
    #      [h_layer0 | h_layer1 | c_layer0 | c_layer1], each zero-padded to a full
    #      128-lane block, so the splits below are free vreg-boundary slices.
    hc = jnp.tanh(jnp.dot(z_ref[...], whc_ref[...],
                          preferred_element_type=jnp.float32) + bhc_ref[...])
    h0, h1 = hc[:, 0 * GP:1 * GP], hc[:, 1 * GP:2 * GP]
    c0, c1 = hc[:, 2 * GP:3 * GP], hc[:, 3 * GP:4 * GP]

    # ---- layer-0 input projection for ALL timesteps in one matmul (bias folded in).
    xg0 = jnp.dot(x_ref[...], wih0_ref[...],
                  preferred_element_type=jnp.float32) + b0_ref[...]          # (S*BP, 4*GP)

    # ---- loop-invariant loads / broadcasts hoisted out of the unrolled recurrence.
    whh0 = whh0_ref[...]                                                     # (H, 4*GP)
    wihh1 = wihh1_ref[...]                                                   # (2*H, 4*GP)
    b1b = jnp.broadcast_to(b1_ref[...], (BP, 4 * GP))

    def lstm_cell(gates, c_prev):
        # Each gate occupies its own 128-lane block -> vreg-aligned slices only.
        # Padded lanes: pre-activation 0 (zero gate columns + zero bias padding), c_pad
        # starts at 0 -> c_pad stays 0 and h_pad stays 0; the recurrence only consumes
        # h[:, :H] anyway, so padded lanes cannot leak.
        i = jax.nn.sigmoid(gates[:, 0 * GP:1 * GP])
        f = jax.nn.sigmoid(gates[:, 1 * GP:2 * GP])
        g = jnp.tanh(gates[:, 2 * GP:3 * GP])
        o = jax.nn.sigmoid(gates[:, 3 * GP:4 * GP])
        c = f * c_prev + i * g
        h = o * jnp.tanh(c)
        return h, c

    # ---- 2-layer LSTM recurrence, fully unrolled (S is small & static).
    #      Only 2 recurrent matmuls per step remain on the serial path; their weights are
    #      H-row (not 128-row-padded) so per-step weight traffic is ~4x smaller.
    h1_steps = []
    for t in range(S):
        g0 = xg0[t * BP:(t + 1) * BP, :] + jnp.dot(
            h0[:, :H], whh0, preferred_element_type=jnp.float32)
        h0, c0 = lstm_cell(g0, c0)
        # layer-1: single fused dot over stacked [w_ih1; w_hh1]
        h01 = jnp.concatenate([h0[:, :H], h1[:, :H]], axis=-1)               # (BP, 2*H)
        g1 = jnp.dot(h01, wihh1, preferred_element_type=jnp.float32) + b1b
        h1, c1 = lstm_cell(g1, c1)
        h1_steps.append(h1)                                                  # kept live in vregs

    # final states, lane-dense (L, BP, GP) stores; wrapper slices to (L, B, H)
    hN_ref[0] = h0
    hN_ref[1] = h1
    cN_ref[0] = c0
    cN_ref[1] = c1

    # ---- fc_params head: one (S*BP, GP) @ (GP, Y_PAD) matmul over all rows at once,
    #      reading the per-step h1 values directly from vregs (no scratch round-trip).
    h_all = jnp.concatenate(h1_steps, axis=0)                                # (S*BP, GP)
    y = jnp.dot(h_all, wp_ref[...],
                preferred_element_type=jnp.float32) + bp_ref[...]            # (S*BP, Y_PAD)

    lane = lax.broadcasted_iota(jnp.int32, y.shape, 1)
    m_pi = lane < M
    m_exp = (lane >= 3 * M) & (lane < 5 * M)                # sigma_x, sigma_y
    m_tanh = (lane >= 5 * M) & (lane < 6 * M)               # rho_xy
    m_pen = (lane >= 6 * M) & (lane < 6 * M + PEN_STYLE_DIM)

    def group_softmax(v, mask):
        vmax = jnp.max(jnp.where(mask, v, jnp.float32(-1e30)), axis=-1, keepdims=True)
        e = jnp.where(mask, jnp.exp(v - vmax), jnp.float32(0.0))
        return e / jnp.sum(e, axis=-1, keepdims=True)       # exact divide (rows sum to 1)

    act = jnp.where(m_exp, jnp.exp(y), jnp.where(m_tanh, jnp.tanh(y), y))
    out = jnp.where(m_pi, group_softmax(y, m_pi),
                    jnp.where(m_pen, group_softmax(y, m_pen), act))
    y_ref[...] = out


# ---------------- weight repacking (pure jnp on constants; folded at jit time) ----------------
def _pad_gate_cols(w):
    """(rows, 4*H) -> (rows, 4*GATE_PAD): H-wide block k moves to lane offset k*GATE_PAD."""
    H, GP = DEC_HIDDEN, GATE_PAD
    out = jnp.zeros((w.shape[0], 4 * GP), jnp.float32)
    for k in range(4):
        out = out.at[:, k * GP:k * GP + H].set(w[:, k * H:(k + 1) * H])
    return out


def _prep_weights(params):
    H, GP = DEC_HIDDEN, GATE_PAD
    # fc_hc: column blocks [h_l0 | h_l1 | c_l0 | c_l1] (H each), padded per block.
    whc = _pad_gate_cols(params["fc_hc_w"].T)                         # (Nz, 4*GP)
    bhc = _pad_gate_cols(params["fc_hc_b"][None, :])                  # (1, 4*GP)
    # LSTM weights (PyTorch gate order i,f,g,o; b_ih + b_hh pre-summed).
    # NOTE: no row padding on the recurrent weights -- only the real H (or 2*H) rows.
    wih0 = _pad_gate_cols(params["w_ih0"].T)                          # (In, 4*GP)
    whh0 = _pad_gate_cols(params["w_hh0"].T)                          # (H,  4*GP)
    b0 = _pad_gate_cols((params["b_ih0"] + params["b_hh0"])[None, :])
    wihh1 = jnp.concatenate([_pad_gate_cols(params["w_ih1"].T),       # (2*H, 4*GP)
                             _pad_gate_cols(params["w_hh1"].T)], axis=0)
    b1 = _pad_gate_cols((params["b_ih1"] + params["b_hh1"])[None, :])
    # fc_params: permute columns so torch.split(y,6,1)+stack+split becomes contiguous
    # groups [pi | mu_x | mu_y | sigma_x | sigma_y | rho_xy | pen]; zero-pad rows to GP
    # (padded hidden lanes) and columns to Y_PAD (lane-dense output slab).
    col_idx = np.concatenate([np.arange(M) * 6 + j for j in range(6)]
                             + [np.arange(6 * M, NOUT)])
    wp = jnp.zeros((GP, Y_PAD), jnp.float32).at[:H, :NOUT].set(
        params["fc_params_w"].T[:, col_idx])
    bp = jnp.zeros((1, Y_PAD), jnp.float32).at[0, :NOUT].set(
        params["fc_params_b"][col_idx])
    return whc, bhc, wih0, whh0, b0, wihh1, b1, wp, bp


# ---------------- parameter init (deterministic, synthetic) ----------------
def init_params(key):
    ks = jax.random.split(key, 12)
    rnd = lambda k, shape: 0.1 * jax.random.normal(k, shape, jnp.float32)
    H, L = DEC_HIDDEN, DEC_LAYERS
    return {
        "fc_hc_w": rnd(ks[0], (2 * H * L, NZ_DEC)),
        "fc_hc_b": rnd(ks[1], (2 * H * L,)),
        "w_ih0": rnd(ks[2], (4 * H, LSTM_IN)),
        "w_hh0": rnd(ks[3], (4 * H, H)),
        "b_ih0": rnd(ks[4], (4 * H,)),
        "b_hh0": rnd(ks[5], (4 * H,)),
        "w_ih1": rnd(ks[6], (4 * H, H)),
        "w_hh1": rnd(ks[7], (4 * H, H)),
        "b_ih1": rnd(ks[8], (4 * H,)),
        "b_hh1": rnd(ks[9], (4 * H,)),
        "fc_params_w": rnd(ks[10], (6 * M + PEN_STYLE_DIM, H)),
        "fc_params_b": rnd(ks[11], (6 * M + PEN_STYLE_DIM,)),
    }


# ---------------- forward (thin glue around the single fused Pallas kernel) ----------------
def lstm_decoder_forward(inputs, z, params):
    S, B, Din = inputs.shape
    H, L, GP = DEC_HIDDEN, DEC_LAYERS, GATE_PAD

    # pad batch to the 8-sublane granule (padded rows are independent & discarded)
    x_pad = jnp.zeros((S, B_PAD, Din), jnp.float32).at[:, :B, :].set(inputs)
    x_flat = x_pad.reshape(S * B_PAD, Din)             # row n = t*B_PAD + b (time-major)
    z_pad = jnp.zeros((B_PAD, z.shape[1]), jnp.float32).at[:B, :].set(z)

    packed = _prep_weights(params)

    flops = (2 * B_PAD * NZ_DEC * 4 * GP                      # fc_hc
             + 2 * S * B_PAD * LSTM_IN * 4 * GP               # xg0 batched projection
             + S * 2 * B_PAD * 3 * H * 4 * GP                 # recurrence (whh0 + fused layer-1)
             + 2 * S * B_PAD * GP * Y_PAD)                    # fc_params head
    transcendentals = S * B_PAD * (2 * 5 * GP) + S * B_PAD * Y_PAD + B_PAD * 4 * GP
    bytes_accessed = 4 * (z_pad.size + x_flat.size
                          + sum(int(np.prod(w.shape)) for w in packed)
                          + S * B_PAD * Y_PAD + 2 * L * B_PAD * GP)

    # Single fused, grid-less pallas_call: everything (weights + activations + outputs)
    # is resident in VMEM for the whole kernel (~1 MiB << 64 MiB even on v7x).
    # TODO(synk): if many independent sequences are decoded, add a leading 'parallel'
    # batch grid axis so v7x's second TensorCore is used; at B=2 it would only add overhead.
    y, hN, cN = pl.pallas_call(
        _decoder_kernel,
        out_shape=(
            jax.ShapeDtypeStruct((S * B_PAD, Y_PAD), jnp.float32),   # activated head slab
            jax.ShapeDtypeStruct((L, B_PAD, GP), jnp.float32),       # final hidden (lane-dense)
            jax.ShapeDtypeStruct((L, B_PAD, GP), jnp.float32),       # final cell   (lane-dense)
        ),
        cost_estimate=pl.CostEstimate(flops=int(flops),
                                      transcendentals=int(transcendentals),
                                      bytes_accessed=int(bytes_accessed)),
    )(z_pad, x_flat, *packed)

    hidden = hN[:, :B, :H]
    cell = cN[:, :B, :H]

    len_out = S  # training mode: hp.Nmax + 1
    y3 = y.reshape(len_out, B_PAD, Y_PAD)[:, :B, :]
    pi = y3[..., 0 * M:1 * M]
    mu_x = y3[..., 1 * M:2 * M]
    mu_y = y3[..., 2 * M:3 * M]
    sigma_x = y3[..., 3 * M:4 * M]
    sigma_y = y3[..., 4 * M:5 * M]
    rho_xy = y3[..., 5 * M:6 * M]
    pen_styles = y3[..., 6 * M:6 * M + PEN_STYLE_DIM]
    return pi, mu_x, mu_y, sigma_x, sigma_y, rho_xy, hidden, cell, pen_styles


# ---------------- pure-JAX reference (mirrors the PyTorch module) ----------------
def lstm_decoder_reference(inputs, z, params):
    S, B, _ = inputs.shape
    H, L = DEC_HIDDEN, DEC_LAYERS
    hc = jnp.tanh(z @ params["fc_hc_w"].T + params["fc_hc_b"])
    hid, cel = hc[:, :H * L], hc[:, H * L:]
    h = [hid[:, l * H:(l + 1) * H] for l in range(L)]
    c = [cel[:, l * H:(l + 1) * H] for l in range(L)]

    def cell_step(x, h_prev, c_prev, w_ih, w_hh, b_ih, b_hh):
        gates = x @ w_ih.T + h_prev @ w_hh.T + b_ih + b_hh
        i, f, g, o = jnp.split(gates, 4, axis=-1)
        cn = jax.nn.sigmoid(f) * c_prev + jax.nn.sigmoid(i) * jnp.tanh(g)
        hn = jax.nn.sigmoid(o) * jnp.tanh(cn)
        return hn, cn

    outs = []
    for t in range(S):
        h[0], c[0] = cell_step(inputs[t], h[0], c[0], params["w_ih0"], params["w_hh0"],
                               params["b_ih0"], params["b_hh0"])
        h[1], c[1] = cell_step(h[0], h[1], c[1], params["w_ih1"], params["w_hh1"],
                               params["b_ih1"], params["b_hh1"])
        outs.append(h[1])
    outputs = jnp.stack(outs, axis=0)                                  # (S, B, H)
    y = outputs.reshape(-1, H) @ params["fc_params_w"].T + params["fc_params_b"]
    mix = y[:, :6 * M].reshape(S * B, M, 6)
    pen = y[:, 6 * M:]
    r3 = lambda a: a.reshape(S, B, M)
    return (r3(jax.nn.softmax(mix[:, :, 0], axis=-1)), r3(mix[:, :, 1]), r3(mix[:, :, 2]),
            r3(jnp.exp(mix[:, :, 3])), r3(jnp.exp(mix[:, :, 4])), r3(jnp.tanh(mix[:, :, 5])),
            jnp.stack(h, axis=0), jnp.stack(c, axis=0),
            jax.nn.softmax(pen, axis=-1).reshape(S, B, PEN_STYLE_DIM))


if __name__ == "__main__":
    key = jax.random.PRNGKey(0)
    kp, kx, kz = jax.random.split(key, 3)
    params = init_params(kp)
    inputs = jax.random.normal(kx, (SEQ, BATCH, LSTM_IN), jnp.float32)   # (S, B, Nz+dec_in)
    z = jax.random.normal(kz, (BATCH, NZ_DEC), jnp.float32)

    fwd = jax.jit(lambda i, zz: lstm_decoder_forward(i, zz, params))
    outs = jax.block_until_ready(fwd(inputs, z))

    pi, mu_x, mu_y, sigma_x, sigma_y, rho_xy, hidden, cell, pen_styles = outs
    assert pi.shape == (SEQ, BATCH, M)
    assert mu_x.shape == mu_y.shape == sigma_x.shape == sigma_y.shape == rho_xy.shape == (SEQ, BATCH, M)
    assert hidden.shape == cell.shape == (DEC_LAYERS, BATCH, DEC_HIDDEN)
    assert pen_styles.shape == (SEQ, BATCH, PEN_STYLE_DIM)
    assert all(bool(jnp.all(jnp.isfinite(o))) for o in jax.tree_util.tree_leaves(outs))

    refs = lstm_decoder_reference(inputs, z, params)
    for got, want in zip(outs, refs):
        np.testing.assert_allclose(np.asarray(got), np.asarray(want), rtol=2e-3, atol=2e-3)

    print("KERNEL_OK")
</pallas_src>

<mosaic_0001>
module attributes {stable_mosaic.version = 11 : i64} {
  func.func @_decoder_kernel(%arg0: memref<8x8xf32, #tpu.memory_space<vmem>>, %arg1: memref<64x13xf32, #tpu.memory_space<vmem>>, %arg2: memref<8x512xf32, #tpu.memory_space<vmem>>, %arg3: memref<1x512xf32, #tpu.memory_space<vmem>>, %arg4: memref<13x512xf32, #tpu.memory_space<vmem>>, %arg5: memref<32x512xf32, #tpu.memory_space<vmem>>, %arg6: memref<1x512xf32, #tpu.memory_space<vmem>>, %arg7: memref<64x512xf32, #tpu.memory_space<vmem>>, %arg8: memref<1x512xf32, #tpu.memory_space<vmem>>, %arg9: memref<128x128xf32, #tpu.memory_space<vmem>>, %arg10: memref<1x128xf32, #tpu.memory_space<vmem>>, %arg11: memref<64x128xf32, #tpu.memory_space<vmem>>, %arg12: memref<2x8x128xf32, #tpu.memory_space<vmem>>, %arg13: memref<2x8x128xf32, #tpu.memory_space<vmem>>) attributes {dimension_semantics = [], scalar_prefetch = 0 : i64, scratch_operands = 0 : i64, tpu.core_type = #tpu.core_type<tc>} {
    %c0 = arith.constant 0 : index
    %c0_0 = arith.constant 0 : index
    %0 = vector.load %arg0[%c0, %c0_0] : memref<8x8xf32, #tpu.memory_space<vmem>>, vector<8x8xf32>
    %c0_1 = arith.constant 0 : index
    %c0_2 = arith.constant 0 : index
    %1 = vector.load %arg2[%c0_1, %c0_2] : memref<8x512xf32, #tpu.memory_space<vmem>>, vector<8x512xf32>
    %cst = arith.constant dense<0.000000e+00> : vector<8x512xf32>
    %2 = tpu.matmul %0, %1, %cst {dimension_numbers = #tpu.dot_dimension_numbers<[1], [0], [0], [1], [0, 0, 1, 1], [], []>} : vector<8x8xf32>, vector<8x512xf32>, vector<8x512xf32> -> vector<8x512xf32>
    %c0_3 = arith.constant 0 : index
    %c0_4 = arith.constant 0 : index
    %3 = vector.load %arg3[%c0_3, %c0_4] : memref<1x512xf32, #tpu.memory_space<vmem>>, vector<1x512xf32>
    %4 = vector.broadcast %3 : vector<1x512xf32> to vector<8x512xf32>
    %5 = arith.addf %2, %4 : vector<8x512xf32>
    %6 = math.tanh %5 : vector<8x512xf32>
    %7 = vector.extract_strided_slice %6 {offsets = [0, 0], sizes = [8, 128], strides = [1, 1]} : vector<8x512xf32> to vector<8x128xf32>
    %8 = vector.extract_strided_slice %6 {offsets = [0, 128], sizes = [8, 128], strides = [1, 1]} : vector<8x512xf32> to vector<8x128xf32>
    %9 = vector.extract_strided_slice %6 {offsets = [0, 256], sizes = [8, 128], strides = [1, 1]} : vector<8x512xf32> to vector<8x128xf32>
    %10 = vector.extract_strided_slice %6 {offsets = [0, 384], sizes = [8, 128], strides = [1, 1]} : vector<8x512xf32> to vector<8x128xf32>
    %c0_5 = arith.constant 0 : index
    %c0_6 = arith.constant 0 : index
    %11 = vector.load %arg1[%c0_5, %c0_6] : memref<64x13xf32, #tpu.memory_space<vmem>>, vector<64x13xf32>
    %c0_7 = arith.constant 0 : index
    %c0_8 = arith.constant 0 : index
    %12 = vector.load %arg4[%c0_7, %c0_8] : memref<13x512xf32, #tpu.memory_space<vmem>>, vector<13x512xf32>
    %cst_9 = arith.constant dense<0.000000e+00> : vector<64x512xf32>
    %13 = tpu.matmul %11, %12, %cst_9 {dimension_numbers = #tpu.dot_dimension_numbers<[1], [0], [0], [1], [0, 0, 1, 1], [], []>} : vector<64x13xf32>, vector<13x512xf32>, vector<64x512xf32> -> vector<64x512xf32>
    %c0_10 = arith.constant 0 : index
    %c0_11 = arith.constant 0 : index
    %14 = vector.load %arg6[%c0_10, %c0_11] : memref<1x512xf32, #tpu.memory_space<vmem>>, vector<1x512xf32>
    %15 = vector.broadcast %14 : vector<1x512xf32> to vector<64x512xf32>
    %16 = arith.addf %13, %15 : vector<64x512xf32>
    %c0_12 = arith.constant 0 : index
    %c0_13 = arith.constant 0 : index
    %17 = vector.load %arg5[%c0_12, %c0_13] : memref<32x512xf32, #tpu.memory_space<vmem>>, vector<32x512xf32>
    %c0_14 = arith.constant 0 : index
    %c0_15 = arith.constant 0 : index
    %18 = vector.load %arg7[%c0_14, %c0_15] : memref<64x512xf32, #tpu.memory_space<vmem>>, vector<64x512xf32>
    %c0_16 = arith.constant 0 : index
    %c0_17 = arith.constant 0 : index
    %19 = vector.load %arg8[%c0_16, %c0_17] : memref<1x512xf32, #tpu.memory_space<vmem>>, vector<1x512xf32>
    %20 = vector.shape_cast %19 : vector<1x512xf32> to vector<1x512xf32>
    %21 = vector.broadcast %20 : vector<1x512xf32> to vector<8x512xf32>
    %22 = vector.extract_strided_slice %16 {offsets = [0, 0], sizes = [8, 512], strides = [1, 1]} : vector<64x512xf32> to vector<8x512xf32>
    %23 = vector.extract_strided_slice %7 {offsets = [0, 0], sizes = [8, 32], strides = [1, 1]} : vector<8x128xf32> to vector<8x32xf32>
    %cst_18 = arith.constant dense<0.000000e+00> : vector<8x512xf32>
    %24 = tpu.matmul %23, %17, %cst_18 {dimension_numbers = #tpu.dot_dimension_numbers<[1], [0], [0], [1], [0, 0, 1, 1], [], []>} : vector<8x32xf32>, vector<32x512xf32>, vector<8x512xf32> -> vector<8x512xf32>
    %25 = arith.addf %22, %24 : vector<8x512xf32>
    %26 = vector.extract_strided_slice %25 {offsets = [0, 0], sizes = [8, 128], strides = [1, 1]} : vector<8x512xf32> to vector<8x128xf32>
    %27 = arith.negf %26 : vector<8x128xf32>
    %28 = math.exp %27 : vector<8x128xf32>
    %cst_19 = arith.constant 1.000000e+00 : f32
    %29 = vector.broadcast %cst_19 : f32 to vector<8x128xf32>
    %30 = arith.addf %29, %28 : vector<8x128xf32>
    %31 = arith.divf %29, %30 : vector<8x128xf32>
    %32 = vector.extract_strided_slice %25 {offsets = [0, 128], sizes = [8, 128], strides = [1, 1]} : vector<8x512xf32> to vector<8x128xf32>
    %33 = arith.negf %32 : vector<8x128xf32>
    %34 = math.exp %33 : vector<8x128xf32>
    %cst_20 = arith.constant 1.000000e+00 : f32
    %35 = vector.broadcast %cst_20 : f32 to vector<8x128xf32>
    %36 = arith.addf %35, %34 : vector<8x128xf32>
    %37 = arith.divf %35, %36 : vector<8x128xf32>
    %38 = vector.extract_strided_slice %25 {offsets = [0, 256], sizes = [8, 128], strides = [1, 1]} : vector<8x512xf32> to vector<8x128xf32>
    %39 = math.tanh %38 : vector<8x128xf32>
    %40 = vector.extract_strided_slice %25 {offsets = [0, 384], sizes = [8, 128], strides = [1, 1]} : vector<8x512xf32> to vector<8x128xf32>
    %41 = arith.negf %40 : vector<8x128xf32>
    %42 = math.exp %41 : vector<8x128xf32>
    %cst_21 = arith.constant 1.000000e+00 : f32
    %43 = vector.broadcast %cst_21 : f32 to vector<8x128xf32>
    %44 = arith.addf %43, %42 : vector<8x128xf32>
    %45 = arith.divf %43, %44 : vector<8x128xf32>
    %46 = arith.mulf %37, %9 : vector<8x128xf32>
    %47 = arith.mulf %31, %39 : vector<8x128xf32>
    %48 = arith.addf %46, %47 : vector<8x128xf32>
    %49 = math.tanh %48 : vector<8x128xf32>
    %50 = arith.mulf %45, %49 : vector<8x128xf32>
    %51 = vector.extract_strided_slice %50 {offsets = [0, 0], sizes = [8, 32], strides = [1, 1]} : vector<8x128xf32> to vector<8x32xf32>
    %52 = vector.extract_strided_slice %8 {offsets = [0, 0], sizes = [8, 32], strides = [1, 1]} : vector<8x128xf32> to vector<8x32xf32>
    %53 = tpu.concatenate %51, %52 in 1 : vector<8x32xf32>, vector<8x32xf32> -> vector<8x64xf32>
    %cst_22 = arith.constant dense<0.000000e+00> : vector<8x512xf32>
    %54 = tpu.matmul %53, %18, %cst_22 {dimension_numbers = #tpu.dot_dimension_numbers<[1], [0], [0], [1], [0, 0, 1, 1], [], []>} : vector<8x64xf32>, vector<64x512xf32>, vector<8x512xf32> -> vector<8x512xf32>
    %55 = arith.addf %54, %21 : vector<8x512xf32>
    %56 = vector.extract_strided_slice %55 {offsets = [0, 0], sizes = [8, 128], strides = [1, 1]} : vector<8x512xf32> to vector<8x128xf32>
    %57 = arith.negf %56 : vector<8x128xf32>
    %58 = math.exp %57 : vector<8x128xf32>
    %cst_23 = arith.constant 1.000000e+00 : f32
    %59 = vector.broadcast %cst_23 : f32 to vector<8x128xf32>
    %60 = arith.addf %59, %58 : vector<8x128xf32>
    %61 = arith.divf %59, %60 : vector<8x128xf32>
    %62 = vector.extract_strided_slice %55 {offsets = [0, 128], sizes = [8, 128], strides = [1, 1]} : vector<8x512xf32> to vector<8x128xf32>
    %63 = arith.negf %62 : vector<8x128xf32>
    %64 = math.exp %63 : vector<8x128xf32>
    %cst_24 = arith.constant 1.000000e+00 : f32
    %65 = vector.broadcast %cst_24 : f32 to vector<8x128xf32>
    %66 = arith.addf %65, %64 : vector<8x128xf32>
    %67 = arith.divf %65, %66 : vector<8x128xf32>
    %68 = vector.extract_strided_slice %55 {offsets = [0, 256], sizes = [8, 128], strides = [1, 1]} : vector<8x512xf32> to vector<8x128xf32>
    %69 = math.tanh %68 : vector<8x128xf32>
    %70 = vector.extract_strided_slice %55 {offsets = [0, 384], sizes = [8, 128], strides = [1, 1]} : vector<8x512xf32> to vector<8x128xf32>
    %71 = arith.negf %70 : vector<8x128xf32>
    %72 = math.exp %71 : vector<8x128xf32>
    %cst_25 = arith.constant 1.000000e+00 : f32
    %73 = vector.broadcast %cst_25 : f32 to vector<8x128xf32>
    %74 = arith.addf %73, %72 : vector<8x128xf32>
    %75 = arith.divf %73, %74 : vector<8x128xf32>
    %76 = arith.mulf %67, %10 : vector<8x128xf32>
    %77 = arith.mulf %61, %69 : vector<8x128xf32>
    %78 = arith.addf %76, %77 : vector<8x128xf32>
    %79 = math.tanh %78 : vector<8x128xf32>
    %80 = arith.mulf %75, %79 : vector<8x128xf32>
    %81 = vector.extract_strided_slice %16 {offsets = [8, 0], sizes = [8, 512], strides = [1, 1]} : vector<64x512xf32> to vector<8x512xf32>
    %82 = vector.extract_strided_slice %50 {offsets = [0, 0], sizes = [8, 32], strides = [1, 1]} : vector<8x128xf32> to vector<8x32xf32>
    %cst_26 = arith.constant dense<0.000000e+00> : vector<8x512xf32>
    %83 = tpu.matmul %82, %17, %cst_26 {dimension_numbers = #tpu.dot_dimension_numbers<[1], [0], [0], [1], [0, 0, 1, 1], [], []>} : vector<8x32xf32>, vector<32x512xf32>, vector<8x512xf32> -> vector<8x512xf32>
    %84 = arith.addf %81, %83 : vector<8x512xf32>
    %85 = vector.extract_strided_slice %84 {offsets = [0, 0], sizes = [8, 128], strides = [1, 1]} : vector<8x512xf32> to vector<8x128xf32>
    %86 = arith.negf %85 : vector<8x128xf32>
    %87 = math.exp %86 : vector<8x128xf32>
    %cst_27 = arith.constant 1.000000e+00 : f32
    %88 = vector.broadcast %cst_27 : f32 to vector<8x128xf32>
    %89 = arith.addf %88, %87 : vector<8x128xf32>
    %90 = arith.divf %88, %89 : vector<8x128xf32>
    %91 = vector.extract_strided_slice %84 {offsets = [0, 128], sizes = [8, 128], strides = [1, 1]} : vector<8x512xf32> to vector<8x128xf32>
    %92 = arith.negf %91 : vector<8x128xf32>
    %93 = math.exp %92 : vector<8x128xf32>
    %cst_28 = arith.constant 1.000000e+00 : f32
    %94 = vector.broadcast %cst_28 : f32 to vector<8x128xf32>
    %95 = arith.addf %94, %93 : vector<8x128xf32>
    %96 = arith.divf %94, %95 : vector<8x128xf32>
    %97 = vector.extract_strided_slice %84 {offsets = [0, 256], sizes = [8, 128], strides = [1, 1]} : vector<8x512xf32> to vector<8x128xf32>
    %98 = math.tanh %97 : vector<8x128xf32>
    %99 = vector.extract_strided_slice %84 {offsets = [0, 384], sizes = [8, 128], strides = [1, 1]} : vector<8x512xf32> to vector<8x128xf32>
    %100 = arith.negf %99 : vector<8x128xf32>
    %101 = math.exp %100 : vector<8x128xf32>
    %cst_29 = arith.constant 1.000000e+00 : f32
    %102 = vector.broadcast %cst_29 : f32 to vector<8x128xf32>
    %103 = arith.addf %102, %101 : vector<8x128xf32>
    %104 = arith.divf %102, %103 : vector<8x128xf32>
    %105 = arith.mulf %96, %48 : vector<8x128xf32>
    %106 = arith.mulf %90, %98 : vector<8x128xf32>
    %107 = arith.addf %105, %106 : vector<8x128xf32>
    %108 = math.tanh %107 : vector<8x128xf32>
    %109 = arith.mulf %104, %108 : vector<8x128xf32>
    %110 = vector.extract_strided_slice %109 {offsets = [0, 0], sizes = [8, 32], strides = [1, 1]} : vector<8x128xf32> to vector<8x32xf32>
    %111 = vector.extract_strided_slice %80 {offsets = [0, 0], sizes = [8, 32], strides = [1, 1]} : vector<8x128xf32> to vector<8x32xf32>
    %112 = tpu.concatenate %110, %111 in 1 : vector<8x32xf32>, vector<8x32xf32> -> vector<8x64xf32>
    %cst_30 = arith.constant dense<0.000000e+00> : vector<8x512xf32>
    %113 = tpu.matmul %112, %18, %cst_30 {dimension_numbers = #tpu.dot_dimension_numbers<[1], [0], [0], [1], [0, 0, 1, 1], [], []>} : vector<8x64xf32>, vector<64x512xf32>, vector<8x512xf32> -> vector<8x512xf32>
    %114 = arith.addf %113, %21 : vector<8x512xf32>
    %115 = vector.extract_strided_slice %114 {offsets = [0, 0], sizes = [8, 128], strides = [1, 1]} : vector<8x512xf32> to vector<8x128xf32>
    %116 = arith.negf %115 : vector<8x128xf32>
    %117 = math.exp %116 : vector<8x128xf32>
    %cst_31 = arith.constant 1.000000e+00 : f32
    %118 = vector.broadcast %cst_31 : f32 to vector<8x128xf32>
    %119 = arith.addf %118, %117 : vector<8x128xf32>
    %120 = arith.divf %118, %119 : vector<8x128xf32>
    %121 = vector.extract_strided_slice %114 {offsets = [0, 128], sizes = [8, 128], strides = [1, 1]} : vector<8x512xf32> to vector<8x128xf32>
    %122 = arith.negf %121 : vector<8x128xf32>
    %123 = math.exp %122 : vector<8x128xf32>
    %cst_32 = arith.constant 1.000000e+00 : f32
    %124 = vector.broadcast %cst_32 : f32 to vector<8x128xf32>
    %125 = arith.addf %124, %123 : vector<8x128xf32>
    %126 = arith.divf %124, %125 : vector<8x128xf32>
    %127 = vector.extract_strided_slice %114 {offsets = [0, 256], sizes = [8, 128], strides = [1, 1]} : vector<8x512xf32> to vector<8x128xf32>
    %128 = math.tanh %127 : vector<8x128xf32>
    %129 = vector.extract_strided_slice %114 {offsets = [0, 384], sizes = [8, 128], strides = [1, 1]} : vector<8x512xf32> to vector<8x128xf32>
    %130 = arith.negf %129 : vector<8x128xf32>
    %131 = math.exp %130 : vector<8x128xf32>
    %cst_33 = arith.constant 1.000000e+00 : f32
    %132 = vector.broadcast %cst_33 : f32 to vector<8x128xf32>
    %133 = arith.addf %132, %131 : vector<8x128xf32>
    %134 = arith.divf %132, %133 : vector<8x128xf32>
    %135 = arith.mulf %126, %78 : vector<8x128xf32>
    %136 = arith.mulf %120, %128 : vector<8x128xf32>
    %137 = arith.addf %135, %136 : vector<8x128xf32>
    %138 = math.tanh %137 : vector<8x128xf32>
    %139 = arith.mulf %134, %138 : vector<8x128xf32>
    %140 = vector.extract_strided_slice %16 {offsets = [16, 0], sizes = [8, 512], strides = [1, 1]} : vector<64x512xf32> to vector<8x512xf32>
    %141 = vector.extract_strided_slice %109 {offsets = [0, 0], sizes = [8, 32], strides = [1, 1]} : vector<8x128xf32> to vector<8x32xf32>
    %cst_34 = arith.constant dense<0.000000e+00> : vector<8x512xf32>
    %142 = tpu.matmul %141, %17, %cst_34 {dimension_numbers = #tpu.dot_dimension_numbers<[1], [0], [0], [1], [0, 0, 1, 1], [], []>} : vector<8x32xf32>, vector<32x512xf32>, vector<8x512xf32> -> vector<8x512xf32>
    %143 = arith.addf %140, %142 : vector<8x512xf32>
    %144 = vector.extract_strided_slice %143 {offsets = [0, 0], sizes = [8, 128], strides = [1, 1]} : vector<8x512xf32> to vector<8x128xf32>
    %145 = arith.negf %144 : vector<8x128xf32>
    %146 = math.exp %145 : vector<8x128xf32>
    %cst_35 = arith.constant 1.000000e+00 : f32
    %147 = vector.broadcast %cst_35 : f32 to vector<8x128xf32>
    %148 = arith.addf %147, %146 : vector<8x128xf32>
    %149 = arith.divf %147, %148 : vector<8x128xf32>
    %150 = vector.extract_strided_slice %143 {offsets = [0, 128], sizes = [8, 128], strides = [1, 1]} : vector<8x512xf32> to vector<8x128xf32>
    %151 = arith.negf %150 : vector<8x128xf32>
    %152 = math.exp %151 : vector<8x128xf32>
    %cst_36 = arith.constant 1.000000e+00 : f32
    %153 = vector.broadcast %cst_36 : f32 to vector<8x128xf32>
    %154 = arith.addf %153, %152 : vector<8x128xf32>
    %155 = arith.divf %153, %154 : vector<8x128xf32>
    %156 = vector.extract_strided_slice %143 {offsets = [0, 256], sizes = [8, 128], strides = [1, 1]} : vector<8x512xf32> to vector<8x128xf32>
    %157 = math.tanh %156 : vector<8x128xf32>
    %158 = vector.extract_strided_slice %143 {offsets = [0, 384], sizes = [8, 128], strides = [1, 1]} : vector<8x512xf32> to vector<8x128xf32>
    %159 = arith.negf %158 : vector<8x128xf32>
    %160 = math.exp %159 : vector<8x128xf32>
    %cst_37 = arith.constant 1.000000e+00 : f32
    %161 = vector.broadcast %cst_37 : f32 to vector<8x128xf32>
    %162 = arith.addf %161, %160 : vector<8x128xf32>
    %163 = arith.divf %161, %162 : vector<8x128xf32>
    %164 = arith.mulf %155, %107 : vector<8x128xf32>
    %165 = arith.mulf %149, %157 : vector<8x128xf32>
    %166 = arith.addf %164, %165 : vector<8x128xf32>
    %167 = math.tanh %166 : vector<8x128xf32>
    %168 = arith.mulf %163, %167 : vector<8x128xf32>
    %169 = vector.extract_strided_slice %168 {offsets = [0, 0], sizes = [8, 32], strides = [1, 1]} : vector<8x128xf32> to vector<8x32xf32>
    %170 = vector.extract_strided_slice %139 {offsets = [0, 0], sizes = [8, 32], strides = [1, 1]} : vector<8x128xf32> to vector<8x32xf32>
    %171 = tpu.concatenate %169, %170 in 1 : vector<8x32xf32>, vector<8x32xf32> -> vector<8x64xf32>
    %cst_38 = arith.constant dense<0.000000e+00> : vector<8x512xf32>
    %172 = tpu.matmul %171, %18, %cst_38 {dimension_numbers = #tpu.dot_dimension_numbers<[1], [0], [0], [1], [0, 0, 1, 1], [], []>} : vector<8x64xf32>, vector<64x512xf32>, vector<8x512xf32> -> vector<8x512xf32>
    %173 = arith.addf %172, %21 : vector<8x512xf32>
    %174 = vector.extract_strided_slice %173 {offsets = [0, 0], sizes = [8, 128], strides = [1, 1]} : vector<8x512xf32> to vector<8x128xf32>
    %175 = arith.negf %174 : vector<8x128xf32>
    %176 = math.exp %175 : vector<8x128xf32>
    %cst_39 = arith.constant 1.000000e+00 : f32
    %177 = vector.broadcast %cst_39 : f32 to vector<8x128xf32>
    %178 = arith.addf %177, %176 : vector<8x128xf32>
    %179 = arith.divf %177, %178 : vector<8x128xf32>
    %180 = vector.extract_strided_slice %173 {offsets = [0, 128], sizes = [8, 128], strides = [1, 1]} : vector<8x512xf32> to vector<8x128xf32>
    %181 = arith.negf %180 : vector<8x128xf32>
    %182 = math.exp %181 : vector<8x128xf32>
    %cst_40 = arith.constant 1.000000e+00 : f32
    %183 = vector.broadcast %cst_40 : f32 to vector<8x128xf32>
    %184 = arith.addf %183, %182 : vector<8x128xf32>
    %185 = arith.divf %183, %184 : vector<8x128xf32>
    %186 = vector.extract_strided_slice %173 {offsets = [0, 256], sizes = [8, 128], strides = [1, 1]} : vector<8x512xf32> to vector<8x128xf32>
    %187 = math.tanh %186 : vector<8x128xf32>
    %188 = vector.extract_strided_slice %173 {offsets = [0, 384], sizes = [8, 128], strides = [1, 1]} : vector<8x512xf32> to vector<8x128xf32>
    %189 = arith.negf %188 : vector<8x128xf32>
    %190 = math.exp %189 : vector<8x128xf32>
    %cst_41 = arith.constant 1.000000e+00 : f32
    %191 = vector.broadcast %cst_41 : f32 to vector<8x128xf32>
    %192 = arith.addf %191, %190 : vector<8x128xf32>
    %193 = arith.divf %191, %192 : vector<8x128xf32>
    %194 = arith.mulf %185, %137 : vector<8x128xf32>
    %195 = arith.mulf %179, %187 : vector<8x128xf32>
    %196 = arith.addf %194, %195 : vector<8x128xf32>
    %197 = math.tanh %196 : vector<8x128xf32>
    %198 = arith.mulf %193, %197 : vector<8x128xf32>
    %199 = vector.extract_strided_slice %16 {offsets = [24, 0], sizes = [8, 512], strides = [1, 1]} : vector<64x512xf32> to vector<8x512xf32>
    %200 = vector.extract_strided_slice %168 {offsets = [0, 0], sizes = [8, 32], strides = [1, 1]} : vector<8x128xf32> to vector<8x32xf32>
    %cst_42 = arith.constant dense<0.000000e+00> : vector<8x512xf32>
    %201 = tpu.matmul %200, %17, %cst_42 {dimension_numbers = #tpu.dot_dimension_numbers<[1], [0], [0], [1], [0, 0, 1, 1], [], []>} : vector<8x32xf32>, vector<32x512xf32>, vector<8x512xf32> -> vector<8x512xf32>
    %202 = arith.addf %199, %201 : vector<8x512xf32>
    %203 = vector.extract_strided_slice %202 {offsets = [0, 0], sizes = [8, 128], strides = [1, 1]} : vector<8x512xf32> to vector<8x128xf32>
    %204 = arith.negf %203 : vector<8x128xf32>
    %205 = math.exp %204 : vector<8x128xf32>
    %cst_43 = arith.constant 1.000000e+00 : f32
    %206 = vector.broadcast %cst_43 : f32 to vector<8x128xf32>
    %207 = arith.addf %206, %205 : vector<8x128xf32>
    %208 = arith.divf %206, %207 : vector<8x128xf32>
    %209 = vector.extract_strided_slice %202 {offsets = [0, 128], sizes = [8, 128], strides = [1, 1]} : vector<8x512xf32> to vector<8x128xf32>
    %210 = arith.negf %209 : vector<8x128xf32>
    %211 = math.exp %210 : vector<8x128xf32>
    %cst_44 = arith.constant 1.000000e+00 : f32
    %212 = vector.broadcast %cst_44 : f32 to vector<8x128xf32>
    %213 = arith.addf %212, %211 : vector<8x128xf32>
    %214 = arith.divf %212, %213 : vector<8x128xf32>
    %215 = vector.extract_strided_slice %202 {offsets = [0, 256], sizes = [8, 128], strides = [1, 1]} : vector<8x512xf32> to vector<8x128xf32>
    %216 = math.tanh %215 : vector<8x128xf32>
    %217 = vector.extract_strided_slice %202 {offsets = [0, 384], sizes = [8, 128], strides = [1, 1]} : vector<8x512xf32> to vector<8x128xf32>
    %218 = arith.negf %217 : vector<8x128xf32>
    %219 = math.exp %218 : vector<8x128xf32>
    %cst_45 = arith.constant 1.000000e+00 : f32
    %220 = vector.broadcast %cst_45 : f32 to vector<8x128xf32>
    %221 = arith.addf %220, %219 : vector<8x128xf32>
    %222 = arith.divf %220, %221 : vector<8x128xf32>
    %223 = arith.mulf %214, %166 : vector<8x128xf32>
    %224 = arith.mulf %208, %216 : vector<8x128xf32>
    %225 = arith.addf %223, %224 : vector<8x128xf32>
    %226 = math.tanh %225 : vector<8x128xf32>
    %227 = arith.mulf %222, %226 : vector<8x128xf32>
    %228 = vector.extract_strided_slice %227 {offsets = [0, 0], sizes = [8, 32], strides = [1, 1]} : vector<8x128xf32> to vector<8x32xf32>
    %229 = vector.extract_strided_slice %198 {offsets = [0, 0], sizes = [8, 32], strides = [1, 1]} : vector<8x128xf32> to vector<8x32xf32>
    %230 = tpu.concatenate %228, %229 in 1 : vector<8x32xf32>, vector<8x32xf32> -> vector<8x64xf32>
    %cst_46 = arith.constant dense<0.000000e+00> : vector<8x512xf32>
    %231 = tpu.matmul %230, %18, %cst_46 {dimension_numbers = #tpu.dot_dimension_numbers<[1], [0], [0], [1], [0, 0, 1, 1], [], []>} : vector<8x64xf32>, vector<64x512xf32>, vector<8x512xf32> -> vector<8x512xf32>
    %232 = arith.addf %231, %21 : vector<8x512xf32>
    %233 = vector.extract_strided_slice %232 {offsets = [0, 0], sizes = [8, 128], strides = [1, 1]} : vector<8x512xf32> to vector<8x128xf32>
    %234 = arith.negf %233 : vector<8x128xf32>
    %235 = math.exp %234 : vector<8x128xf32>
    %cst_47 = arith.constant 1.000000e+00 : f32
    %236 = vector.broadcast %cst_47 : f32 to vector<8x128xf32>
    %237 = arith.addf %236, %235 : vector<8x128xf32>
    %238 = arith.divf %236, %237 : vector<8x128xf32>
    %239 = vector.extract_strided_slice %232 {offsets = [0, 128], sizes = [8, 128], strides = [1, 1]} : vector<8x512xf32> to vector<8x128xf32>
    %240 = arith.negf %239 : vector<8x128xf32>
    %241 = math.exp %240 : vector<8x128xf32>
    %cst_48 = arith.constant 1.000000e+00 : f32
    %242 = vector.broadcast %cst_48 : f32 to vector<8x128xf32>
    %243 = arith.addf %242, %241 : vector<8x128xf32>
    %244 = arith.divf %242, %243 : vector<8x128xf32>
    %245 = vector.extract_strided_slice %232 {offsets = [0, 256], sizes = [8, 128], strides = [1, 1]} : vector<8x512xf32> to vector<8x128xf32>
    %246 = math.tanh %245 : vector<8x128xf32>
    %247 = vector.extract_strided_slice %232 {offsets = [0, 384], sizes = [8, 128], strides = [1, 1]} : vector<8x512xf32> to vector<8x128xf32>
    %248 = arith.negf %247 : vector<8x128xf32>
    %249 = math.exp %248 : vector<8x128xf32>
    %cst_49 = arith.constant 1.000000e+00 : f32
    %250 = vector.broadcast %cst_49 : f32 to vector<8x128xf32>
    %251 = arith.addf %250, %249 : vector<8x128xf32>
    %252 = arith.divf %250, %251 : vector<8x128xf32>
    %253 = arith.mulf %244, %196 : vector<8x128xf32>
    %254 = arith.mulf %238, %246 : vector<8x128xf32>
    %255 = arith.addf %253, %254 : vector<8x128xf32>
    %256 = math.tanh %255 : vector<8x128xf32>
    %257 = arith.mulf %252, %256 : vector<8x128xf32>
    %258 = vector.extract_strided_slice %16 {offsets = [32, 0], sizes = [8, 512], strides = [1, 1]} : vector<64x512xf32> to vector<8x512xf32>
    %259 = vector.extract_strided_slice %227 {offsets = [0, 0], sizes = [8, 32], strides = [1, 1]} : vector<8x128xf32> to vector<8x32xf32>
    %cst_50 = arith.constant dense<0.000000e+00> : vector<8x512xf32>
    %260 = tpu.matmul %259, %17, %cst_50 {dimension_numbers = #tpu.dot_dimension_numbers<[1], [0], [0], [1], [0, 0, 1, 1], [], []>} : vector<8x32xf32>, vector<32x512xf32>, vector<8x512xf32> -> vector<8x512xf32>
    %261 = arith.addf %258, %260 : vector<8x512xf32>
    %262 = vector.extract_strided_slice %261 {offsets = [0, 0], sizes = [8, 128], strides = [1, 1]} : vector<8x512xf32> to vector<8x128xf32>
    %263 = arith.negf %262 : vector<8x128xf32>
    %264 = math.exp %263 : vector<8x128xf32>
    %cst_51 = arith.constant 1.000000e+00 : f32
    %265 = vector.broadcast %cst_51 : f32 to vector<8x128xf32>
    %266 = arith.addf %265, %264 : vector<8x128xf32>
    %267 = arith.divf %265, %266 : vector<8x128xf32>
    %268 = vector.extract_strided_slice %261 {offsets = [0, 128], sizes = [8, 128], strides = [1, 1]} : vector<8x512xf32> to vector<8x128xf32>
    %269 = arith.negf %268 : vector<8x128xf32>
    %270 = math.exp %269 : vector<8x128xf32>
    %cst_52 = arith.constant 1.000000e+00 : f32
    %271 = vector.broadcast %cst_52 : f32 to vector<8x128xf32>
    %272 = arith.addf %271, %270 : vector<8x128xf32>
    %273 = arith.divf %271, %272 : vector<8x128xf32>
    %274 = vector.extract_strided_slice %261 {offsets = [0, 256], sizes = [8, 128], strides = [1, 1]} : vector<8x512xf32> to vector<8x128xf32>
    %275 = math.tanh %274 : vector<8x128xf32>
    %276 = vector.extract_strided_slice %261 {offsets = [0, 384], sizes = [8, 128], strides = [1, 1]} : vector<8x512xf32> to vector<8x128xf32>
    %277 = arith.negf %276 : vector<8x128xf32>
    %278 = math.exp %277 : vector<8x128xf32>
    %cst_53 = arith.constant 1.000000e+00 : f32
    %279 = vector.broadcast %cst_53 : f32 to vector<8x128xf32>
    %280 = arith.addf %279, %278 : vector<8x128xf32>
    %281 = arith.divf %279, %280 : vector<8x128xf32>
    %282 = arith.mulf %273, %225 : vector<8x128xf32>
    %283 = arith.mulf %267, %275 : vector<8x128xf32>
    %284 = arith.addf %282, %283 : vector<8x128xf32>
    %285 = math.tanh %284 : vector<8x128xf32>
    %286 = arith.mulf %281, %285 : vector<8x128xf32>
    %287 = vector.extract_strided_slice %286 {offsets = [0, 0], sizes = [8, 32], strides = [1, 1]} : vector<8x128xf32> to vector<8x32xf32>
    %288 = vector.extract_strided_slice %257 {offsets = [0, 0], sizes = [8, 32], strides = [1, 1]} : vector<8x128xf32> to vector<8x32xf32>
    %289 = tpu.concatenate %287, %288 in 1 : vector<8x32xf32>, vector<8x32xf32> -> vector<8x64xf32>
    %cst_54 = arith.constant dense<0.000000e+00> : vector<8x512xf32>
    %290 = tpu.matmul %289, %18, %cst_54 {dimension_numbers = #tpu.dot_dimension_numbers<[1], [0], [0], [1], [0, 0, 1, 1], [], []>} : vector<8x64xf32>, vector<64x512xf32>, vector<8x512xf32> -> vector<8x512xf32>
    %291 = arith.addf %290, %21 : vector<8x512xf32>
    %292 = vector.extract_strided_slice %291 {offsets = [0, 0], sizes = [8, 128], strides = [1, 1]} : vector<8x512xf32> to vector<8x128xf32>
    %293 = arith.negf %292 : vector<8x128xf32>
    %294 = math.exp %293 : vector<8x128xf32>
    %cst_55 = arith.constant 1.000000e+00 : f32
    %295 = vector.broadcast %cst_55 : f32 to vector<8x128xf32>
    %296 = arith.addf %295, %294 : vector<8x128xf32>
    %297 = arith.divf %295, %296 : vector<8x128xf32>
    %298 = vector.extract_strided_slice %291 {offsets = [0, 128], sizes = [8, 128], strides = [1, 1]} : vector<8x512xf32> to vector<8x128xf32>
    %299 = arith.negf %298 : vector<8x128xf32>
    %300 = math.exp %299 : vector<8x128xf32>
    %cst_56 = arith.constant 1.000000e+00 : f32
    %301 = vector.broadcast %cst_56 : f32 to vector<8x128xf32>
    %302 = arith.addf %301, %300 : vector<8x128xf32>
    %303 = arith.divf %301, %302 : vector<8x128xf32>
    %304 = vector.extract_strided_slice %291 {offsets = [0, 256], sizes = [8, 128], strides = [1, 1]} : vector<8x512xf32> to vector<8x128xf32>
    %305 = math.tanh %304 : vector<8x128xf32>
    %306 = vector.extract_strided_slice %291 {offsets = [0, 384], sizes = [8, 128], strides = [1, 1]} : vector<8x512xf32> to vector<8x128xf32>
    %307 = arith.negf %306 : vector<8x128xf32>
    %308 = math.exp %307 : vector<8x128xf32>
    %cst_57 = arith.constant 1.000000e+00 : f32
    %309 = vector.broadcast %cst_57 : f32 to vector<8x128xf32>
    %310 = arith.addf %309, %308 : vector<8x128xf32>
    %311 = arith.divf %309, %310 : vector<8x128xf32>
    %312 = arith.mulf %303, %255 : vector<8x128xf32>
    %313 = arith.mulf %297, %305 : vector<8x128xf32>
    %314 = arith.addf %312, %313 : vector<8x128xf32>
    %315 = math.tanh %314 : vector<8x128xf32>
    %316 = arith.mulf %311, %315 : vector<8x128xf32>
    %317 = vector.extract_strided_slice %16 {offsets = [40, 0], sizes = [8, 512], strides = [1, 1]} : vector<64x512xf32> to vector<8x512xf32>
    %318 = vector.extract_strided_slice %286 {offsets = [0, 0], sizes = [8, 32], strides = [1, 1]} : vector<8x128xf32> to vector<8x32xf32>
    %cst_58 = arith.constant dense<0.000000e+00> : vector<8x512xf32>
    %319 = tpu.matmul %318, %17, %cst_58 {dimension_numbers = #tpu.dot_dimension_numbers<[1], [0], [0], [1], [0, 0, 1, 1], [], []>} : vector<8x32xf32>, vector<32x512xf32>, vector<8x512xf32> -> vector<8x512xf32>
    %320 = arith.addf %317, %319 : vector<8x512xf32>
    %321 = vector.extract_strided_slice %320 {offsets = [0, 0], sizes = [8, 128], strides = [1, 1]} : vector<8x512xf32> to vector<8x128xf32>
    %322 = arith.negf %321 : vector<8x128xf32>
    %323 = math.exp %322 : vector<8x128xf32>
    %cst_59 = arith.constant 1.000000e+00 : f32
    %324 = vector.broadcast %cst_59 : f32 to vector<8x128xf32>
    %325 = arith.addf %324, %323 : vector<8x128xf32>
    %326 = arith.divf %324, %325 : vector<8x128xf32>
    %327 = vector.extract_strided_slice %320 {offsets = [0, 128], sizes = [8, 128], strides = [1, 1]} : vector<8x512xf32> to vector<8x128xf32>
    %328 = arith.negf %327 : vector<8x128xf32>
    %329 = math.exp %328 : vector<8x128xf32>
    %cst_60 = arith.constant 1.000000e+00 : f32
    %330 = vector.broadcast %cst_60 : f32 to vector<8x128xf32>
    %331 = arith.addf %330, %329 : vector<8x128xf32>
    %332 = arith.divf %330, %331 : vector<8x128xf32>
    %333 = vector.extract_strided_slice %320 {offsets = [0, 256], sizes = [8, 128], strides = [1, 1]} : vector<8x512xf32> to vector<8x128xf32>
    %334 = math.tanh %333 : vector<8x128xf32>
    %335 = vector.extract_strided_slice %320 {offsets = [0, 384], sizes = [8, 128], strides = [1, 1]} : vector<8x512xf32> to vector<8x128xf32>
    %336 = arith.negf %335 : vector<8x128xf32>
    %337 = math.exp %336 : vector<8x128xf32>
    %cst_61 = arith.constant 1.000000e+00 : f32
    %338 = vector.broadcast %cst_61 : f32 to vector<8x128xf32>
    %339 = arith.addf %338, %337 : vector<8x128xf32>
    %340 = arith.divf %338, %339 : vector<8x128xf32>
    %341 = arith.mulf %332, %284 : vector<8x128xf32>
    %342 = arith.mulf %326, %334 : vector<8x128xf32>
    %343 = arith.addf %341, %342 : vector<8x128xf32>
    %344 = math.tanh %343 : vector<8x128xf32>
    %345 = arith.mulf %340, %344 : vector<8x128xf32>
    %346 = vector.extract_strided_slice %345 {offsets = [0, 0], sizes = [8, 32], strides = [1, 1]} : vector<8x128xf32> to vector<8x32xf32>
    %347 = vector.extract_strided_slice %316 {offsets = [0, 0], sizes = [8, 32], strides = [1, 1]} : vector<8x128xf32> to vector<8x32xf32>
    %348 = tpu.concatenate %346, %347 in 1 : vector<8x32xf32>, vector<8x32xf32> -> vector<8x64xf32>
    %cst_62 = arith.constant dense<0.000000e+00> : vector<8x512xf32>
    %349 = tpu.matmul %348, %18, %cst_62 {dimension_numbers = #tpu.dot_dimension_numbers<[1], [0], [0], [1], [0, 0, 1, 1], [], []>} : vector<8x64xf32>, vector<64x512xf32>, vector<8x512xf32> -> vector<8x512xf32>
    %350 = arith.addf %349, %21 : vector<8x512xf32>
    %351 = vector.extract_strided_slice %350 {offsets = [0, 0], sizes = [8, 128], strides = [1, 1]} : vector<8x512xf32> to vector<8x128xf32>
    %352 = arith.negf %351 : vector<8x128xf32>
    %353 = math.exp %352 : vector<8x128xf32>
    %cst_63 = arith.constant 1.000000e+00 : f32
    %354 = vector.broadcast %cst_63 : f32 to vector<8x128xf32>
    %355 = arith.addf %354, %353 : vector<8x128xf32>
    %356 = arith.divf %354, %355 : vector<8x128xf32>
    %357 = vector.extract_strided_slice %350 {offsets = [0, 128], sizes = [8, 128], strides = [1, 1]} : vector<8x512xf32> to vector<8x128xf32>
    %358 = arith.negf %357 : vector<8x128xf32>
    %359 = math.exp %358 : vector<8x128xf32>
    %cst_64 = arith.constant 1.000000e+00 : f32
    %360 = vector.broadcast %cst_64 : f32 to vector<8x128xf32>
    %361 = arith.addf %360, %359 : vector<8x128xf32>
    %362 = arith.divf %360, %361 : vector<8x128xf32>
    %363 = vector.extract_strided_slice %350 {offsets = [0, 256], sizes = [8, 128], strides = [1, 1]} : vector<8x512xf32> to vector<8x128xf32>
    %364 = math.tanh %363 : vector<8x128xf32>
    %365 = vector.extract_strided_slice %350 {offsets = [0, 384], sizes = [8, 128], strides = [1, 1]} : vector<8x512xf32> to vector<8x128xf32>
    %366 = arith.negf %365 : vector<8x128xf32>
    %367 = math.exp %366 : vector<8x128xf32>
    %cst_65 = arith.constant 1.000000e+00 : f32
    %368 = vector.broadcast %cst_65 : f32 to vector<8x128xf32>
    %369 = arith.addf %368, %367 : vector<8x128xf32>
    %370 = arith.divf %368, %369 : vector<8x128xf32>
    %371 = arith.mulf %362, %314 : vector<8x128xf32>
    %372 = arith.mulf %356, %364 : vector<8x128xf32>
    %373 = arith.addf %371, %372 : vector<8x128xf32>
    %374 = math.tanh %373 : vector<8x128xf32>
    %375 = arith.mulf %370, %374 : vector<8x128xf32>
    %376 = vector.extract_strided_slice %16 {offsets = [48, 0], sizes = [8, 512], strides = [1, 1]} : vector<64x512xf32> to vector<8x512xf32>
    %377 = vector.extract_strided_slice %345 {offsets = [0, 0], sizes = [8, 32], strides = [1, 1]} : vector<8x128xf32> to vector<8x32xf32>
    %cst_66 = arith.constant dense<0.000000e+00> : vector<8x512xf32>
    %378 = tpu.matmul %377, %17, %cst_66 {dimension_numbers = #tpu.dot_dimension_numbers<[1], [0], [0], [1], [0, 0, 1, 1], [], []>} : vector<8x32xf32>, vector<32x512xf32>, vector<8x512xf32> -> vector<8x512xf32>
    %379 = arith.addf %376, %378 : vector<8x512xf32>
    %380 = vector.extract_strided_slice %379 {offsets = [0, 0], sizes = [8, 128], strides = [1, 1]} : vector<8x512xf32> to vector<8x128xf32>
    %381 = arith.negf %380 : vector<8x128xf32>
    %382 = math.exp %381 : vector<8x128xf32>
    %cst_67 = arith.constant 1.000000e+00 : f32
    %383 = vector.broadcast %cst_67 : f32 to vector<8x128xf32>
    %384 = arith.addf %383, %382 : vector<8x128xf32>
    %385 = arith.divf %383, %384 : vector<8x128xf32>
    %386 = vector.extract_strided_slice %379 {offsets = [0, 128], sizes = [8, 128], strides = [1, 1]} : vector<8x512xf32> to vector<8x128xf32>
    %387 = arith.negf %386 : vector<8x128xf32>
    %388 = math.exp %387 : vector<8x128xf32>
    %cst_68 = arith.constant 1.000000e+00 : f32
    %389 = vector.broadcast %cst_68 : f32 to vector<8x128xf32>
    %390 = arith.addf %389, %388 : vector<8x128xf32>
    %391 = arith.divf %389, %390 : vector<8x128xf32>
    %392 = vector.extract_strided_slice %379 {offsets = [0, 256], sizes = [8, 128], strides = [1, 1]} : vector<8x512xf32> to vector<8x128xf32>
    %393 = math.tanh %392 : vector<8x128xf32>
    %394 = vector.extract_strided_slice %379 {offsets = [0, 384], sizes = [8, 128], strides = [1, 1]} : vector<8x512xf32> to vector<8x128xf32>
    %395 = arith.negf %394 : vector<8x128xf32>
    %396 = math.exp %395 : vector<8x128xf32>
    %cst_69 = arith.constant 1.000000e+00 : f32
    %397 = vector.broadcast %cst_69 : f32 to vector<8x128xf32>
    %398 = arith.addf %397, %396 : vector<8x128xf32>
    %399 = arith.divf %397, %398 : vector<8x128xf32>
    %400 = arith.mulf %391, %343 : vector<8x128xf32>
    %401 = arith.mulf %385, %393 : vector<8x128xf32>
    %402 = arith.addf %400, %401 : vector<8x128xf32>
    %403 = math.tanh %402 : vector<8x128xf32>
    %404 = arith.mulf %399, %403 : vector<8x128xf32>
    %405 = vector.extract_strided_slice %404 {offsets = [0, 0], sizes = [8, 32], strides = [1, 1]} : vector<8x128xf32> to vector<8x32xf32>
    %406 = vector.extract_strided_slice %375 {offsets = [0, 0], sizes = [8, 32], strides = [1, 1]} : vector<8x128xf32> to vector<8x32xf32>
    %407 = tpu.concatenate %405, %406 in 1 : vector<8x32xf32>, vector<8x32xf32> -> vector<8x64xf32>
    %cst_70 = arith.constant dense<0.000000e+00> : vector<8x512xf32>
    %408 = tpu.matmul %407, %18, %cst_70 {dimension_numbers = #tpu.dot_dimension_numbers<[1], [0], [0], [1], [0, 0, 1, 1], [], []>} : vector<8x64xf32>, vector<64x512xf32>, vector<8x512xf32> -> vector<8x512xf32>
    %409 = arith.addf %408, %21 : vector<8x512xf32>
    %410 = vector.extract_strided_slice %409 {offsets = [0, 0], sizes = [8, 128], strides = [1, 1]} : vector<8x512xf32> to vector<8x128xf32>
    %411 = arith.negf %410 : vector<8x128xf32>
    %412 = math.exp %411 : vector<8x128xf32>
    %cst_71 = arith.constant 1.000000e+00 : f32
    %413 = vector.broadcast %cst_71 : f32 to vector<8x128xf32>
    %414 = arith.addf %413, %412 : vector<8x128xf32>
    %415 = arith.divf %413, %414 : vector<8x128xf32>
    %416 = vector.extract_strided_slice %409 {offsets = [0, 128], sizes = [8, 128], strides = [1, 1]} : vector<8x512xf32> to vector<8x128xf32>
    %417 = arith.negf %416 : vector<8x128xf32>
    %418 = math.exp %417 : vector<8x128xf32>
    %cst_72 = arith.constant 1.000000e+00 : f32
    %419 = vector.broadcast %cst_72 : f32 to vector<8x128xf32>
    %420 = arith.addf %419, %418 : vector<8x128xf32>
    %421 = arith.divf %419, %420 : vector<8x128xf32>
    %422 = vector.extract_strided_slice %409 {offsets = [0, 256], sizes = [8, 128], strides = [1, 1]} : vector<8x512xf32> to vector<8x128xf32>
    %423 = math.tanh %422 : vector<8x128xf32>
    %424 = vector.extract_strided_slice %409 {offsets = [0, 384], sizes = [8, 128], strides = [1, 1]} : vector<8x512xf32> to vector<8x128xf32>
    %425 = arith.negf %424 : vector<8x128xf32>
    %426 = math.exp %425 : vector<8x128xf32>
    %cst_73 = arith.constant 1.000000e+00 : f32
    %427 = vector.broadcast %cst_73 : f32 to vector<8x128xf32>
    %428 = arith.addf %427, %426 : vector<8x128xf32>
    %429 = arith.divf %427, %428 : vector<8x128xf32>
    %430 = arith.mulf %421, %373 : vector<8x128xf32>
    %431 = arith.mulf %415, %423 : vector<8x128xf32>
    %432 = arith.addf %430, %431 : vector<8x128xf32>
    %433 = math.tanh %432 : vector<8x128xf32>
    %434 = arith.mulf %429, %433 : vector<8x128xf32>
    %435 = vector.extract_strided_slice %16 {offsets = [56, 0], sizes = [8, 512], strides = [1, 1]} : vector<64x512xf32> to vector<8x512xf32>
    %436 = vector.extract_strided_slice %404 {offsets = [0, 0], sizes = [8, 32], strides = [1, 1]} : vector<8x128xf32> to vector<8x32xf32>
    %cst_74 = arith.constant dense<0.000000e+00> : vector<8x512xf32>
    %437 = tpu.matmul %436, %17, %cst_74 {dimension_numbers = #tpu.dot_dimension_numbers<[1], [0], [0], [1], [0, 0, 1, 1], [], []>} : vector<8x32xf32>, vector<32x512xf32>, vector<8x512xf32> -> vector<8x512xf32>
    %438 = arith.addf %435, %437 : vector<8x512xf32>
    %439 = vector.extract_strided_slice %438 {offsets = [0, 0], sizes = [8, 128], strides = [1, 1]} : vector<8x512xf32> to vector<8x128xf32>
    %440 = arith.negf %439 : vector<8x128xf32>
    %441 = math.exp %440 : vector<8x128xf32>
    %cst_75 = arith.constant 1.000000e+00 : f32
    %442 = vector.broadcast %cst_75 : f32 to vector<8x128xf32>
    %443 = arith.addf %442, %441 : vector<8x128xf32>
    %444 = arith.divf %442, %443 : vector<8x128xf32>
    %445 = vector.extract_strided_slice %438 {offsets = [0, 128], sizes = [8, 128], strides = [1, 1]} : vector<8x512xf32> to vector<8x128xf32>
    %446 = arith.negf %445 : vector<8x128xf32>
    %447 = math.exp %446 : vector<8x128xf32>
    %cst_76 = arith.constant 1.000000e+00 : f32
    %448 = vector.broadcast %cst_76 : f32 to vector<8x128xf32>
    %449 = arith.addf %448, %447 : vector<8x128xf32>
    %450 = arith.divf %448, %449 : vector<8x128xf32>
    %451 = vector.extract_strided_slice %438 {offsets = [0, 256], sizes = [8, 128], strides = [1, 1]} : vector<8x512xf32> to vector<8x128xf32>
    %452 = math.tanh %451 : vector<8x128xf32>
    %453 = vector.extract_strided_slice %438 {offsets = [0, 384], sizes = [8, 128], strides = [1, 1]} : vector<8x512xf32> to vector<8x128xf32>
    %454 = arith.negf %453 : vector<8x128xf32>
    %455 = math.exp %454 : vector<8x128xf32>
    %cst_77 = arith.constant 1.000000e+00 : f32
    %456 = vector.broadcast %cst_77 : f32 to vector<8x128xf32>
    %457 = arith.addf %456, %455 : vector<8x128xf32>
    %458 = arith.divf %456, %457 : vector<8x128xf32>
    %459 = arith.mulf %450, %402 : vector<8x128xf32>
    %460 = arith.mulf %444, %452 : vector<8x128xf32>
    %461 = arith.addf %459, %460 : vector<8x128xf32>
    %462 = math.tanh %461 : vector<8x128xf32>
    %463 = arith.mulf %458, %462 : vector<8x128xf32>
    %464 = vector.extract_strided_slice %463 {offsets = [0, 0], sizes = [8, 32], strides = [1, 1]} : vector<8x128xf32> to vector<8x32xf32>
    %465 = vector.extract_strided_slice %434 {offsets = [0, 0], sizes = [8, 32], strides = [1, 1]} : vector<8x128xf32> to vector<8x32xf32>
    %466 = tpu.concatenate %464, %465 in 1 : vector<8x32xf32>, vector<8x32xf32> -> vector<8x64xf32>
    %cst_78 = arith.constant dense<0.000000e+00> : vector<8x512xf32>
    %467 = tpu.matmul %466, %18, %cst_78 {dimension_numbers = #tpu.dot_dimension_numbers<[1], [0], [0], [1], [0, 0, 1, 1], [], []>} : vector<8x64xf32>, vector<64x512xf32>, vector<8x512xf32> -> vector<8x512xf32>
    %468 = arith.addf %467, %21 : vector<8x512xf32>
    %469 = vector.extract_strided_slice %468 {offsets = [0, 0], sizes = [8, 128], strides = [1, 1]} : vector<8x512xf32> to vector<8x128xf32>
    %470 = arith.negf %469 : vector<8x128xf32>
    %471 = math.exp %470 : vector<8x128xf32>
    %cst_79 = arith.constant 1.000000e+00 : f32
    %472 = vector.broadcast %cst_79 : f32 to vector<8x128xf32>
    %473 = arith.addf %472, %471 : vector<8x128xf32>
    %474 = arith.divf %472, %473 : vector<8x128xf32>
    %475 = vector.extract_strided_slice %468 {offsets = [0, 128], sizes = [8, 128], strides = [1, 1]} : vector<8x512xf32> to vector<8x128xf32>
    %476 = arith.negf %475 : vector<8x128xf32>
    %477 = math.exp %476 : vector<8x128xf32>
    %cst_80 = arith.constant 1.000000e+00 : f32
    %478 = vector.broadcast %cst_80 : f32 to vector<8x128xf32>
    %479 = arith.addf %478, %477 : vector<8x128xf32>
    %480 = arith.divf %478, %479 : vector<8x128xf32>
    %481 = vector.extract_strided_slice %468 {offsets = [0, 256], sizes = [8, 128], strides = [1, 1]} : vector<8x512xf32> to vector<8x128xf32>
    %482 = math.tanh %481 : vector<8x128xf32>
    %483 = vector.extract_strided_slice %468 {offsets = [0, 384], sizes = [8, 128], strides = [1, 1]} : vector<8x512xf32> to vector<8x128xf32>
    %484 = arith.negf %483 : vector<8x128xf32>
    %485 = math.exp %484 : vector<8x128xf32>
    %cst_81 = arith.constant 1.000000e+00 : f32
    %486 = vector.broadcast %cst_81 : f32 to vector<8x128xf32>
    %487 = arith.addf %486, %485 : vector<8x128xf32>
    %488 = arith.divf %486, %487 : vector<8x128xf32>
    %489 = arith.mulf %480, %432 : vector<8x128xf32>
    %490 = arith.mulf %474, %482 : vector<8x128xf32>
    %491 = arith.addf %489, %490 : vector<8x128xf32>
    %492 = math.tanh %491 : vector<8x128xf32>
    %493 = arith.mulf %488, %492 : vector<8x128xf32>
    %c0_82 = arith.constant 0 : index
    %c0_83 = arith.constant 0 : index
    %c0_84 = arith.constant 0 : index
    %494 = vector.load %arg12[%c0_82, %c0_83, %c0_84] : memref<2x8x128xf32, #tpu.memory_space<vmem>>, vector<1x8x128xf32>
    %495 = vector.shape_cast %494 : vector<1x8x128xf32> to vector<8x128xf32>
    %496 = vector.shape_cast %463 : vector<8x128xf32> to vector<1x8x128xf32>
    tpu.vector_store %arg12[%c0_82, %c0_83, %c0_84], %496 {strides = array<i32>} : memref<2x8x128xf32, #tpu.memory_space<vmem>>, vector<1x8x128xf32>,
    %c1 = arith.constant 1 : index
    %c0_85 = arith.constant 0 : index
    %c0_86 = arith.constant 0 : index
    %497 = vector.load %arg12[%c1, %c0_85, %c0_86] : memref<2x8x128xf32, #tpu.memory_space<vmem>>, vector<1x8x128xf32>
    %498 = vector.shape_cast %497 : vector<1x8x128xf32> to vector<8x128xf32>
    %499 = vector.shape_cast %493 : vector<8x128xf32> to vector<1x8x128xf32>
    tpu.vector_store %arg12[%c1, %c0_85, %c0_86], %499 {strides = array<i32>} : memref<2x8x128xf32, #tpu.memory_space<vmem>>, vector<1x8x128xf32>,
    %c0_87 = arith.constant 0 : index
    %c0_88 = arith.constant 0 : index
    %c0_89 = arith.constant 0 : index
    %500 = vector.load %arg13[%c0_87, %c0_88, %c0_89] : memref<2x8x128xf32, #tpu.memory_space<vmem>>, vector<1x8x128xf32>
    %501 = vector.shape_cast %500 : vector<1x8x128xf32> to vector<8x128xf32>
    %502 = vector.shape_cast %461 : vector<8x128xf32> to vector<1x8x128xf32>
    tpu.vector_store %arg13[%c0_87, %c0_88, %c0_89], %502 {strides = array<i32>} : memref<2x8x128xf32, #tpu.memory_space<vmem>>, vector<1x8x128xf32>,
    %c1_90 = arith.constant 1 : index
    %c0_91 = arith.constant 0 : index
    %c0_92 = arith.constant 0 : index
    %503 = vector.load %arg13[%c1_90, %c0_91, %c0_92] : memref<2x8x128xf32, #tpu.memory_space<vmem>>, vector<1x8x128xf32>
    %504 = vector.shape_cast %503 : vector<1x8x128xf32> to vector<8x128xf32>
    %505 = vector.shape_cast %491 : vector<8x128xf32> to vector<1x8x128xf32>
    tpu.vector_store %arg13[%c1_90, %c0_91, %c0_92], %505 {strides = array<i32>} : memref<2x8x128xf32, #tpu.memory_space<vmem>>, vector<1x8x128xf32>,
    %506 = tpu.concatenate %80, %139, %198, %257, %316, %375, %434, %493 in 0 : vector<8x128xf32>, vector<8x128xf32>, vector<8x128xf32>, vector<8x128xf32>, vector<8x128xf32>, vector<8x128xf32>, vector<8x128xf32>, vector<8x128xf32> -> vector<64x128xf32>
    %c0_93 = arith.constant 0 : index
    %c0_94 = arith.constant 0 : index
    %507 = vector.load %arg9[%c0_93, %c0_94] : memref<128x128xf32, #tpu.memory_space<vmem>>, vector<128x128xf32>
    %cst_95 = arith.constant dense<0.000000e+00> : vector<64x128xf32>
    %508 = tpu.matmul %506, %507, %cst_95 {dimension_numbers = #tpu.dot_dimension_numbers<[1], [0], [0], [1], [0, 0, 1, 1], [], []>} : vector<64x128xf32>, vector<128x128xf32>, vector<64x128xf32> -> vector<64x128xf32>
    %c0_96 = arith.constant 0 : index
    %c0_97 = arith.constant 0 : index
    %509 = vector.load %arg10[%c0_96, %c0_97] : memref<1x128xf32, #tpu.memory_space<vmem>>, vector<1x128xf32>
    %510 = vector.broadcast %509 : vector<1x128xf32> to vector<64x128xf32>
    %511 = arith.addf %508, %510 : vector<64x128xf32>
    %512 = tpu.iota {dimensions = array<i32: 1>} : vector<64x128xi32>
    %c16_i32 = arith.constant 16 : i32
    %513 = vector.broadcast %c16_i32 : i32 to vector<64x128xi32>
    %514 = arith.cmpi slt, %512, %513 : vector<64x128xi32>
    %c48_i32 = arith.constant 48 : i32
    %515 = vector.broadcast %c48_i32 : i32 to vector<64x128xi32>
    %516 = arith.cmpi sge, %512, %515 : vector<64x128xi32>
    %c80_i32 = arith.constant 80 : i32
    %517 = vector.broadcast %c80_i32 : i32 to vector<64x128xi32>
    %518 = arith.cmpi slt, %512, %517 : vector<64x128xi32>
    %519 = arith.andi %516, %518 : vector<64x128xi1>
    %c80_i32_98 = arith.constant 80 : i32
    %520 = vector.broadcast %c80_i32_98 : i32 to vector<64x128xi32>
    %521 = arith.cmpi sge, %512, %520 : vector<64x128xi32>
    %c96_i32 = arith.constant 96 : i32
    %522 = vector.broadcast %c96_i32 : i32 to vector<64x128xi32>
    %523 = arith.cmpi slt, %512, %522 : vector<64x128xi32>
    %524 = arith.andi %521, %523 : vector<64x128xi1>
    %c96_i32_99 = arith.constant 96 : i32
    %525 = vector.broadcast %c96_i32_99 : i32 to vector<64x128xi32>
    %526 = arith.cmpi sge, %512, %525 : vector<64x128xi32>
    %c100_i32 = arith.constant 100 : i32
    %527 = vector.broadcast %c100_i32 : i32 to vector<64x128xi32>
    %528 = arith.cmpi slt, %512, %527 : vector<64x128xi32>
    %529 = arith.andi %526, %528 : vector<64x128xi1>
    %530 = math.exp %511 : vector<64x128xf32>
    %531 = math.tanh %511 : vector<64x128xf32>
    %532 = arith.select %524, %531, %511 : vector<64x128xi1>, vector<64x128xf32>
    %533 = arith.select %519, %530, %532 : vector<64x128xi1>, vector<64x128xf32>
    %cst_100 = arith.constant -1.000000e+30 : f32
    %534 = vector.broadcast %cst_100 : f32 to vector<64x128xf32>
    %535 = arith.select %514, %511, %534 : vector<64x128xi1>, vector<64x128xf32>
    %cst_101 = arith.constant dense<0xFF800000> : vector<64xf32>
    %536 = vector.multi_reduction <maximumf>, %535, %cst_101 [1] : vector<64x128xf32> to vector<64xf32>
    %537 = vector.shape_cast %536 : vector<64xf32> to vector<64x1xf32>
    %538 = vector.broadcast %537 : vector<64x1xf32> to vector<64x128xf32>
    %539 = arith.subf %511, %538 : vector<64x128xf32>
    %540 = math.exp %539 : vector<64x128xf32>
    %cst_102 = arith.constant 0.000000e+00 : f32
    %541 = vector.broadcast %cst_102 : f32 to vector<64x128xf32>
    %542 = arith.select %514, %540, %541 : vector<64x128xi1>, vector<64x128xf32>
    %cst_103 = arith.constant dense<0.000000e+00> : vector<64xf32>
    %543 = vector.multi_reduction <add>, %542, %cst_103 [1] : vector<64x128xf32> to vector<64xf32>
    %544 = vector.shape_cast %543 : vector<64xf32> to vector<64x1xf32>
    %545 = vector.broadcast %544 : vector<64x1xf32> to vector<64x128xf32>
    %546 = arith.divf %542, %545 : vector<64x128xf32>
    %cst_104 = arith.constant -1.000000e+30 : f32
    %547 = vector.broadcast %cst_104 : f32 to vector<64x128xf32>
    %548 = arith.select %529, %511, %547 : vector<64x128xi1>, vector<64x128xf32>
    %cst_105 = arith.constant dense<0xFF800000> : vector<64xf32>
    %549 = vector.multi_reduction <maximumf>, %548, %cst_105 [1] : vector<64x128xf32> to vector<64xf32>
    %550 = vector.shape_cast %549 : vector<64xf32> to vector<64x1xf32>
    %551 = vector.broadcast %550 : vector<64x1xf32> to vector<64x128xf32>
    %552 = arith.subf %511, %551 : vector<64x128xf32>
    %553 = math.exp %552 : vector<64x128xf32>
    %cst_106 = arith.constant 0.000000e+00 : f32
    %554 = vector.broadcast %cst_106 : f32 to vector<64x128xf32>
    %555 = arith.select %529, %553, %554 : vector<64x128xi1>, vector<64x128xf32>
    %cst_107 = arith.constant dense<0.000000e+00> : vector<64xf32>
    %556 = vector.multi_reduction <add>, %555, %cst_107 [1] : vector<64x128xf32> to vector<64xf32>
    %557 = vector.shape_cast %556 : vector<64xf32> to vector<64x1xf32>
    %558 = vector.broadcast %557 : vector<64x1xf32> to vector<64x128xf32>
    %559 = arith.divf %555, %558 : vector<64x128xf32>
    %560 = arith.select %529, %559, %533 : vector<64x128xi1>, vector<64x128xf32>
    %561 = arith.select %514, %546, %560 : vector<64x128xi1>, vector<64x128xf32>
    %c0_108 = arith.constant 0 : index
    %c0_109 = arith.constant 0 : index
    %562 = vector.load %arg11[%c0_108, %c0_109] : memref<64x128xf32, #tpu.memory_space<vmem>>, vector<64x128xf32>
    tpu.vector_store %arg11[%c0_108, %c0_109], %561 {strides = array<i32>} : memref<64x128xf32, #tpu.memory_space<vmem>>, vector<64x128xf32>,
    return
  }
}

</mosaic_0001>

<llo_original>
// kernel: _lambda_.1
$region0: #{_lambda_.1}
  #allocation0 [shape = 'u32[]', space=smem, size = 0x4, offset = 0x4, fixed_abs, tag = 'smem constant byte address 0x4 - core index']
  #allocation1 [shape = 'u32[144,128]{1,0:T(1,128)}', space=vmem, size = 0x12000, scoped, tag = 'internal scratch']
  %s0 = inlined_call_operand.vmem [shape: f32[8,8], index: 0, kind: input, shape index: {}]
  %s1 = inlined_call_operand.vmem [shape: f32[64,13], index: 1, kind: input, shape index: {}]
  %s2 = inlined_call_operand.vmem [shape: f32[8,512], index: 2, kind: input, shape index: {}]
  %s3 = inlined_call_operand.vmem [shape: f32[1,512], index: 3, kind: input, shape index: {}]
  %s4 = inlined_call_operand.vmem [shape: f32[13,512], index: 4, kind: input, shape index: {}]
  %s5 = inlined_call_operand.vmem [shape: f32[32,512], index: 5, kind: input, shape index: {}]
  %s6 = inlined_call_operand.vmem [shape: f32[1,512], index: 6, kind: input, shape index: {}]
  %s7 = inlined_call_operand.vmem [shape: f32[64,512], index: 7, kind: input, shape index: {}]
  %s8 = inlined_call_operand.vmem [shape: f32[1,512], index: 8, kind: input, shape index: {}]
  %s9 = inlined_call_operand.vmem [shape: f32[128,128], index: 9, kind: input, shape index: {}]
  %s10 = inlined_call_operand.vmem [shape: f32[1,128], index: 10, kind: input, shape index: {}]
  %s11 = inlined_call_operand.vmem [shape: f32[64,128], index: 11, kind: output, shape index: {0}]
  %s12 = inlined_call_operand.vmem [shape: f32[2,8,128], index: 12, kind: output, shape index: {1}]
  %s13 = inlined_call_operand.vmem [shape: f32[2,8,128], index: 13, kind: output, shape index: {2}]
  %14 = xla_tuple %s11, %s12, %s13
  %s15 = sld [smem:[#allocation0]]
  $region70: #{_lambda_.1} parent=0
    _
  %s17 = ssub.s32 1, %s15
  %s18 = scalar_select 0, %s17, %s15
  // Predicated region
  $region2: #{_lambda_.1} parent=0 // pred_check
    _
  $region3: #{_lambda_.1} parent=0 // pred_check_branch
    %20 = sbr.rel (0) target = $region5
  $region4: #{_lambda_.1} parent=0 // pred_region
    _
  $region5: #{_lambda_.1} parent=0 // pred_fallthru
    _
  // Predicated region
  $region6: #{_lambda_.1} parent=0 // pred_check
    _
  $region7: #{_lambda_.1} parent=0 // pred_check_branch
    %22 = sbr.rel (0) target = $region9
  $region8: #{_lambda_.1} parent=0 // pred_region
    _
  $region9: #{_lambda_.1} parent=0 // pred_fallthru
    _
  // Predicated region
  $region10: #{_lambda_.1} parent=0 // pred_check
    _
  $region11: #{_lambda_.1} parent=0 // pred_check_branch
    %24 = sbr.rel (0) target = $region13
  $region12: #{_lambda_.1} parent=0 // pred_region
    _
  $region13: #{_lambda_.1} parent=0 // pred_fallthru
    _
  // Predicated region
  $region14: #{_lambda_.1} parent=0 // pred_check
    _
  $region15: #{_lambda_.1} parent=0 // pred_check_branch
    %26 = sbr.rel (0) target = $region17
  $region16: #{_lambda_.1} parent=0 // pred_region
    _
  $region17: #{_lambda_.1} parent=0 // pred_fallthru
    _
  // Predicated region
  $region18: #{_lambda_.1} parent=0 // pred_check
    _
  $region19: #{_lambda_.1} parent=0 // pred_check_branch
    %28 = sbr.rel (0) target = $region21
  $region20: #{_lambda_.1} parent=0 // pred_region
    _
  $region21: #{_lambda_.1} parent=0 // pred_fallthru
    _
  // Predicated region
  $region22: #{_lambda_.1} parent=0 // pred_check
    _
  $region23: #{_lambda_.1} parent=0 // pred_check_branch
    %30 = sbr.rel (0) target = $region25
  $region24: #{_lambda_.1} parent=0 // pred_region
    _
  $region25: #{_lambda_.1} parent=0 // pred_fallthru
    _
  // Predicated region
  $region26: #{_lambda_.1} parent=0 // pred_check
    _
  $region27: #{_lambda_.1} parent=0 // pred_check_branch
    %32 = sbr.rel (0) target = $region29
  $region28: #{_lambda_.1} parent=0 // pred_region
    _
  $region29: #{_lambda_.1} parent=0 // pred_fallthru
    _
  // Predicated region
  $region30: #{_lambda_.1} parent=0 // pred_check
    _
  $region31: #{_lambda_.1} parent=0 // pred_check_branch
    %34 = sbr.rel (0) target = $region33
  $region32: #{_lambda_.1} parent=0 // pred_region
    _
  $region33: #{_lambda_.1} parent=0 // pred_fallthru
    _
  // Predicated region
  $region34: #{_lambda_.1} parent=0 // pred_check
    _
  $region35: #{_lambda_.1} parent=0 // pred_check_branch
    %36 = sbr.rel (0) target = $region37
  $region36: #{_lambda_.1} parent=0 // pred_region
    _
  $region37: #{_lambda_.1} parent=0 // pred_fallthru
    _
  // Predicated region
  $region38: #{_lambda_.1} parent=0 // pred_check
    _
  $region39: #{_lambda_.1} parent=0 // pred_check_branch
    %38 = sbr.rel (0) target = $region41
  $region40: #{_lambda_.1} parent=0 // pred_region
    _
  $region41: #{_lambda_.1} parent=0 // pred_fallthru
    _
  // Predicated region
  $region42: #{_lambda_.1} parent=0 // pred_check
    _
  $region43: #{_lambda_.1} parent=0 // pred_check_branch
    %40 = sbr.rel (0) target = $region45
  $region44: #{_lambda_.1} parent=0 // pred_region
    _
  $region45: #{_lambda_.1} parent=0 // pred_fallthru
    _
  %v41 = vld [vmem:[%s0] sm:$0xff]
  %v42 = vld [vmem:[%s2] sm:$0xff]
  %v43 = vld [vmem:[%s2 + $0x8] sm:$0xff]
  %v44 = vld [vmem:[%s2 + $0x10] sm:$0xff]
  %v45 = vld [vmem:[%s2 + $0x18] sm:$0xff]
  %v46 = vld [vmem:[%s3] sm:$0xf]
  %v48 = vlaneseq
  %v49 = vshrl.u32 %v48, 7
  %v50 = vsub.s32 0, %v49
  %v51 = vrot.slane %v46, %v50
  %v52 = vlaneseq
  %v53 = vshrl.u32 %v52, 7
  %v54 = vsub.s32 1, %v53
  %v55 = vrot.slane %v46, %v54
  %v56 = vlaneseq
  %v57 = vshrl.u32 %v56, 7
  %v58 = vsub.s32 2, %v57
  %v59 = vrot.slane %v46, %v58
  %v60 = vlaneseq
  %v61 = vshrl.u32 %v60, 7
  %v62 = vsub.s32 3, %v61
  %v63 = vrot.slane %v46, %v62
  %vm68 = vcmask 64512
  %v70 = vsel %vm68, %v41, 0
  %72 = vmatprep.subr.mxu0 %v43
  %73 = vmatpush1.msra.mxu0 %v42
  %74 = vmatprep.subr.mxu0 0.0
  %75 = vmatpush1.msra.mxu0 0.0
  %76 = vmatprep.subr.mxu0 0.0
  %77 = vmatpush1.msra.mxu0 0.0
  %78 = vmatprep.subr.mxu0 0.0
  %79 = vmatpush1.msra.mxu0 0.0
  %80 = vmatprep.subr.mxu0 0.0
  %81 = vmatpush1.msra.mxu0 0.0
  %82 = vmatprep.subr.mxu0 0.0
  %83 = vmatpush1.msra.mxu0 0.0
  %84 = vmatprep.subr.mxu0 0.0
  %85 = vmatpush1.msra.mxu0 0.0
  %86 = vmatprep.subr.mxu0 0.0
  %87 = vmatpush1.msra.mxu0 0.0
  %88 = vmatprep.subr.mxu0 0.0
  %89 = vmatpush1.msra.mxu0 0.0
  %90 = vmatprep.subr.mxu0 0.0
  %91 = vmatpush1.msra.mxu0 0.0
  %92 = vmatprep.subr.mxu0 0.0
  %93 = vmatpush1.msra.mxu0 0.0
  %94 = vmatprep.subr.mxu0 0.0
  %95 = vmatpush1.msra.mxu0 0.0
  %96 = vmatprep.subr.mxu0 0.0
  %97 = vmatpush1.msra.mxu0 0.0
  %98 = vmatprep.subr.mxu0 0.0
  %99 = vmatpush1.msra.mxu0 0.0
  %100 = vmatprep.subr.mxu0 0.0
  %101 = vmatpush1.msra.mxu0 0.0
  %102 = vmatprep.subr.mxu0 0.0
  %103 = vmatpush1.msra.mxu0 0.0
  %104 = vmatprep.subr.mxu0 0.0
  %105 = vmatpush1.msra.mxu0 0.0
  %106 = vmatprep.subr.mxu0 0.0
  %107 = vmatpush1.msra.mxu0 0.0
  %108 = vmatprep.subr.mxu0 0.0
  %109 = vmatpush1.msra.mxu0 0.0
  %110 = vmatprep.subr.mxu0 0.0
  %111 = vmatpush1.msra.mxu0 0.0
  %112 = vmatprep.subr.mxu0 0.0
  %113 = vmatpush1.msra.mxu0 0.0
  %114 = vmatprep.subr.mxu0 0.0
  %115 = vmatpush1.msra.mxu0 0.0
  %116 = vmatprep.subr.mxu0 0.0
  %117 = vmatpush1.msra.mxu0 0.0
  %118 = vmatprep.subr.mxu0 0.0
  %119 = vmatpush1.msra.mxu0 0.0
  %120 = vmatprep.subr.mxu0 0.0
  %121 = vmatpush1.msra.mxu0 0.0
  %122 = vmatprep.subr.mxu0 0.0
  %123 = vmatpush1.msra.mxu0 0.0
  %124 = vmatprep.subr.mxu0 0.0
  %125 = vmatpush1.msra.mxu0 0.0
  %126 = vmatprep.subr.mxu0 0.0
  %127 = vmatpush1.msra.mxu0 0.0
  %128 = vmatprep.subr.mxu0 0.0
  %129 = vmatpush1.msra.mxu0 0.0
  %130 = vmatprep.subr.mxu0 0.0
  %131 = vmatpush1.msra.mxu0 0.0
  %132 = vmatprep.subr.mxu0 0.0
  %133 = vmatpush1.msra.mxu0 0.0
  %134 = vmatprep.subr.mxu0 0.0
  %135 = vmatpush1.msra.mxu0 0.0
  %136 = vmatprep.mubr.f32.mxu0 0.0
  %137 = vmatmul.mubr.f32.gmra.mrb[0].mxu0 %v70
  %v138 = vpop.f32.mrb[0].mxu0
  %v139 = vadd.f32 %v51, %v138
  %v140 = vpop.f32.mrb[0].mxu0
  %v141 = vadd.f32 %v55, %v140
  %142 = vdwg.mxu0
  %143 = vmatprep.subr.mxu0 %v45
  %144 = vmatpush1.msra.mxu0 %v44
  %145 = vmatprep.subr.mxu0 0.0
  %146 = vmatpush1.msra.mxu0 0.0
  %147 = vmatprep.subr.mxu0 0.0
  %148 = vmatpush1.msra.mxu0 0.0
  %149 = vmatprep.subr.mxu0 0.0
  %150 = vmatpush1.msra.mxu0 0.0
  %151 = vmatprep.subr.mxu0 0.0
  %152 = vmatpush1.msra.mxu0 0.0
  %153 = vmatprep.subr.mxu0 0.0
  %154 = vmatpush1.msra.mxu0 0.0
  %155 = vmatprep.subr.mxu0 0.0
  %156 = vmatpush1.msra.mxu0 0.0
  %157 = vmatprep.subr.mxu0 0.0
  %158 = vmatpush1.msra.mxu0 0.0
  %159 = vmatprep.subr.mxu0 0.0
  %160 = vmatpush1.msra.mxu0 0.0
  %161 = vmatprep.subr.mxu0 0.0
  %162 = vmatpush1.msra.mxu0 0.0
  %163 = vmatprep.subr.mxu0 0.0
  %164 = vmatpush1.msra.mxu0 0.0
  %165 = vmatprep.subr.mxu0 0.0
  %166 = vmatpush1.msra.mxu0 0.0
  %167 = vmatprep.subr.mxu0 0.0
  %168 = vmatpush1.msra.mxu0 0.0
  %169 = vmatprep.subr.mxu0 0.0
  %170 = vmatpush1.msra.mxu0 0.0
  %171 = vmatprep.subr.mxu0 0.0
  %172 = vmatpush1.msra.mxu0 0.0
  %173 = vmatprep.subr.mxu0 0.0
  %174 = vmatpush1.msra.mxu0 0.0
  %175 = vmatprep.subr.mxu0 0.0
  %176 = vmatpush1.msra.mxu0 0.0
  %177 = vmatprep.subr.mxu0 0.0
  %178 = vmatpush1.msra.mxu0 0.0
  %179 = vmatprep.subr.mxu0 0.0
  %180 = vmatpush1.msra.mxu0 0.0
  %181 = vmatprep.subr.mxu0 0.0
  %182 = vmatpush1.msra.mxu0 0.0
  %183 = vmatprep.subr.mxu0 0.0
  %184 = vmatpush1.msra.mxu0 0.0
  %185 = vmatprep.subr.mxu0 0.0
  %186 = vmatpush1.msra.mxu0 0.0
  %187 = vmatprep.subr.mxu0 0.0
  %188 = vmatpush1.msra.mxu0 0.0
  %189 = vmatprep.subr.mxu0 0.0
  %190 = vmatpush1.msra.mxu0 0.0
  %191 = vmatprep.subr.mxu0 0.0
  %192 = vmatpush1.msra.mxu0 0.0
  %193 = vmatprep.subr.mxu0 0.0
  %194 = vmatpush1.msra.mxu0 0.0
  %195 = vmatprep.subr.mxu0 0.0
  %196 = vmatpush1.msra.mxu0 0.0
  %197 = vmatprep.subr.mxu0 0.0
  %198 = vmatpush1.msra.mxu0 0.0
  %199 = vmatprep.subr.mxu0 0.0
  %200 = vmatpush1.msra.mxu0 0.0
  %201 = vmatprep.subr.mxu0 0.0
  %202 = vmatpush1.msra.mxu0 0.0
  %203 = vmatprep.subr.mxu0 0.0
  %204 = vmatpush1.msra.mxu0 0.0
  %205 = vmatprep.subr.mxu0 0.0
  %206 = vmatpush1.msra.mxu0 0.0
  %207 = vmatprep.mubr.f32.mxu0 0.0
  %208 = vmatmul.mubr.f32.gmra.mrb[0].mxu0 %v70
  %v209 = vpop.f32.mrb[0].mxu0
  %v210 = vadd.f32 %v59, %v209
  %v211 = vpop.f32.mrb[0].mxu0
  %v212 = vadd.f32 %v63, %v211
  %213 = vdwg.mxu0
  %v214 = vtanh.pop %v139
  %v215 = vtanh.pop %v141
  %v216 = vtanh.pop %v210
  %v217 = vtanh.pop %v212
  %v218 = vld [vmem:[%s1] sm:$0xff]
  %v219 = vld [vmem:[%s1 + $0x8] sm:$0xff]
  %v220 = vld [vmem:[%s1 + $0x10] sm:$0xff]
  %v221 = vld [vmem:[%s1 + $0x18] sm:$0xff]
  %v222 = vld [vmem:[%s1 + $0x20] sm:$0xff]
  %v223 = vld [vmem:[%s1 + $0x28] sm:$0xff]
  %v224 = vld [vmem:[%s1 + $0x30] sm:$0xff]
  %v225 = vld [vmem:[%s1 + $0x38] sm:$0xff]
  %v226 = vld [vmem:[%s4] sm:$0xff]
  %v227 = vld [vmem:[%s4 + $0x8] sm:$0xff]
  %v228 = vld [vmem:[%s4 + $0x10] sm:$0xff]
  %v229 = vld [vmem:[%s4 + $0x18] sm:$0xff]
  %v230 = vld [vmem:[%s4 + $0x20] sm:$0x1f]
  %v231 = vld [vmem:[%s4 + $0x28] sm:$0x1f]
  %v232 = vld [vmem:[%s4 + $0x30] sm:$0x1f]
  %v233 = vld [vmem:[%s4 + $0x38] sm:$0x1f]
  %v234 = vld [vmem:[%s6] sm:$0xf]
  %v236 = vlaneseq
  %v237 = vshrl.u32 %v236, 7
  %v238 = vsub.s32 0, %v237
  %v239 = vrot.slane %v234, %v238
  %v240 = vlaneseq
  %v241 = vshrl.u32 %v240, 7
  %v242 = vsub.s32 1, %v241
  %v243 = vrot.slane %v234, %v242
  %v244 = vlaneseq
  %v245 = vshrl.u32 %v244, 7
  %v246 = vsub.s32 2, %v245
  %v247 = vrot.slane %v234, %v246
  %v248 = vlaneseq
  %v249 = vshrl.u32 %v248, 7
  %v250 = vsub.s32 3, %v249
  %v251 = vrot.slane %v234, %v250
  %vm256 = vcmask 105472
  %v258 = vsel %vm256, %v218, 0
  %v261 = vsel %vm256, %v219, 0
  %v264 = vsel %vm256, %v220, 0
  %v267 = vsel %vm256, %v221, 0
  %v270 = vsel %vm256, %v222, 0
  %v273 = vsel %vm256, %v223, 0
  %v276 = vsel %vm256, %v224, 0
  %v279 = vsel %vm256, %v225, 0
  %vm281 = vcmask 1044480
  %v283 = vsel %vm281, %v230, 0
  %v286 = vsel %vm281, %v231, 0
  %v289 = vsel %vm281, %v232, 0
  %v292 = vsel %vm281, %v233, 0
  %294 = vmatprep.subr.mxu0 %v227
  %295 = vmatpush1.msra.mxu0 %v226
  %296 = vmatprep.subr.mxu0 %v286
  %297 = vmatpush1.msra.mxu0 %v283
  %298 = vmatprep.subr.mxu0 0.0
  %299 = vmatpush1.msra.mxu0 0.0
  %300 = vmatprep.subr.mxu0 0.0
  %301 = vmatpush1.msra.mxu0 0.0
  %302 = vmatprep.subr.mxu0 0.0
  %303 = vmatpush1.msra.mxu0 0.0
  %304 = vmatprep.subr.mxu0 0.0
  %305 = vmatpush1.msra.mxu0 0.0
  %306 = vmatprep.subr.mxu0 0.0
  %307 = vmatpush1.msra.mxu0 0.0
  %308 = vmatprep.subr.mxu0 0.0
  %309 = vmatpush1.msra.mxu0 0.0
  %310 = vmatprep.subr.mxu0 0.0
  %311 = vmatpush1.msra.mxu0 0.0
  %312 = vmatprep.subr.mxu0 0.0
  %313 = vmatpush1.msra.mxu0 0.0
  %314 = vmatprep.subr.mxu0 0.0
  %315 = vmatpush1.msra.mxu0 0.0
  %316 = vmatprep.subr.mxu0 0.0
  %317 = vmatpush1.msra.mxu0 0.0
  %318 = vmatprep.subr.mxu0 0.0
  %319 = vmatpush1.msra.mxu0 0.0
  %320 = vmatprep.subr.mxu0 0.0
  %321 = vmatpush1.msra.mxu0 0.0
  %322 = vmatprep.subr.mxu0 0.0
  %323 = vmatpush1.msra.mxu0 0.0
  %324 = vmatprep.subr.mxu0 0.0
  %325 = vmatpush1.msra.mxu0 0.0
  %326 = vmatprep.subr.mxu0 0.0
  %327 = vmatpush1.msra.mxu0 0.0
  %328 = vmatprep.subr.mxu0 0.0
  %329 = vmatpush1.msra.mxu0 0.0
  %330 = vmatprep.subr.mxu0 0.0
  %331 = vmatpush1.msra.mxu0 0.0
  %332 = vmatprep.subr.mxu0 0.0
  %333 = vmatpush1.msra.mxu0 0.0
  %334 = vmatprep.subr.mxu0 0.0
  %335 = vmatpush1.msra.mxu0 0.0
  %336 = vmatprep.subr.mxu0 0.0
  %337 = vmatpush1.msra.mxu0 0.0
  %338 = vmatprep.subr.mxu0 0.0
  %339 = vmatpush1.msra.mxu0 0.0
  %340 = vmatprep.subr.mxu0 0.0
  %341 = vmatpush1.msra.mxu0 0.0
  %342 = vmatprep.subr.mxu0 0.0
  %343 = vmatpush1.msra.mxu0 0.0
  %344 = vmatprep.subr.mxu0 0.0
  %345 = vmatpush1.msra.mxu0 0.0
  %346 = vmatprep.subr.mxu0 0.0
  %347 = vmatpush1.msra.mxu0 0.0
  %348 = vmatprep.subr.mxu0 0.0
  %349 = vmatpush1.msra.mxu0 0.0
  %350 = vmatprep.subr.mxu0 0.0
  %351 = vmatpush1.msra.mxu0 0.0
  %352 = vmatprep.subr.mxu0 0.0
  %353 = vmatpush1.msra.mxu0 0.0
  %354 = vmatprep.subr.mxu0 0.0
  %355 = vmatpush1.msra.mxu0 0.0
  %356 = vmatprep.subr.mxu0 0.0
  %357 = vmatpush1.msra.mxu0 0.0
  %358 = vmatprep.mubr.f32.mxu0 0.0
  %359 = vmatmul.mubr.f32.gmra.mrb[0].mxu0 %v258
  %v360 = vpop.f32.mrb[0].mxu0
  %v361 = vadd.f32 %v239, %v360
  %v362 = vpop.f32.mrb[0].mxu0
  %v363 = vadd.f32 %v243, %v362
  %364 = vmatprep.mubr.f32.mxu0 0.0
  %365 = vmatmul.mubr.f32.gmra.mrb[0].mxu0 %v261
  %v366 = vpop.f32.mrb[0].mxu0
  %v367 = vadd.f32 %v239, %v366
  %v368 = vpop.f32.mrb[0].mxu0
  %v369 = vadd.f32 %v243, %v368
  %370 = vmatprep.mubr.f32.mxu0 0.0
  %371 = vmatmul.mubr.f32.gmra.mrb[0].mxu0 %v264
  %v372 = vpop.f32.mrb[0].mxu0
  %v373 = vadd.f32 %v239, %v372
  %v374 = vpop.f32.mrb[0].mxu0
  %v375 = vadd.f32 %v243, %v374
  %376 = vmatprep.mubr.f32.mxu0 0.0
  %377 = vmatmul.mubr.f32.gmra.mrb[0].mxu0 %v267
  %v378 = vpop.f32.mrb[0].mxu0
  %v379 = vadd.f32 %v239, %v378
  %v380 = vpop.f32.mrb[0].mxu0
  %v381 = vadd.f32 %v243, %v380
  %382 = vmatprep.mubr.f32.mxu0 0.0
  %383 = vmatmul.mubr.f32.gmra.mrb[0].mxu0 %v270
  %v384 = vpop.f32.mrb[0].mxu0
  %v385 = vadd.f32 %v239, %v384
  %v386 = vpop.f32.mrb[0].mxu0
  %v387 = vadd.f32 %v243, %v386
  %388 = vmatprep.mubr.f32.mxu0 0.0
  %389 = vmatmul.mubr.f32.gmra.mrb[0].mxu0 %v273
  %v390 = vpop.f32.mrb[0].mxu0
  %v391 = vadd.f32 %v239, %v390
  %v392 = vpop.f32.mrb[0].mxu0
  %v393 = vadd.f32 %v243, %v392
  %394 = vmatprep.mubr.f32.mxu0 0.0
  %395 = vmatmul.mubr.f32.gmra.mrb[0].mxu0 %v276
  %v396 = vpop.f32.mrb[0].mxu0
  %v397 = vadd.f32 %v239, %v396
  %v398 = vpop.f32.mrb[0].mxu0
  %v399 = vadd.f32 %v243, %v398
  %400 = vmatprep.mubr.f32.mxu0 0.0
  %401 = vmatmul.mubr.f32.gmra.mrb[0].mxu0 %v279
  %v402 = vpop.f32.mrb[0].mxu0
  %v403 = vadd.f32 %v239, %v402
  %v404 = vpop.f32.mrb[0].mxu0
  %v405 = vadd.f32 %v243, %v404
  %406 = vdwg.mxu0
  %407 = vmatprep.subr.mxu0 %v229
  %408 = vmatpush1.msra.mxu0 %v228
  %409 = vmatprep.subr.mxu0 %v292
  %410 = vmatpush1.msra.mxu0 %v289
  %411 = vmatprep.subr.mxu0 0.0
  %412 = vmatpush1.msra.mxu0 0.0
  %413 = vmatprep.subr.mxu0 0.0
  %414 = vmatpush1.msra.mxu0 0.0
  %415 = vmatprep.subr.mxu0 0.0
  %416 = vmatpush1.msra.mxu0 0.0
  %417 = vmatprep.subr.mxu0 0.0
  %418 = vmatpush1.msra.mxu0 0.0
  %419 = vmatprep.subr.mxu0 0.0
  %420 = vmatpush1.msra.mxu0 0.0
  %421 = vmatprep.subr.mxu0 0.0
  %422 = vmatpush1.msra.mxu0 0.0
  %423 = vmatprep.subr.mxu0 0.0
  %424 = vmatpush1.msra.mxu0 0.0
  %425 = vmatprep.subr.mxu0 0.0
  %426 = vmatpush1.msra.mxu0 0.0
  %427 = vmatprep.subr.mxu0 0.0
  %428 = vmatpush1.msra.mxu0 0.0
  %429 = vmatprep.subr.mxu0 0.0
  %430 = vmatpush1.msra.mxu0 0.0
  %431 = vmatprep.subr.mxu0 0.0
  %432 = vmatpush1.msra.mxu0 0.0
  %433 = vmatprep.subr.mxu0 0.0
  %434 = vmatpush1.msra.mxu0 0.0
  %435 = vmatprep.subr.mxu0 0.0
  %436 = vmatpush1.msra.mxu0 0.0
  %437 = vmatprep.subr.mxu0 0.0
  %438 = vmatpush1.msra.mxu0 0.0
  %439 = vmatprep.subr.mxu0 0.0
  %440 = vmatpush1.msra.mxu0 0.0
  %441 = vmatprep.subr.mxu0 0.0
  %442 = vmatpush1.msra.mxu0 0.0
  %443 = vmatprep.subr.mxu0 0.0
  %444 = vmatpush1.msra.mxu0 0.0
  %445 = vmatprep.subr.mxu0 0.0
  %446 = vmatpush1.msra.mxu0 0.0
  %447 = vmatprep.subr.mxu0 0.0
  %448 = vmatpush1.msra.mxu0 0.0
  %449 = vmatprep.subr.mxu0 0.0
  %450 = vmatpush1.msra.mxu0 0.0
  %451 = vmatprep.subr.mxu0 0.0
  %452 = vmatpush1.msra.mxu0 0.0
  %453 = vmatprep.subr.mxu0 0.0
  %454 = vmatpush1.msra.mxu0 0.0
  %455 = vmatprep.subr.mxu0 0.0
  %456 = vmatpush1.msra.mxu0 0.0
  %457 = vmatprep.subr.mxu0 0.0
  %458 = vmatpush1.msra.mxu0 0.0
  %459 = vmatprep.subr.mxu0 0.0
  %460 = vmatpush1.msra.mxu0 0.0
  %461 = vmatprep.subr.mxu0 0.0
  %462 = vmatpush1.msra.mxu0 0.0
  %463 = vmatprep.subr.mxu0 0.0
  %464 = vmatpush1.msra.mxu0 0.0
  %465 = vmatprep.subr.mxu0 0.0
  %466 = vmatpush1.msra.mxu0 0.0
  %467 = vmatprep.subr.mxu0 0.0
  %468 = vmatpush1.msra.mxu0 0.0
  %469 = vmatprep.subr.mxu0 0.0
  %470 = vmatpush1.msra.mxu0 0.0
  %471 = vmatprep.mubr.f32.mxu0 0.0
  %472 = vmatmul.mubr.f32.gmra.mrb[0].mxu0 %v258
  %v473 = vpop.f32.mrb[0].mxu0
  %v474 = vadd.f32 %v247, %v473
  %v475 = vpop.f32.mrb[0].mxu0
  %v476 = vadd.f32 %v251, %v475
  %477 = vmatprep.mubr.f32.mxu0 0.0
  %478 = vmatmul.mubr.f32.gmra.mrb[0].mxu0 %v261
  %v479 = vpop.f32.mrb[0].mxu0
  %v480 = vadd.f32 %v247, %v479
  %v481 = vpop.f32.mrb[0].mxu0
  %v482 = vadd.f32 %v251, %v481
  %483 = vmatprep.mubr.f32.mxu0 0.0
  %484 = vmatmul.mubr.f32.gmra.mrb[0].mxu0 %v264
  %v485 = vpop.f32.mrb[0].mxu0
  %v486 = vadd.f32 %v247, %v485
  %v487 = vpop.f32.mrb[0].mxu0
  %v488 = vadd.f32 %v251, %v487
  %489 = vmatprep.mubr.f32.mxu0 0.0
  %490 = vmatmul.mubr.f32.gmra.mrb[0].mxu0 %v267
  %v491 = vpop.f32.mrb[0].mxu0
  %v492 = vadd.f32 %v247, %v491
  %v493 = vpop.f32.mrb[0].mxu0
  %v494 = vadd.f32 %v251, %v493
  %495 = vmatprep.mubr.f32.mxu0 0.0
  %496 = vmatmul.mubr.f32.gmra.mrb[0].mxu0 %v270
  %v497 = vpop.f32.mrb[0].mxu0
  %v498 = vadd.f32 %v247, %v497
  %v499 = vpop.f32.mrb[0].mxu0
  %v500 = vadd.f32 %v251, %v499
  %501 = vmatprep.mubr.f32.mxu0 0.0
  %502 = vmatmul.mubr.f32.gmra.mrb[0].mxu0 %v273
  %v503 = vpop.f32.mrb[0].mxu0
  %v504 = vadd.f32 %v247, %v503
  %v505 = vpop.f32.mrb[0].mxu0
  %v506 = vadd.f32 %v251, %v505
  %507 = vmatprep.mubr.f32.mxu0 0.0
  %508 = vmatmul.mubr.f32.gmra.mrb[0].mxu0 %v276
  %v509 = vpop.f32.mrb[0].mxu0
  %v510 = vadd.f32 %v247, %v509
  %v511 = vpop.f32.mrb[0].mxu0
  %v512 = vadd.f32 %v251, %v511
  %513 = vmatprep.mubr.f32.mxu0 0.0
  %514 = vmatmul.mubr.f32.gmra.mrb[0].mxu0 %v279
  %v515 = vpop.f32.mrb[0].mxu0
  %v516 = vadd.f32 %v247, %v515
  %v517 = vpop.f32.mrb[0].mxu0
  %v518 = vadd.f32 %v251, %v517
  %519 = vdwg.mxu0
  %v520 = vld [vmem:[%s5] sm:$0xff]
  %v521 = vld [vmem:[%s5 + $0x8] sm:$0xff]
  %v522 = vld [vmem:[%s5 + $0x10] sm:$0xff]
  %v523 = vld [vmem:[%s5 + $0x18] sm:$0xff]
  %v524 = vld [vmem:[%s5 + $0x20] sm:$0xff]
  %v525 = vld [vmem:[%s5 + $0x28] sm:$0xff]
  %v526 = vld [vmem:[%s5 + $0x30] sm:$0xff]
  %v527 = vld [vmem:[%s5 + $0x38] sm:$0xff]
  %v528 = vld [vmem:[%s5 + $0x40] sm:$0xff]
  %v529 = vld [vmem:[%s5 + $0x48] sm:$0xff]
  %v530 = vld [vmem:[%s5 + $0x50] sm:$0xff]
  %v531 = vld [vmem:[%s5 + $0x58] sm:$0xff]
  %v532 = vld [vmem:[%s5 + $0x60] sm:$0xff]
  %v533 = vld [vmem:[%s5 + $0x68] sm:$0xff]
  %v534 = vld [vmem:[%s5 + $0x70] sm:$0xff]
  %v535 = vld [vmem:[%s5 + $0x78] sm:$0xff]
  %v536 = vld [vmem:[%s7] sm:$0xff]
  %v537 = vld [vmem:[%s7 + $0x8] sm:$0xff]
  %v538 = vld [vmem:[%s7 + $0x10] sm:$0xff]
  %v539 = vld [vmem:[%s7 + $0x18] sm:$0xff]
  %v540 = vld [vmem:[%s7 + $0x20] sm:$0xff]
  %v541 = vld [vmem:[%s7 + $0x28] sm:$0xff]
  %v542 = vld [vmem:[%s7 + $0x30] sm:$0xff]
  %v543 = vld [vmem:[%s7 + $0x38] sm:$0xff]
  %v544 = vld [vmem:[%s7 + $0x40] sm:$0xff]
  %v545 = vld [vmem:[%s7 + $0x48] sm:$0xff]
  %v546 = vld [vmem:[%s7 + $0x50] sm:$0xff]
  %v547 = vld [vmem:[%s7 + $0x58] sm:$0xff]
  %v548 = vld [vmem:[%s7 + $0x60] sm:$0xff]
  %v549 = vld [vmem:[%s7 + $0x68] sm:$0xff]
  %v550 = vld [vmem:[%s7 + $0x70] sm:$0xff]
  %v551 = vld [vmem:[%s7 + $0x78] sm:$0xff]
  %v552 = vld [vmem:[%s7 + $0x80] sm:$0xff]
  %v553 = vld [vmem:[%s7 + $0x88] sm:$0xff]
  %v554 = vld [vmem:[%s7 + $0x90] sm:$0xff]
  %v555 = vld [vmem:[%s7 + $0x98] sm:$0xff]
  %v556 = vld [vmem:[%s7 + $0xa0] sm:$0xff]
  %v557 = vld [vmem:[%s7 + $0xa8] sm:$0xff]
  %v558 = vld [vmem:[%s7 + $0xb0] sm:$0xff]
  %v559 = vld [vmem:[%s7 + $0xb8] sm:$0xff]
  %v560 = vld [vmem:[%s7 + $0xc0] sm:$0xff]
  %v561 = vld [vmem:[%s7 + $0xc8] sm:$0xff]
  %v562 = vld [vmem:[%s7 + $0xd0] sm:$0xff]
  %v563 = vld [vmem:[%s7 + $0xd8] sm:$0xff]
  %v564 = vld [vmem:[%s7 + $0xe0] sm:$0xff]
  %v565 = vld [vmem:[%s7 + $0xe8] sm:$0xff]
  %v566 = vld [vmem:[%s7 + $0xf0] sm:$0xff]
  %v567 = vld [vmem:[%s7 + $0xf8] sm:$0xff]
  %v568 = vld [vmem:[%s8] sm:$0xf]
  %v570 = vlaneseq
  %v571 = vshrl.u32 %v570, 7
  %v572 = vsub.s32 0, %v571
  %v573 = vrot.slane %v568, %v572
  %v574 = vlaneseq
  %v575 = vshrl.u32 %v574, 7
  %v576 = vsub.s32 1, %v575
  %v577 = vrot.slane %v568, %v576
  %v578 = vlaneseq
  %v579 = vshrl.u32 %v578, 7
  %v580 = vsub.s32 2, %v579
  %v581 = vrot.slane %v568, %v580
  %v582 = vlaneseq
  %v583 = vshrl.u32 %v582, 7
  %v584 = vsub.s32 3, %v583
  %v585 = vrot.slane %v568, %v584
  %vm590 = vcmask 261120
  %v592 = vsel %vm590, %v214, 0
  %594 = vmatprep.subr.mxu0 %v521
  %595 = vmatpush1.msra.mxu0 %v520
  %596 = vmatprep.subr.mxu0 %v525
  %597 = vmatpush1.msra.mxu0 %v524
  %598 = vmatprep.subr.mxu0 %v529
  %599 = vmatpush1.msra.mxu0 %v528
  %600 = vmatprep.subr.mxu0 %v533
  %601 = vmatpush1.msra.mxu0 %v532
  %602 = vmatprep.subr.mxu0 0.0
  %603 = vmatpush1.msra.mxu0 0.0
  %604 = vmatprep.subr.mxu0 0.0
  %605 = vmatpush1.msra.mxu0 0.0
  %606 = vmatprep.subr.mxu0 0.0
  %607 = vmatpush1.msra.mxu0 0.0
  %608 = vmatprep.subr.mxu0 0.0
  %609 = vmatpush1.msra.mxu0 0.0
  %610 = vmatprep.subr.mxu0 0.0
  %611 = vmatpush1.msra.mxu0 0.0
  %612 = vmatprep.subr.mxu0 0.0
  %613 = vmatpush1.msra.mxu0 0.0
  %614 = vmatprep.subr.mxu0 0.0
  %615 = vmatpush1.msra.mxu0 0.0
  %616 = vmatprep.subr.mxu0 0.0
  %617 = vmatpush1.msra.mxu0 0.0
  %618 = vmatprep.subr.mxu0 0.0
  %619 = vmatpush1.msra.mxu0 0.0
  %620 = vmatprep.subr.mxu0 0.0
  %621 = vmatpush1.msra.mxu0 0.0
  %622 = vmatprep.subr.mxu0 0.0
  %623 = vmatpush1.msra.mxu0 0.0
  %624 = vmatprep.subr.mxu0 0.0
  %625 = vmatpush1.msra.mxu0 0.0
  %626 = vmatprep.subr.mxu0 0.0
  %627 = vmatpush1.msra.mxu0 0.0
  %628 = vmatprep.subr.mxu0 0.0
  %629 = vmatpush1.msra.mxu0 0.0
  %630 = vmatprep.subr.mxu0 0.0
  %631 = vmatpush1.msra.mxu0 0.0
  %632 = vmatprep.subr.mxu0 0.0
  %633 = vmatpush1.msra.mxu0 0.0
  %634 = vmatprep.subr.mxu0 0.0
  %635 = vmatpush1.msra.mxu0 0.0
  %636 = vmatprep.subr.mxu0 0.0
  %637 = vmatpush1.msra.mxu0 0.0
  %638 = vmatprep.subr.mxu0 0.0
  %639 = vmatpush1.msra.mxu0 0.0
  %640 = vmatprep.subr.mxu0 0.0
  %641 = vmatpush1.msra.mxu0 0.0
  %642 = vmatprep.subr.mxu0 0.0
  %643 = vmatpush1.msra.mxu0 0.0
  %644 = vmatprep.subr.mxu0 0.0
  %645 = vmatpush1.msra.mxu0 0.0
  %646 = vmatprep.subr.mxu0 0.0
  %647 = vmatpush1.msra.mxu0 0.0
  %648 = vmatprep.subr.mxu0 0.0
  %649 = vmatpush1.msra.mxu0 0.0
  %650 = vmatprep.subr.mxu0 0.0
  %651 = vmatpush1.msra.mxu0 0.0
  %652 = vmatprep.subr.mxu0 0.0
  %653 = vmatpush1.msra.mxu0 0.0
  %654 = vmatprep.subr.mxu0 0.0
  %655 = vmatpush1.msra.mxu0 0.0
  %656 = vmatprep.subr.mxu0 0.0
  %657 = vmatpush1.msra.mxu0 0.0
  %658 = vmatprep.mubr.f32.mxu0 0.0
  %659 = vmatmul.mubr.f32.gmra.mrb[0].mxu0 %v592
  %v660 = vpop.f32.mrb[0].mxu0
  %v661 = vadd.f32 0.0, %v660
  %v662 = vpop.f32.mrb[0].mxu0
  %v663 = vadd.f32 0.0, %v662
  %664 = vdwg.mxu0
  %665 = vmatprep.subr.mxu0 %v523
  %666 = vmatpush1.msra.mxu0 %v522
  %667 = vmatprep.subr.mxu0 %v527
  %668 = vmatpush1.msra.mxu0 %v526
  %669 = vmatprep.subr.mxu0 %v531
  %670 = vmatpush1.msra.mxu0 %v530
  %671 = vmatprep.subr.mxu0 %v535
  %672 = vmatpush1.msra.mxu0 %v534
  %673 = vmatprep.subr.mxu0 0.0
  %674 = vmatpush1.msra.mxu0 0.0
  %675 = vmatprep.subr.mxu0 0.0
  %676 = vmatpush1.msra.mxu0 0.0
  %677 = vmatprep.subr.mxu0 0.0
  %678 = vmatpush1.msra.mxu0 0.0
  %679 = vmatprep.subr.mxu0 0.0
  %680 = vmatpush1.msra.mxu0 0.0
  %681 = vmatprep.subr.mxu0 0.0
  %682 = vmatpush1.msra.mxu0 0.0
  %683 = vmatprep.subr.mxu0 0.0
  %684 = vmatpush1.msra.mxu0 0.0
  %685 = vmatprep.subr.mxu0 0.0
  %686 = vmatpush1.msra.mxu0 0.0
  %687 = vmatprep.subr.mxu0 0.0
  %688 = vmatpush1.msra.mxu0 0.0
  %689 = vmatprep.subr.mxu0 0.0
  %690 = vmatpush1.msra.mxu0 0.0
  %691 = vmatprep.subr.mxu0 0.0
  %692 = vmatpush1.msra.mxu0 0.0
  %693 = vmatprep.subr.mxu0 0.0
  %694 = vmatpush1.msra.mxu0 0.0
  %695 = vmatprep.subr.mxu0 0.0
  %696 = vmatpush1.msra.mxu0 0.0
  %697 = vmatprep.subr.mxu0 0.0
  %698 = vmatpush1.msra.mxu0 0.0
  %699 = vmatprep.subr.mxu0 0.0
  %700 = vmatpush1.msra.mxu0 0.0
  %701 = vmatprep.subr.mxu0 0.0
  %702 = vmatpush1.msra.mxu0 0.0
  %703 = vmatprep.subr.mxu0 0.0
  %704 = vmatpush1.msra.mxu0 0.0
  %705 = vmatprep.subr.mxu0 0.0
  %706 = vmatpush1.msra.mxu0 0.0
  %707 = vmatprep.subr.mxu0 0.0
  %708 = vmatpush1.msra.mxu0 0.0
  %709 = vmatprep.subr.mxu0 0.0
  %710 = vmatpush1.msra.mxu0 0.0
  %711 = vmatprep.subr.mxu0 0.0
  %712 = vmatpush1.msra.mxu0 0.0
  %713 = vmatprep.subr.mxu0 0.0
  %714 = vmatpush1.msra.mxu0 0.0
  %715 = vmatprep.subr.mxu0 0.0
  %716 = vmatpush1.msra.mxu0 0.0
  %717 = vmatprep.subr.mxu0 0.0
  %718 = vmatpush1.msra.mxu0 0.0
  %719 = vmatprep.subr.mxu0 0.0
  %720 = vmatpush1.msra.mxu0 0.0
  %721 = vmatprep.subr.mxu0 0.0
  %722 = vmatpush1.msra.mxu0 0.0
  %723 = vmatprep.subr.mxu0 0.0
  %724 = vmatpush1.msra.mxu0 0.0
  %725 = vmatprep.subr.mxu0 0.0
  %726 = vmatpush1.msra.mxu0 0.0
  %727 = vmatprep.subr.mxu0 0.0
  %728 = vmatpush1.msra.mxu0 0.0
  %729 = vmatprep.mubr.f32.mxu0 0.0
  %730 = vmatmul.mubr.f32.gmra.mrb[0].mxu0 %v592
  %v731 = vpop.f32.mrb[0].mxu0
  %v732 = vadd.f32 0.0, %v731
  %v733 = vpop.f32.mrb[0].mxu0
  %v734 = vadd.f32 0.0, %v733
  %735 = vdwg.mxu0
  %v736 = vadd.f32 %v361, %v661
  %v737 = vadd.f32 %v363, %v663
  %v738 = vadd.f32 %v474, %v732
  %v739 = vadd.f32 %v476, %v734
  %v740 = vxor.u32 %v736, 2147483648
  %v741 = vmul.f32 %v740, 1.442695
  %v742 = vpow.pop %v741
  %v743 = vadd.f32 %v742, 1.0
  %v744 = vrcp.pop %v743
  %v745 = vmul.f32 1.0, %v744
  %v746 = vxor.u32 %v737, 2147483648
  %v747 = vmul.f32 %v746, 1.442695
  %v748 = vpow.pop %v747
  %v749 = vadd.f32 %v748, 1.0
  %v750 = vrcp.pop %v749
  %v751 = vmul.f32 1.0, %v750
  %v752 = vtanh.pop %v738
  %v753 = vxor.u32 %v739, 2147483648
  %v754 = vmul.f32 %v753, 1.442695
  %v755 = vpow.pop %v754
  %v756 = vadd.f32 %v755, 1.0
  %v757 = vrcp.pop %v756
  %v758 = vmul.f32 1.0, %v757
  %v759 = vmul.f32 %v751, %v216
  %v760 = vmul.f32 %v745, %v752
  %v761 = vadd.f32 %v759, %v760
  %v762 = vtanh.pop %v761
  %v763 = vmul.f32 %v758, %v762
  %765 = vrot.lane.b32.xlu0 %v215, 32
  %v766 = vpop.permute.xlu0 %765
  %v768 = vsel %vm590, %v763, %v766
  %vm769 = vcmask 523264
  %v771 = vsel %vm769, %v768, 0
  %773 = vmatprep.subr.mxu0 %v537
  %774 = vmatpush1.msra.mxu0 %v536
  %775 = vmatprep.subr.mxu0 %v541
  %776 = vmatpush1.msra.mxu0 %v540
  %777 = vmatprep.subr.mxu0 %v545
  %778 = vmatpush1.msra.mxu0 %v544
  %779 = vmatprep.subr.mxu0 %v549
  %780 = vmatpush1.msra.mxu0 %v548
  %781 = vmatprep.subr.mxu0 %v553
  %782 = vmatpush1.msra.mxu0 %v552
  %783 = vmatprep.subr.mxu0 %v557
  %784 = vmatpush1.msra.mxu0 %v556
  %785 = vmatprep.subr.mxu0 %v561
  %786 = vmatpush1.msra.mxu0 %v560
  %787 = vmatprep.subr.mxu0 %v565
  %788 = vmatpush1.msra.mxu0 %v564
  %789 = vmatprep.subr.mxu0 0.0
  %790 = vmatpush1.msra.mxu0 0.0
  %791 = vmatprep.subr.mxu0 0.0
  %792 = vmatpush1.msra.mxu0 0.0
  %793 = vmatprep.subr.mxu0 0.0
  %794 = vmatpush1.msra.mxu0 0.0
  %795 = vmatprep.subr.mxu0 0.0
  %796 = vmatpush1.msra.mxu0 0.0
  %797 = vmatprep.subr.mxu0 0.0
  %798 = vmatpush1.msra.mxu0 0.0
  %799 = vmatprep.subr.mxu0 0.0
  %800 = vmatpush1.msra.mxu0 0.0
  %801 = vmatprep.subr.mxu0 0.0
  %802 = vmatpush1.msra.mxu0 0.0
  %803 = vmatprep.subr.mxu0 0.0
  %804 = vmatpush1.msra.mxu0 0.0
  %805 = vmatprep.subr.mxu0 0.0
  %806 = vmatpush1.msra.mxu0 0.0
  %807 = vmatprep.subr.mxu0 0.0
  %808 = vmatpush1.msra.mxu0 0.0
  %809 = vmatprep.subr.mxu0 0.0
  %810 = vmatpush1.msra.mxu0 0.0
  %811 = vmatprep.subr.mxu0 0.0
  %812 = vmatpush1.msra.mxu0 0.0
  %813 = vmatprep.subr.mxu0 0.0
  %814 = vmatpush1.msra.mxu0 0.0
  %815 = vmatprep.subr.mxu0 0.0
  %816 = vmatpush1.msra.mxu0 0.0
  %817 = vmatprep.subr.mxu0 0.0
  %818 = vmatpush1.msra.mxu0 0.0
  %819 = vmatprep.subr.mxu0 0.0
  %820 = vmatpush1.msra.mxu0 0.0
  %821 = vmatprep.subr.mxu0 0.0
  %822 = vmatpush1.msra.mxu0 0.0
  %823 = vmatprep.subr.mxu0 0.0
  %824 = vmatpush1.msra.mxu0 0.0
  %825 = vmatprep.subr.mxu0 0.0
  %826 = vmatpush1.msra.mxu0 0.0
  %827 = vmatprep.subr.mxu0 0.0
  %828 = vmatpush1.msra.mxu0 0.0
  %829 = vmatprep.subr.mxu0 0.0
  %830 = vmatpush1.msra.mxu0 0.0
  %831 = vmatprep.subr.mxu0 0.0
  %832 = vmatpush1.msra.mxu0 0.0
  %833 = vmatprep.subr.mxu0 0.0
  %834 = vmatpush1.msra.mxu0 0.0
  %835 = vmatprep.subr.mxu0 0.0
  %836 = vmatpush1.msra.mxu0 0.0
  %837 = vmatprep.mubr.f32.mxu0 0.0
  %838 = vmatmul.mubr.f32.gmra.mrb[0].mxu0 %v771
  %v839 = vpop.f32.mrb[0].mxu0
  %v840 = vadd.f32 %v573, %v839
  %v841 = vpop.f32.mrb[0].mxu0
  %v842 = vadd.f32 %v577, %v841
  %843 = vdwg.mxu0
  %844 = vmatprep.subr.mxu0 %v539
  %845 = vmatpush1.msra.mxu0 %v538
  %846 = vmatprep.subr.mxu0 %v543
  %847 = vmatpush1.msra.mxu0 %v542
  %848 = vmatprep.subr.mxu0 %v547
  %849 = vmatpush1.msra.mxu0 %v546
  %850 = vmatprep.subr.mxu0 %v551
  %851 = vmatpush1.msra.mxu0 %v550
  %852 = vmatprep.subr.mxu0 %v555
  %853 = vmatpush1.msra.mxu0 %v554
  %854 = vmatprep.subr.mxu0 %v559
  %855 = vmatpush1.msra.mxu0 %v558
  %856 = vmatprep.subr.mxu0 %v563
  %857 = vmatpush1.msra.mxu0 %v562
  %858 = vmatprep.subr.mxu0 %v567
  %859 = vmatpush1.msra.mxu0 %v566
  %860 = vmatprep.subr.mxu0 0.0
  %861 = vmatpush1.msra.mxu0 0.0
  %862 = vmatprep.subr.mxu0 0.0
  %863 = vmatpush1.msra.mxu0 0.0
  %864 = vmatprep.subr.mxu0 0.0
  %865 = vmatpush1.msra.mxu0 0.0
  %866 = vmatprep.subr.mxu0 0.0
  %867 = vmatpush1.msra.mxu0 0.0
  %868 = vmatprep.subr.mxu0 0.0
  %869 = vmatpush1.msra.mxu0 0.0
  %870 = vmatprep.subr.mxu0 0.0
  %871 = vmatpush1.msra.mxu0 0.0
  %872 = vmatprep.subr.mxu0 0.0
  %873 = vmatpush1.msra.mxu0 0.0
  %874 = vmatprep.subr.mxu0 0.0
  %875 = vmatpush1.msra.mxu0 0.0
  %876 = vmatprep.subr.mxu0 0.0
  %877 = vmatpush1.msra.mxu0 0.0
  %878 = vmatprep.subr.mxu0 0.0
  %879 = vmatpush1.msra.mxu0 0.0
  %880 = vmatprep.subr.mxu0 0.0
  %881 = vmatpush1.msra.mxu0 0.0
  %882 = vmatprep.subr.mxu0 0.0
  %883 = vmatpush1.msra.mxu0 0.0
  %884 = vmatprep.subr.mxu0 0.0
  %885 = vmatpush1.msra.mxu0 0.0
  %886 = vmatprep.subr.mxu0 0.0
  %887 = vmatpush1.msra.mxu0 0.0
  %888 = vmatprep.subr.mxu0 0.0
  %889 = vmatpush1.msra.mxu0 0.0
  %890 = vmatprep.subr.mxu0 0.0
  %891 = vmatpush1.msra.mxu0 0.0
  %892 = vmatprep.subr.mxu0 0.0
  %893 = vmatpush1.msra.mxu0 0.0
  %894 = vmatprep.subr.mxu0 0.0
  %895 = vmatpush1.msra.mxu0 0.0
  %896 = vmatprep.subr.mxu0 0.0
  %897 = vmatpush1.msra.mxu0 0.0
  %898 = vmatprep.subr.mxu0 0.0
  %899 = vmatpush1.msra.mxu0 0.0
  %900 = vmatprep.subr.mxu0 0.0
  %901 = vmatpush1.msra.mxu0 0.0
  %902 = vmatprep.subr.mxu0 0.0
  %903 = vmatpush1.msra.mxu0 0.0
  %904 = vmatprep.subr.mxu0 0.0
  %905 = vmatpush1.msra.mxu0 0.0
  %906 = vmatprep.subr.mxu0 0.0
  %907 = vmatpush1.msra.mxu0 0.0
  %908 = vmatprep.mubr.f32.mxu0 0.0
  %909 = vmatmul.mubr.f32.gmra.mrb[0].mxu0 %v771
  %v910 = vpop.f32.mrb[0].mxu0
  %v911 = vadd.f32 %v581, %v910
  %v912 = vpop.f32.mrb[0].mxu0
  %v913 = vadd.f32 %v585, %v912
  %914 = vdwg.mxu0
  %v915 = vxor.u32 %v840, 2147483648
  %v916 = vmul.f32 %v915, 1.442695
  %v917 = vpow.pop %v916
  %v918 = vadd.f32 %v917, 1.0
  %v919 = vrcp.pop %v918
  %v920 = vmul.f32 1.0, %v919
  %v921 = vxor.u32 %v842, 2147483648
  %v922 = vmul.f32 %v921, 1.442695
  %v923 = vpow.pop %v922
  %v924 = vadd.f32 %v923, 1.0
  %v925 = vrcp.pop %v924
  %v926 = vmul.f32 1.0, %v925
  %v927 = vtanh.pop %v911
  %v928 = vxor.u32 %v913, 2147483648
  %v929 = vmul.f32 %v928, 1.442695
  %v930 = vpow.pop %v929
  %v931 = vadd.f32 %v930, 1.0
  %v932 = vrcp.pop %v931
  %v933 = vmul.f32 1.0, %v932
  %v934 = vmul.f32 %v926, %v217
  %v935 = vmul.f32 %v920, %v927
  %v936 = vadd.f32 %v934, %v935
  %v937 = vtanh.pop %v936
  %v938 = vmul.f32 %v933, %v937
  %v940 = vsel %vm590, %v763, 0
  %942 = vmatprep.subr.mxu0 %v521
  %943 = vmatpush1.msra.mxu0 %v520
  %944 = vmatprep.subr.mxu0 %v525
  %945 = vmatpush1.msra.mxu0 %v524
  %946 = vmatprep.subr.mxu0 %v529
  %947 = vmatpush1.msra.mxu0 %v528
  %948 = vmatprep.subr.mxu0 %v533
  %949 = vmatpush1.msra.mxu0 %v532
  %950 = vmatprep.subr.mxu0 0.0
  %951 = vmatpush1.msra.mxu0 0.0
  %952 = vmatprep.subr.mxu0 0.0
  %953 = vmatpush1.msra.mxu0 0.0
  %954 = vmatprep.subr.mxu0 0.0
  %955 = vmatpush1.msra.mxu0 0.0
  %956 = vmatprep.subr.mxu0 0.0
  %957 = vmatpush1.msra.mxu0 0.0
  %958 = vmatprep.subr.mxu0 0.0
  %959 = vmatpush1.msra.mxu0 0.0
  %960 = vmatprep.subr.mxu0 0.0
  %961 = vmatpush1.msra.mxu0 0.0
  %962 = vmatprep.subr.mxu0 0.0
  %963 = vmatpush1.msra.mxu0 0.0
  %964 = vmatprep.subr.mxu0 0.0
  %965 = vmatpush1.msra.mxu0 0.0
  %966 = vmatprep.subr.mxu0 0.0
  %967 = vmatpush1.msra.mxu0 0.0
  %968 = vmatprep.subr.mxu0 0.0
  %969 = vmatpush1.msra.mxu0 0.0
  %970 = vmatprep.subr.mxu0 0.0
  %971 = vmatpush1.msra.mxu0 0.0
  %972 = vmatprep.subr.mxu0 0.0
  %973 = vmatpush1.msra.mxu0 0.0
  %974 = vmatprep.subr.mxu0 0.0
  %975 = vmatpush1.msra.mxu0 0.0
  %976 = vmatprep.subr.mxu0 0.0
  %977 = vmatpush1.msra.mxu0 0.0
  %978 = vmatprep.subr.mxu0 0.0
  %979 = vmatpush1.msra.mxu0 0.0
  %980 = vmatprep.subr.mxu0 0.0
  %981 = vmatpush1.msra.mxu0 0.0
  %982 = vmatprep.subr.mxu0 0.0
  %983 = vmatpush1.msra.mxu0 0.0
  %984 = vmatprep.subr.mxu0 0.0
  %985 = vmatpush1.msra.mxu0 0.0
  %986 = vmatprep.subr.mxu0 0.0
  %987 = vmatpush1.msra.mxu0 0.0
  %988 = vmatprep.subr.mxu0 0.0
  %989 = vmatpush1.msra.mxu0 0.0
  %990 = vmatprep.subr.mxu0 0.0
  %991 = vmatpush1.msra.mxu0 0.0
  %992 = vmatprep.subr.mxu0 0.0
  %993 = vmatpush1.msra.mxu0 0.0
  %994 = vmatprep.subr.mxu0 0.0
  %995 = vmatpush1.msra.mxu0 0.0
  %996 = vmatprep.subr.mxu0 0.0
  %997 = vmatpush1.msra.mxu0 0.0
  %998 = vmatprep.subr.mxu0 0.0
  %999 = vmatpush1.msra.mxu0 0.0
  %1000 = vmatprep.subr.mxu0 0.0
  %1001 = vmatpush1.msra.mxu0 0.0
  %1002 = vmatprep.subr.mxu0 0.0
  %1003 = vmatpush1.msra.mxu0 0.0
  %1004 = vmatprep.subr.mxu0 0.0
  %1005 = vmatpush1.msra.mxu0 0.0
  %1006 = vmatprep.mubr.f32.mxu0 0.0
  %1007 = vmatmul.mubr.f32.gmra.mrb[0].mxu0 %v940
  %v1008 = vpop.f32.mrb[0].mxu0
  %v1009 = vadd.f32 0.0, %v1008
  %v1010 = vpop.f32.mrb[0].mxu0
  %v1011 = vadd.f32 0.0, %v1010
  %1012 = vdwg.mxu0
  %1013 = vmatprep.subr.mxu0 %v523
  %1014 = vmatpush1.msra.mxu0 %v522
  %1015 = vmatprep.subr.mxu0 %v527
  %1016 = vmatpush1.msra.mxu0 %v526
  %1017 = vmatprep.subr.mxu0 %v531
  %1018 = vmatpush1.msra.mxu0 %v530
  %1019 = vmatprep.subr.mxu0 %v535
  %1020 = vmatpush1.msra.mxu0 %v534
  %1021 = vmatprep.subr.mxu0 0.0
  %1022 = vmatpush1.msra.mxu0 0.0
  %1023 = vmatprep.subr.mxu0 0.0
  %1024 = vmatpush1.msra.mxu0 0.0
  %1025 = vmatprep.subr.mxu0 0.0
  %1026 = vmatpush1.msra.mxu0 0.0
  %1027 = vmatprep.subr.mxu0 0.0
  %1028 = vmatpush1.msra.mxu0 0.0
  %1029 = vmatprep.subr.mxu0 0.0
  %1030 = vmatpush1.msra.mxu0 0.0
  %1031 = vmatprep.subr.mxu0 0.0
  %1032 = vmatpush1.msra.mxu0 0.0
  %1033 = vmatprep.subr.mxu0 0.0
  %1034 = vmatpush1.msra.mxu0 0.0
  %1035 = vmatprep.subr.mxu0 0.0
  %1036 = vmatpush1.msra.mxu0 0.0
  %1037 = vmatprep.subr.mxu0 0.0
  %1038 = vmatpush1.msra.mxu0 0.0
  %1039 = vmatprep.subr.mxu0 0.0
  %1040 = vmatpush1.msra.mxu0 0.0
  %1041 = vmatprep.subr.mxu0 0.0
  %1042 = vmatpush1.msra.mxu0 0.0
  %1043 = vmatprep.subr.mxu0 0.0
  %1044 = vmatpush1.msra.mxu0 0.0
  %1045 = vmatprep.subr.mxu0 0.0
  %1046 = vmatpush1.msra.mxu0 0.0
  %1047 = vmatprep.subr.mxu0 0.0
  %1048 = vmatpush1.msra.mxu0 0.0
  %1049 = vmatprep.subr.mxu0 0.0
  %1050 = vmatpush1.msra.mxu0 0.0
  %1051 = vmatprep.subr.mxu0 0.0
  %1052 = vmatpush1.msra.mxu0 0.0
  %1053 = vmatprep.subr.mxu0 0.0
  %1054 = vmatpush1.msra.mxu0 0.0
  %1055 = vmatprep.subr.mxu0 0.0
  %1056 = vmatpush1.msra.mxu0 0.0
  %1057 = vmatprep.subr.mxu0 0.0
  %1058 = vmatpush1.msra.mxu0 0.0
  %1059 = vmatprep.subr.mxu0 0.0
  %1060 = vmatpush1.msra.mxu0 0.0
  %1061 = vmatprep.subr.mxu0 0.0
  %1062 = vmatpush1.msra.mxu0 0.0
  %1063 = vmatprep.subr.mxu0 0.0
  %1064 = vmatpush1.msra.mxu0 0.0
  %1065 = vmatprep.subr.mxu0 0.0
  %1066 = vmatpush1.msra.mxu0 0.0
  %1067 = vmatprep.subr.mxu0 0.0
  %1068 = vmatpush1.msra.mxu0 0.0
  %1069 = vmatprep.subr.mxu0 0.0
  %1070 = vmatpush1.msra.mxu0 0.0
  %1071 = vmatprep.subr.mxu0 0.0
  %1072 = vmatpush1.msra.mxu0 0.0
  %1073 = vmatprep.subr.mxu0 0.0
  %1074 = vmatpush1.msra.mxu0 0.0
  %1075 = vmatprep.subr.mxu0 0.0
  %1076 = vmatpush1.msra.mxu0 0.0
  %1077 = vmatprep.mubr.f32.mxu0 0.0
  %1078 = vmatmul.mubr.f32.gmra.mrb[0].mxu0 %v940
  %v1079 = vpop.f32.mrb[0].mxu0
  %v1080 = vadd.f32 0.0, %v1079
  %v1081 = vpop.f32.mrb[0].mxu0
  %v1082 = vadd.f32 0.0, %v1081
  %1083 = vdwg.mxu0
  %v1084 = vadd.f32 %v367, %v1009
  %v1085 = vadd.f32 %v369, %v1011
  %v1086 = vadd.f32 %v480, %v1080
  %v1087 = vadd.f32 %v482, %v1082
  %v1088 = vxor.u32 %v1084, 2147483648
  %v1089 = vmul.f32 %v1088, 1.442695
  %v1090 = vpow.pop %v1089
  %v1091 = vadd.f32 %v1090, 1.0
  %v1092 = vrcp.pop %v1091
  %v1093 = vmul.f32 1.0, %v1092
  %v1094 = vxor.u32 %v1085, 2147483648
  %v1095 = vmul.f32 %v1094, 1.442695
  %v1096 = vpow.pop %v1095
  %v1097 = vadd.f32 %v1096, 1.0
  %v1098 = vrcp.pop %v1097
  %v1099 = vmul.f32 1.0, %v1098
  %v1100 = vtanh.pop %v1086
  %v1101 = vxor.u32 %v1087, 2147483648
  %v1102 = vmul.f32 %v1101, 1.442695
  %v1103 = vpow.pop %v1102
  %v1104 = vadd.f32 %v1103, 1.0
  %v1105 = vrcp.pop %v1104
  %v1106 = vmul.f32 1.0, %v1105
  %v1107 = vmul.f32 %v1099, %v761
  %v1108 = vmul.f32 %v1093, %v1100
  %v1109 = vadd.f32 %v1107, %v1108
  %v1110 = vtanh.pop %v1109
  %v1111 = vmul.f32 %v1106, %v1110
  %1113 = vrot.lane.b32.xlu0 %v938, 32
  %v1114 = vpop.permute.xlu0 %1113
  %v1116 = vsel %vm590, %v1111, %v1114
  %v1118 = vsel %vm769, %v1116, 0
  %1120 = vmatprep.subr.mxu0 %v537
  %1121 = vmatpush1.msra.mxu0 %v536
  %1122 = vmatprep.subr.mxu0 %v541
  %1123 = vmatpush1.msra.mxu0 %v540
  %1124 = vmatprep.subr.mxu0 %v545
  %1125 = vmatpush1.msra.mxu0 %v544
  %1126 = vmatprep.subr.mxu0 %v549
  %1127 = vmatpush1.msra.mxu0 %v548
  %1128 = vmatprep.subr.mxu0 %v553
  %1129 = vmatpush1.msra.mxu0 %v552
  %1130 = vmatprep.subr.mxu0 %v557
  %1131 = vmatpush1.msra.mxu0 %v556
  %1132 = vmatprep.subr.mxu0 %v561
  %1133 = vmatpush1.msra.mxu0 %v560
  %1134 = vmatprep.subr.mxu0 %v565
  %1135 = vmatpush1.msra.mxu0 %v564
  %1136 = vmatprep.subr.mxu0 0.0
  %1137 = vmatpush1.msra.mxu0 0.0
  %1138 = vmatprep.subr.mxu0 0.0
  %1139 = vmatpush1.msra.mxu0 0.0
  %1140 = vmatprep.subr.mxu0 0.0
  %1141 = vmatpush1.msra.mxu0 0.0
  %1142 = vmatprep.subr.mxu0 0.0
  %1143 = vmatpush1.msra.mxu0 0.0
  %1144 = vmatprep.subr.mxu0 0.0
  %1145 = vmatpush1.msra.mxu0 0.0
  %1146 = vmatprep.subr.mxu0 0.0
  %1147 = vmatpush1.msra.mxu0 0.0
  %1148 = vmatprep.subr.mxu0 0.0
  %1149 = vmatpush1.msra.mxu0 0.0
  %1150 = vmatprep.subr.mxu0 0.0
  %1151 = vmatpush1.msra.mxu0 0.0
  %1152 = vmatprep.subr.mxu0 0.0
  %1153 = vmatpush1.msra.mxu0 0.0
  %1154 = vmatprep.subr.mxu0 0.0
  %1155 = vmatpush1.msra.mxu0 0.0
  %1156 = vmatprep.subr.mxu0 0.0
  %1157 = vmatpush1.msra.mxu0 0.0
  %1158 = vmatprep.subr.mxu0 0.0
  %1159 = vmatpush1.msra.mxu0 0.0
  %1160 = vmatprep.subr.mxu0 0.0
  %1161 = vmatpush1.msra.mxu0 0.0
  %1162 = vmatprep.subr.mxu0 0.0
  %1163 = vmatpush1.msra.mxu0 0.0
  %1164 = vmatprep.subr.mxu0 0.0
  %1165 = vmatpush1.msra.mxu0 0.0
  %1166 = vmatprep.subr.mxu0 0.0
  %1167 = vmatpush1.msra.mxu0 0.0
  %1168 = vmatprep.subr.mxu0 0.0
  %1169 = vmatpush1.msra.mxu0 0.0
  %1170 = vmatprep.subr.mxu0 0.0
  %1171 = vmatpush1.msra.mxu0 0.0
  %1172 = vmatprep.subr.mxu0 0.0
  %1173 = vmatpush1.msra.mxu0 0.0
  %1174 = vmatprep.subr.mxu0 0.0
  %1175 = vmatpush1.msra.mxu0 0.0
  %1176 = vmatprep.subr.mxu0 0.0
  %1177 = vmatpush1.msra.mxu0 0.0
  %1178 = vmatprep.subr.mxu0 0.0
  %1179 = vmatpush1.msra.mxu0 0.0
  %1180 = vmatprep.subr.mxu0 0.0
  %1181 = vmatpush1.msra.mxu0 0.0
  %1182 = vmatprep.subr.mxu0 0.0
  %1183 = vmatpush1.msra.mxu0 0.0
  %1184 = vmatprep.mubr.f32.mxu0 0.0
  %1185 = vmatmul.mubr.f32.gmra.mrb[0].mxu0 %v1118
  %v1186 = vpop.f32.mrb[0].mxu0
  %v1187 = vadd.f32 %v573, %v1186
  %v1188 = vpop.f32.mrb[0].mxu0
  %v1189 = vadd.f32 %v577, %v1188
  %1190 = vdwg.mxu0
  %1191 = vmatprep.subr.mxu0 %v539
  %1192 = vmatpush1.msra.mxu0 %v538
  %1193 = vmatprep.subr.mxu0 %v543
  %1194 = vmatpush1.msra.mxu0 %v542
  %1195 = vmatprep.subr.mxu0 %v547
  %1196 = vmatpush1.msra.mxu0 %v546
  %1197 = vmatprep.subr.mxu0 %v551
  %1198 = vmatpush1.msra.mxu0 %v550
  %1199 = vmatprep.subr.mxu0 %v555
  %1200 = vmatpush1.msra.mxu0 %v554
  %1201 = vmatprep.subr.mxu0 %v559
  %1202 = vmatpush1.msra.mxu0 %v558
  %1203 = vmatprep.subr.mxu0 %v563
  %1204 = vmatpush1.msra.mxu0 %v562
  %1205 = vmatprep.subr.mxu0 %v567
  %1206 = vmatpush1.msra.mxu0 %v566
  %1207 = vmatprep.subr.mxu0 0.0
  %1208 = vmatpush1.msra.mxu0 0.0
  %1209 = vmatprep.subr.mxu0 0.0
  %1210 = vmatpush1.msra.mxu0 0.0
  %1211 = vmatprep.subr.mxu0 0.0
  %1212 = vmatpush1.msra.mxu0 0.0
  %1213 = vmatprep.subr.mxu0 0.0
  %1214 = vmatpush1.msra.mxu0 0.0
  %1215 = vmatprep.subr.mxu0 0.0
  %1216 = vmatpush1.msra.mxu0 0.0
  %1217 = vmatprep.subr.mxu0 0.0
  %1218 = vmatpush1.msra.mxu0 0.0
  %1219 = vmatprep.subr.mxu0 0.0
  %1220 = vmatpush1.msra.mxu0 0.0
  %1221 = vmatprep.subr.mxu0 0.0
  %1222 = vmatpush1.msra.mxu0 0.0
  %1223 = vmatprep.subr.mxu0 0.0
  %1224 = vmatpush1.msra.mxu0 0.0
  %1225 = vmatprep.subr.mxu0 0.0
  %1226 = vmatpush1.msra.mxu0 0.0
  %1227 = vmatprep.subr.mxu0 0.0
  %1228 = vmatpush1.msra.mxu0 0.0
  %1229 = vmatprep.subr.mxu0 0.0
  %1230 = vmatpush1.msra.mxu0 0.0
  %1231 = vmatprep.subr.mxu0 0.0
  %1232 = vmatpush1.msra.mxu0 0.0
  %1233 = vmatprep.subr.mxu0 0.0
  %1234 = vmatpush1.msra.mxu0 0.0
  %1235 = vmatprep.subr.mxu0 0.0
  %1236 = vmatpush1.msra.mxu0 0.0
  %1237 = vmatprep.subr.mxu0 0.0
  %1238 = vmatpush1.msra.mxu0 0.0
  %1239 = vmatprep.subr.mxu0 0.0
  %1240 = vmatpush1.msra.mxu0 0.0
  %1241 = vmatprep.subr.mxu0 0.0
  %1242 = vmatpush1.msra.mxu0 0.0
  %1243 = vmatprep.subr.mxu0 0.0
  %1244 = vmatpush1.msra.mxu0 0.0
  %1245 = vmatprep.subr.mxu0 0.0
  %1246 = vmatpush1.msra.mxu0 0.0
  %1247 = vmatprep.subr.mxu0 0.0
  %1248 = vmatpush1.msra.mxu0 0.0
  %1249 = vmatprep.subr.mxu0 0.0
  %1250 = vmatpush1.msra.mxu0 0.0
  %1251 = vmatprep.subr.mxu0 0.0
  %1252 = vmatpush1.msra.mxu0 0.0
  %1253 = vmatprep.subr.mxu0 0.0
  %1254 = vmatpush1.msra.mxu0 0.0
  %1255 = vmatprep.mubr.f32.mxu0 0.0
  %1256 = vmatmul.mubr.f32.gmra.mrb[0].mxu0 %v1118
  %v1257 = vpop.f32.mrb[0].mxu0
  %v1258 = vadd.f32 %v581, %v1257
  %v1259 = vpop.f32.mrb[0].mxu0
  %v1260 = vadd.f32 %v585, %v1259
  %1261 = vdwg.mxu0
  %v1262 = vxor.u32 %v1187, 2147483648
  %v1263 = vmul.f32 %v1262, 1.442695
  %v1264 = vpow.pop %v1263
  %v1265 = vadd.f32 %v1264, 1.0
  %v1266 = vrcp.pop %v1265
  %v1267 = vmul.f32 1.0, %v1266
  %v1268 = vxor.u32 %v1189, 2147483648
  %v1269 = vmul.f32 %v1268, 1.442695
  %v1270 = vpow.pop %v1269
  %v1271 = vadd.f32 %v1270, 1.0
  %v1272 = vrcp.pop %v1271
  %v1273 = vmul.f32 1.0, %v1272
  %v1274 = vtanh.pop %v1258
  %v1275 = vxor.u32 %v1260, 2147483648
  %v1276 = vmul.f32 %v1275, 1.442695
  %v1277 = vpow.pop %v1276
  %v1278 = vadd.f32 %v1277, 1.0
  %v1279 = vrcp.pop %v1278
  %v1280 = vmul.f32 1.0, %v1279
  %v1281 = vmul.f32 %v1273, %v936
  %v1282 = vmul.f32 %v1267, %v1274
  %v1283 = vadd.f32 %v1281, %v1282
  %v1284 = vtanh.pop %v1283
  %v1285 = vmul.f32 %v1280, %v1284
  %v1287 = vsel %vm590, %v1111, 0
  %1289 = vmatprep.subr.mxu0 %v521
  %1290 = vmatpush1.msra.mxu0 %v520
  %1291 = vmatprep.subr.mxu0 %v525
  %1292 = vmatpush1.msra.mxu0 %v524
  %1293 = vmatprep.subr.mxu0 %v529
  %1294 = vmatpush1.msra.mxu0 %v528
  %1295 = vmatprep.subr.mxu0 %v533
  %1296 = vmatpush1.msra.mxu0 %v532
  %1297 = vmatprep.subr.mxu0 0.0
  %1298 = vmatpush1.msra.mxu0 0.0
  %1299 = vmatprep.subr.mxu0 0.0
  %1300 = vmatpush1.msra.mxu0 0.0
  %1301 = vmatprep.subr.mxu0 0.0
  %1302 = vmatpush1.msra.mxu0 0.0
  %1303 = vmatprep.subr.mxu0 0.0
  %1304 = vmatpush1.msra.mxu0 0.0
  %1305 = vmatprep.subr.mxu0 0.0
  %1306 = vmatpush1.msra.mxu0 0.0
  %1307 = vmatprep.subr.mxu0 0.0
  %1308 = vmatpush1.msra.mxu0 0.0
  %1309 = vmatprep.subr.mxu0 0.0
  %1310 = vmatpush1.msra.mxu0 0.0
  %1311 = vmatprep.subr.mxu0 0.0
  %1312 = vmatpush1.msra.mxu0 0.0
  %1313 = vmatprep.subr.mxu0 0.0
  %1314 = vmatpush1.msra.mxu0 0.0
  %1315 = vmatprep.subr.mxu0 0.0
  %1316 = vmatpush1.msra.mxu0 0.0
  %1317 = vmatprep.subr.mxu0 0.0
  %1318 = vmatpush1.msra.mxu0 0.0
  %1319 = vmatprep.subr.mxu0 0.0
  %1320 = vmatpush1.msra.mxu0 0.0
  %1321 = vmatprep.subr.mxu0 0.0
  %1322 = vmatpush1.msra.mxu0 0.0
  %1323 = vmatprep.subr.mxu0 0.0
  %1324 = vmatpush1.msra.mxu0 0.0
  %1325 = vmatprep.subr.mxu0 0.0
  %1326 = vmatpush1.msra.mxu0 0.0
  %1327 = vmatprep.subr.mxu0 0.0
  %1328 = vmatpush1.msra.mxu0 0.0
  %1329 = vmatprep.subr.mxu0 0.0
  %1330 = vmatpush1.msra.mxu0 0.0
  %1331 = vmatprep.subr.mxu0 0.0
  %1332 = vmatpush1.msra.mxu0 0.0
  %1333 = vmatprep.subr.mxu0 0.0
  %1334 = vmatpush1.msra.mxu0 0.0
  %1335 = vmatprep.subr.mxu0 0.0
  %1336 = vmatpush1.msra.mxu0 0.0
  %1337 = vmatprep.subr.mxu0 0.0
  %1338 = vmatpush1.msra.mxu0 0.0
  %1339 = vmatprep.subr.mxu0 0.0
  %1340 = vmatpush1.msra.mxu0 0.0
  %1341 = vmatprep.subr.mxu0 0.0
  %1342 = vmatpush1.msra.mxu0 0.0
  %1343 = vmatprep.subr.mxu0 0.0
  %1344 = vmatpush1.msra.mxu0 0.0
  %1345 = vmatprep.subr.mxu0 0.0
  %1346 = vmatpush1.msra.mxu0 0.0
  %1347 = vmatprep.subr.mxu0 0.0
  %1348 = vmatpush1.msra.mxu0 0.0
  %1349 = vmatprep.subr.mxu0 0.0
  %1350 = vmatpush1.msra.mxu0 0.0
  %1351 = vmatprep.subr.mxu0 0.0
  %1352 = vmatpush1.msra.mxu0 0.0
  %1353 = vmatprep.mubr.f32.mxu0 0.0
  %1354 = vmatmul.mubr.f32.gmra.mrb[0].mxu0 %v1287
  %v1355 = vpop.f32.mrb[0].mxu0
  %v1356 = vadd.f32 0.0, %v1355
  %v1357 = vpop.f32.mrb[0].mxu0
  %v1358 = vadd.f32 0.0, %v1357
  %1359 = vdwg.mxu0
  %1360 = vmatprep.subr.mxu0 %v523
  %1361 = vmatpush1.msra.mxu0 %v522
  %1362 = vmatprep.subr.mxu0 %v527
  %1363 = vmatpush1.msra.mxu0 %v526
  %1364 = vmatprep.subr.mxu0 %v531
  %1365 = vmatpush1.msra.mxu0 %v530
  %1366 = vmatprep.subr.mxu0 %v535
  %1367 = vmatpush1.msra.mxu0 %v534
  %1368 = vmatprep.subr.mxu0 0.0
  %1369 = vmatpush1.msra.mxu0 0.0
  %1370 = vmatprep.subr.mxu0 0.0
  %1371 = vmatpush1.msra.mxu0 0.0
  %1372 = vmatprep.subr.mxu0 0.0
  %1373 = vmatpush1.msra.mxu0 0.0
  %1374 = vmatprep.subr.mxu0 0.0
  %1375 = vmatpush1.msra.mxu0 0.0
  %1376 = vmatprep.subr.mxu0 0.0
  %1377 = vmatpush1.msra.mxu0 0.0
  %1378 = vmatprep.subr.mxu0 0.0
  %1379 = vmatpush1.msra.mxu0 0.0
  %1380 = vmatprep.subr.mxu0 0.0
  %1381 = vmatpush1.msra.mxu0 0.0
  %1382 = vmatprep.subr.mxu0 0.0
  %1383 = vmatpush1.msra.mxu0 0.0
  %1384 = vmatprep.subr.mxu0 0.0
  %1385 = vmatpush1.msra.mxu0 0.0
  %1386 = vmatprep.subr.mxu0 0.0
  %1387 = vmatpush1.msra.mxu0 0.0
  %1388 = vmatprep.subr.mxu0 0.0
  %1389 = vmatpush1.msra.mxu0 0.0
  %1390 = vmatprep.subr.mxu0 0.0
  %1391 = vmatpush1.msra.mxu0 0.0
  %1392 = vmatprep.subr.mxu0 0.0
  %1393 = vmatpush1.msra.mxu0 0.0
  %1394 = vmatprep.subr.mxu0 0.0
  %1395 = vmatpush1.msra.mxu0 0.0
  %1396 = vmatprep.subr.mxu0 0.0
  %1397 = vmatpush1.msra.mxu0 0.0
  %1398 = vmatprep.subr.mxu0 0.0
  %1399 = vmatpush1.msra.mxu0 0.0
  %1400 = vmatprep.subr.mxu0 0.0
  %1401 = vmatpush1.msra.mxu0 0.0
  %1402 = vmatprep.subr.mxu0 0.0
  %1403 = vmatpush1.msra.mxu0 0.0
  %1404 = vmatprep.subr.mxu0 0.0
  %1405 = vmatpush1.msra.mxu0 0.0
  %1406 = vmatprep.subr.mxu0 0.0
  %1407 = vmatpush1.msra.mxu0 0.0
  %1408 = vmatprep.subr.mxu0 0.0
  %1409 = vmatpush1.msra.mxu0 0.0
  %1410 = vmatprep.subr.mxu0 0.0
  %1411 = vmatpush1.msra.mxu0 0.0
  %1412 = vmatprep.subr.mxu0 0.0
  %1413 = vmatpush1.msra.mxu0 0.0
  %1414 = vmatprep.subr.mxu0 0.0
  %1415 = vmatpush1.msra.mxu0 0.0
  %1416 = vmatprep.subr.mxu0 0.0
  %1417 = vmatpush1.msra.mxu0 0.0
  %1418 = vmatprep.subr.mxu0 0.0
  %1419 = vmatpush1.msra.mxu0 0.0
  %1420 = vmatprep.subr.mxu0 0.0
  %1421 = vmatpush1.msra.mxu0 0.0
  %1422 = vmatprep.subr.mxu0 0.0
  %1423 = vmatpush1.msra.mxu0 0.0
  %1424 = vmatprep.mubr.f32.mxu0 0.0
  %1425 = vmatmul.mubr.f32.gmra.mrb[0].mxu0 %v1287
  %v1426 = vpop.f32.mrb[0].mxu0
  %v1427 = vadd.f32 0.0, %v1426
  %v1428 = vpop.f32.mrb[0].mxu0
  %v1429 = vadd.f32 0.0, %v1428
  %1430 = vdwg.mxu0
  %v1431 = vadd.f32 %v373, %v1356
  %v1432 = vadd.f32 %v375, %v1358
  %v1433 = vadd.f32 %v486, %v1427
  %v1434 = vadd.f32 %v488, %v1429
  %v1435 = vxor.u32 %v1431, 2147483648
  %v1436 = vmul.f32 %v1435, 1.442695
  %v1437 = vpow.pop %v1436
  %v1438 = vadd.f32 %v1437, 1.0
  %v1439 = vrcp.pop %v1438
  %v1440 = vmul.f32 1.0, %v1439
  %v1441 = vxor.u32 %v1432, 2147483648
  %v1442 = vmul.f32 %v1441, 1.442695
  %v1443 = vpow.pop %v1442
  %v1444 = vadd.f32 %v1443, 1.0
  %v1445 = vrcp.pop %v1444
  %v1446 = vmul.f32 1.0, %v1445
  %v1447 = vtanh.pop %v1433
  %v1448 = vxor.u32 %v1434, 2147483648
  %v1449 = vmul.f32 %v1448, 1.442695
  %v1450 = vpow.pop %v1449
  %v1451 = vadd.f32 %v1450, 1.0
  %v1452 = vrcp.pop %v1451
  %v1453 = vmul.f32 1.0, %v1452
  %v1454 = vmul.f32 %v1446, %v1109
  %v1455 = vmul.f32 %v1440, %v1447
  %v1456 = vadd.f32 %v1454, %v1455
  %v1457 = vtanh.pop %v1456
  %v1458 = vmul.f32 %v1453, %v1457
  %1460 = vrot.lane.b32.xlu0 %v1285, 32
  %v1461 = vpop.permute.xlu0 %1460
  %v1463 = vsel %vm590, %v1458, %v1461
  %v1465 = vsel %vm769, %v1463, 0
  %1467 = vmatprep.subr.mxu0 %v537
  %1468 = vmatpush1.msra.mxu0 %v536
  %1469 = vmatprep.subr.mxu0 %v541
  %1470 = vmatpush1.msra.mxu0 %v540
  %1471 = vmatprep.subr.mxu0 %v545
  %1472 = vmatpush1.msra.mxu0 %v544
  %1473 = vmatprep.subr.mxu0 %v549
  %1474 = vmatpush1.msra.mxu0 %v548
  %1475 = vmatprep.subr.mxu0 %v553
  %1476 = vmatpush1.msra.mxu0 %v552
  %1477 = vmatprep.subr.mxu0 %v557
  %1478 = vmatpush1.msra.mxu0 %v556
  %1479 = vmatprep.subr.mxu0 %v561
  %1480 = vmatpush1.msra.mxu0 %v560
  %1481 = vmatprep.subr.mxu0 %v565
  %1482 = vmatpush1.msra.mxu0 %v564
  %1483 = vmatprep.subr.mxu0 0.0
  %1484 = vmatpush1.msra.mxu0 0.0
  %1485 = vmatprep.subr.mxu0 0.0
  %1486 = vmatpush1.msra.mxu0 0.0
  %1487 = vmatprep.subr.mxu0 0.0
  %1488 = vmatpush1.msra.mxu0 0.0
  %1489 = vmatprep.subr.mxu0 0.0
  %1490 = vmatpush1.msra.mxu0 0.0
  %1491 = vmatprep.subr.mxu0 0.0
  %1492 = vmatpush1.msra.mxu0 0.0
  %1493 = vmatprep.subr.mxu0 0.0
  %1494 = vmatpush1.msra.mxu0 0.0
  %1495 = vmatprep.subr.mxu0 0.0
  %1496 = vmatpush1.msra.mxu0 0.0
  %1497 = vmatprep.subr.mxu0 0.0
  %1498 = vmatpush1.msra.mxu0 0.0
  %1499 = vmatprep.subr.mxu0 0.0
  %1500 = vmatpush1.msra.mxu0 0.0
  %1501 = vmatprep.subr.mxu0 0.0
  %1502 = vmatpush1.msra.mxu0 0.0
  %1503 = vmatprep.subr.mxu0 0.0
  %1504 = vmatpush1.msra.mxu0 0.0
  %1505 = vmatprep.subr.mxu0 0.0
  %1506 = vmatpush1.msra.mxu0 0.0
  %1507 = vmatprep.subr.mxu0 0.0
  %1508 = vmatpush1.msra.mxu0 0.0
  %1509 = vmatprep.subr.mxu0 0.0
  %1510 = vmatpush1.msra.mxu0 0.0
  %1511 = vmatprep.subr.mxu0 0.0
  %1512 = vmatpush1.msra.mxu0 0.0
  %1513 = vmatprep.subr.mxu0 0.0
  %1514 = vmatpush1.msra.mxu0 0.0
  %1515 = vmatprep.subr.mxu0 0.0
  %1516 = vmatpush1.msra.mxu0 0.0
  %1517 = vmatprep.subr.mxu0 0.0
  %1518 = vmatpush1.msra.mxu0 0.0
  %1519 = vmatprep.subr.mxu0 0.0
  %1520 = vmatpush1.msra.mxu0 0.0
  %1521 = vmatprep.subr.mxu0 0.0
  %1522 = vmatpush1.msra.mxu0 0.0
  %1523 = vmatprep.subr.mxu0 0.0
  %1524 = vmatpush1.msra.mxu0 0.0
  %1525 = vmatprep.subr.mxu0 0.0
  %1526 = vmatpush1.msra.mxu0 0.0
  %1527 = vmatprep.subr.mxu0 0.0
  %1528 = vmatpush1.msra.mxu0 0.0
  %1529 = vmatprep.subr.mxu0 0.0
  %1530 = vmatpush1.msra.mxu0 0.0
  %1531 = vmatprep.mubr.f32.mxu0 0.0
  %1532 = vmatmul.mubr.f32.gmra.mrb[0].mxu0 %v1465
  %v1533 = vpop.f32.mrb[0].mxu0
  %v1534 = vadd.f32 %v573, %v1533
  %v1535 = vpop.f32.mrb[0].mxu0
  %v1536 = vadd.f32 %v577, %v1535
  %1537 = vdwg.mxu0
  %1538 = vmatprep.subr.mxu0 %v539
  %1539 = vmatpush1.msra.mxu0 %v538
  %1540 = vmatprep.subr.mxu0 %v543
  %1541 = vmatpush1.msra.mxu0 %v542
  %1542 = vmatprep.subr.mxu0 %v547
  %1543 = vmatpush1.msra.mxu0 %v546
  %1544 = vmatprep.subr.mxu0 %v551
  %1545 = vmatpush1.msra.mxu0 %v550
  %1546 = vmatprep.subr.mxu0 %v555
  %1547 = vmatpush1.msra.mxu0 %v554
  %1548 = vmatprep.subr.mxu0 %v559
  %1549 = vmatpush1.msra.mxu0 %v558
  %1550 = vmatprep.subr.mxu0 %v563
  %1551 = vmatpush1.msra.mxu0 %v562
  %1552 = vmatprep.subr.mxu0 %v567
  %1553 = vmatpush1.msra.mxu0 %v566
  %1554 = vmatprep.subr.mxu0 0.0
  %1555 = vmatpush1.msra.mxu0 0.0
  %1556 = vmatprep.subr.mxu0 0.0
  %1557 = vmatpush1.msra.mxu0 0.0
  %1558 = vmatprep.subr.mxu0 0.0
  %1559 = vmatpush1.msra.mxu0 0.0
  %1560 = vmatprep.subr.mxu0 0.0
  %1561 = vmatpush1.msra.mxu0 0.0
  %1562 = vmatprep.subr.mxu0 0.0
  %1563 = vmatpush1.msra.mxu0 0.0
  %1564 = vmatprep.subr.mxu0 0.0
  %1565 = vmatpush1.msra.mxu0 0.0
  %1566 = vmatprep.subr.mxu0 0.0
  %1567 = vmatpush1.msra.mxu0 0.0
  %1568 = vmatprep.subr.mxu0 0.0
  %1569 = vmatpush1.msra.mxu0 0.0
  %1570 = vmatprep.subr.mxu0 0.0
  %1571 = vmatpush1.msra.mxu0 0.0
  %1572 = vmatprep.subr.mxu0 0.0
  %1573 = vmatpush1.msra.mxu0 0.0
  %1574 = vmatprep.subr.mxu0 0.0
  %1575 = vmatpush1.msra.mxu0 0.0
  %1576 = vmatprep.subr.mxu0 0.0
  %1577 = vmatpush1.msra.mxu0 0.0
  %1578 = vmatprep.subr.mxu0 0.0
  %1579 = vmatpush1.msra.mxu0 0.0
  %1580 = vmatprep.subr.mxu0 0.0
  %1581 = vmatpush1.msra.mxu0 0.0
  %1582 = vmatprep.subr.mxu0 0.0
  %1583 = vmatpush1.msra.mxu0 0.0
  %1584 = vmatprep.subr.mxu0 0.0
  %1585 = vmatpush1.msra.mxu0 0.0
  %1586 = vmatprep.subr.mxu0 0.0
  %1587 = vmatpush1.msra.mxu0 0.0
  %1588 = vmatprep.subr.mxu0 0.0
  %1589 = vmatpush1.msra.mxu0 0.0
  %1590 = vmatprep.subr.mxu0 0.0
  %1591 = vmatpush1.msra.mxu0 0.0
  %1592 = vmatprep.subr.mxu0 0.0
  %1593 = vmatpush1.msra.mxu0 0.0
  %1594 = vmatprep.subr.mxu0 0.0
  %1595 = vmatpush1.msra.mxu0 0.0
  %1596 = vmatprep.subr.mxu0 0.0
  %1597 = vmatpush1.msra.mxu0 0.0
  %1598 = vmatprep.subr.mxu0 0.0
  %1599 = vmatpush1.msra.mxu0 0.0
  %1600 = vmatprep.subr.mxu0 0.0
  %1601 = vmatpush1.msra.mxu0 0.0
  %1602 = vmatprep.mubr.f32.mxu0 0.0
  %1603 = vmatmul.mubr.f32.gmra.mrb[0].mxu0 %v1465
  %v1604 = vpop.f32.mrb[0].mxu0
  %v1605 = vadd.f32 %v581, %v1604
  %v1606 = vpop.f32.mrb[0].mxu0
  %v1607 = vadd.f32 %v585, %v1606
  %1608 = vdwg.mxu0
  %v1609 = vxor.u32 %v1534, 2147483648
  %v1610 = vmul.f32 %v1609, 1.442695
  %v1611 = vpow.pop %v1610
  %v1612 = vadd.f32 %v1611, 1.0
  %v1613 = vrcp.pop %v1612
  %v1614 = vmul.f32 1.0, %v1613
  %v1615 = vxor.u32 %v1536, 2147483648
  %v1616 = vmul.f32 %v1615, 1.442695
  %v1617 = vpow.pop %v1616
  %v1618 = vadd.f32 %v1617, 1.0
  %v1619 = vrcp.pop %v1618
  %v1620 = vmul.f32 1.0, %v1619
  %v1621 = vtanh.pop %v1605
  %v1622 = vxor.u32 %v1607, 2147483648
  %v1623 = vmul.f32 %v1622, 1.442695
  %v1624 = vpow.pop %v1623
  %v1625 = vadd.f32 %v1624, 1.0
  %v1626 = vrcp.pop %v1625
  %v1627 = vmul.f32 1.0, %v1626
  %v1628 = vmul.f32 %v1620, %v1283
  %v1629 = vmul.f32 %v1614, %v1621
  %v1630 = vadd.f32 %v1628, %v1629
  %v1631 = vtanh.pop %v1630
  %v1632 = vmul.f32 %v1627, %v1631
  %v1634 = vsel %vm590, %v1458, 0
  %1636 = vmatprep.subr.mxu0 %v521
  %1637 = vmatpush1.msra.mxu0 %v520
  %1638 = vmatprep.subr.mxu0 %v525
  %1639 = vmatpush1.msra.mxu0 %v524
  %1640 = vmatprep.subr.mxu0 %v529
  %1641 = vmatpush1.msra.mxu0 %v528
  %1642 = vmatprep.subr.mxu0 %v533
  %1643 = vmatpush1.msra.mxu0 %v532
  %1644 = vmatprep.subr.mxu0 0.0
  %1645 = vmatpush1.msra.mxu0 0.0
  %1646 = vmatprep.subr.mxu0 0.0
  %1647 = vmatpush1.msra.mxu0 0.0
  %1648 = vmatprep.subr.mxu0 0.0
  %1649 = vmatpush1.msra.mxu0 0.0
  %1650 = vmatprep.subr.mxu0 0.0
  %1651 = vmatpush1.msra.mxu0 0.0
  %1652 = vmatprep.subr.mxu0 0.0
  %1653 = vmatpush1.msra.mxu0 0.0
  %1654 = vmatprep.subr.mxu0 0.0
  %1655 = vmatpush1.msra.mxu0 0.0
  %1656 = vmatprep.subr.mxu0 0.0
  %1657 = vmatpush1.msra.mxu0 0.0
  %1658 = vmatprep.subr.mxu0 0.0
  %1659 = vmatpush1.msra.mxu0 0.0
  %1660 = vmatprep.subr.mxu0 0.0
  %1661 = vmatpush1.msra.mxu0 0.0
  %1662 = vmatprep.subr.mxu0 0.0
  %1663 = vmatpush1.msra.mxu0 0.0
  %1664 = vmatprep.subr.mxu0 0.0
  %1665 = vmatpush1.msra.mxu0 0.0
  %1666 = vmatprep.subr.mxu0 0.0
  %1667 = vmatpush1.msra.mxu0 0.0
  %1668 = vmatprep.subr.mxu0 0.0
  %1669 = vmatpush1.msra.mxu0 0.0
  %1670 = vmatprep.subr.mxu0 0.0
  %1671 = vmatpush1.msra.mxu0 0.0
  %1672 = vmatprep.subr.mxu0 0.0
  %1673 = vmatpush1.msra.mxu0 0.0
  %1674 = vmatprep.subr.mxu0 0.0
  %1675 = vmatpush1.msra.mxu0 0.0
  %1676 = vmatprep.subr.mxu0 0.0
  %1677 = vmatpush1.msra.mxu0 0.0
  %1678 = vmatprep.subr.mxu0 0.0
  %1679 = vmatpush1.msra.mxu0 0.0
  %1680 = vmatprep.subr.mxu0 0.0
  %1681 = vmatpush1.msra.mxu0 0.0
  %1682 = vmatprep.subr.mxu0 0.0
  %1683 = vmatpush1.msra.mxu0 0.0
  %1684 = vmatprep.subr.mxu0 0.0
  %1685 = vmatpush1.msra.mxu0 0.0
  %1686 = vmatprep.subr.mxu0 0.0
  %1687 = vmatpush1.msra.mxu0 0.0
  %1688 = vmatprep.subr.mxu0 0.0
  %1689 = vmatpush1.msra.mxu0 0.0
  %1690 = vmatprep.subr.mxu0 0.0
  %1691 = vmatpush1.msra.mxu0 0.0
  %1692 = vmatprep.subr.mxu0 0.0
  %1693 = vmatpush1.msra.mxu0 0.0
  %1694 = vmatprep.subr.mxu0 0.0
  %1695 = vmatpush1.msra.mxu0 0.0
  %1696 = vmatprep.subr.mxu0 0.0
  %1697 = vmatpush1.msra.mxu0 0.0
  %1698 = vmatprep.subr.mxu0 0.0
  %1699 = vmatpush1.msra.mxu0 0.0
  %1700 = vmatprep.mubr.f32.mxu0 0.0
  %1701 = vmatmul.mubr.f32.gmra.mrb[0].mxu0 %v1634
  %v1702 = vpop.f32.mrb[0].mxu0
  %v1703 = vadd.f32 0.0, %v1702
  %v1704 = vpop.f32.mrb[0].mxu0
  %v1705 = vadd.f32 0.0, %v1704
  %1706 = vdwg.mxu0
  %1707 = vmatprep.subr.mxu0 %v523
  %1708 = vmatpush1.msra.mxu0 %v522
  %1709 = vmatprep.subr.mxu0 %v527
  %1710 = vmatpush1.msra.mxu0 %v526
  %1711 = vmatprep.subr.mxu0 %v531
  %1712 = vmatpush1.msra.mxu0 %v530
  %1713 = vmatprep.subr.mxu0 %v535
  %1714 = vmatpush1.msra.mxu0 %v534
  %1715 = vmatprep.subr.mxu0 0.0
  %1716 = vmatpush1.msra.mxu0 0.0
  %1717 = vmatprep.subr.mxu0 0.0
  %1718 = vmatpush1.msra.mxu0 0.0
  %1719 = vmatprep.subr.mxu0 0.0
  %1720 = vmatpush1.msra.mxu0 0.0
  %1721 = vmatprep.subr.mxu0 0.0
  %1722 = vmatpush1.msra.mxu0 0.0
  %1723 = vmatprep.subr.mxu0 0.0
  %1724 = vmatpush1.msra.mxu0 0.0
  %1725 = vmatprep.subr.mxu0 0.0
  %1726 = vmatpush1.msra.mxu0 0.0
  %1727 = vmatprep.subr.mxu0 0.0
  %1728 = vmatpush1.msra.mxu0 0.0
  %1729 = vmatprep.subr.mxu0 0.0
  %1730 = vmatpush1.msra.mxu0 0.0
  %1731 = vmatprep.subr.mxu0 0.0
  %1732 = vmatpush1.msra.mxu0 0.0
  %1733 = vmatprep.subr.mxu0 0.0
  %1734 = vmatpush1.msra.mxu0 0.0
  %1735 = vmatprep.subr.mxu0 0.0
  %1736 = vmatpush1.msra.mxu0 0.0
  %1737 = vmatprep.subr.mxu0 0.0
  %1738 = vmatpush1.msra.mxu0 0.0
  %1739 = vmatprep.subr.mxu0 0.0
  %1740 = vmatpush1.msra.mxu0 0.0
  %1741 = vmatprep.subr.mxu0 0.0
  %1742 = vmatpush1.msra.mxu0 0.0
  %1743 = vmatprep.subr.mxu0 0.0
  %1744 = vmatpush1.msra.mxu0 0.0
  %1745 = vmatprep.subr.mxu0 0.0
  %1746 = vmatpush1.msra.mxu0 0.0
  %1747 = vmatprep.subr.mxu0 0.0
  %1748 = vmatpush1.msra.mxu0 0.0
  %1749 = vmatprep.subr.mxu0 0.0
  %1750 = vmatpush1.msra.mxu0 0.0
  %1751 = vmatprep.subr.mxu0 0.0
  %1752 = vmatpush1.msra.mxu0 0.0
  %1753 = vmatprep.subr.mxu0 0.0
  %1754 = vmatpush1.msra.mxu0 0.0
  %1755 = vmatprep.subr.mxu0 0.0
  %1756 = vmatpush1.msra.mxu0 0.0
  %1757 = vmatprep.subr.mxu0 0.0
  %1758 = vmatpush1.msra.mxu0 0.0
  %1759 = vmatprep.subr.mxu0 0.0
  %1760 = vmatpush1.msra.mxu0 0.0
  %1761 = vmatprep.subr.mxu0 0.0
  %1762 = vmatpush1.msra.mxu0 0.0
  %1763 = vmatprep.subr.mxu0 0.0
  %1764 = vmatpush1.msra.mxu0 0.0
  %1765 = vmatprep.subr.mxu0 0.0
  %1766 = vmatpush1.msra.mxu0 0.0
  %1767 = vmatprep.subr.mxu0 0.0
  %1768 = vmatpush1.msra.mxu0 0.0
  %1769 = vmatprep.subr.mxu0 0.0
  %1770 = vmatpush1.msra.mxu0 0.0
  %1771 = vmatprep.mubr.f32.mxu0 0.0
  %1772 = vmatmul.mubr.f32.gmra.mrb[0].mxu0 %v1634
  %v1773 = vpop.f32.mrb[0].mxu0
  %v1774 = vadd.f32 0.0, %v1773
  %v1775 = vpop.f32.mrb[0].mxu0
  %v1776 = vadd.f32 0.0, %v1775
  %1777 = vdwg.mxu0
  %v1778 = vadd.f32 %v379, %v1703
  %v1779 = vadd.f32 %v381, %v1705
  %v1780 = vadd.f32 %v492, %v1774
  %v1781 = vadd.f32 %v494, %v1776
  %v1782 = vxor.u32 %v1778, 2147483648
  %v1783 = vmul.f32 %v1782, 1.442695
  %v1784 = vpow.pop %v1783
  %v1785 = vadd.f32 %v1784, 1.0
  %v1786 = vrcp.pop %v1785
  %v1787 = vmul.f32 1.0, %v1786
  %v1788 = vxor.u32 %v1779, 2147483648
  %v1789 = vmul.f32 %v1788, 1.442695
  %v1790 = vpow.pop %v1789
  %v1791 = vadd.f32 %v1790, 1.0
  %v1792 = vrcp.pop %v1791
  %v1793 = vmul.f32 1.0, %v1792
  %v1794 = vtanh.pop %v1780
  %v1795 = vxor.u32 %v1781, 2147483648
  %v1796 = vmul.f32 %v1795, 1.442695
  %v1797 = vpow.pop %v1796
  %v1798 = vadd.f32 %v1797, 1.0
  %v1799 = vrcp.pop %v1798
  %v1800 = vmul.f32 1.0, %v1799
  %v1801 = vmul.f32 %v1793, %v1456
  %v1802 = vmul.f32 %v1787, %v1794
  %v1803 = vadd.f32 %v1801, %v1802
  %v1804 = vtanh.pop %v1803
  %v1805 = vmul.f32 %v1800, %v1804
  %1807 = vrot.lane.b32.xlu0 %v1632, 32
  %v1808 = vpop.permute.xlu0 %1807
  %v1810 = vsel %vm590, %v1805, %v1808
  %v1812 = vsel %vm769, %v1810, 0
  %1814 = vmatprep.subr.mxu0 %v537
  %1815 = vmatpush1.msra.mxu0 %v536
  %1816 = vmatprep.subr.mxu0 %v541
  %1817 = vmatpush1.msra.mxu0 %v540
  %1818 = vmatprep.subr.mxu0 %v545
  %1819 = vmatpush1.msra.mxu0 %v544
  %1820 = vmatprep.subr.mxu0 %v549
  %1821 = vmatpush1.msra.mxu0 %v548
  %1822 = vmatprep.subr.mxu0 %v553
  %1823 = vmatpush1.msra.mxu0 %v552
  %1824 = vmatprep.subr.mxu0 %v557
  %1825 = vmatpush1.msra.mxu0 %v556
  %1826 = vmatprep.subr.mxu0 %v561
  %1827 = vmatpush1.msra.mxu0 %v560
  %1828 = vmatprep.subr.mxu0 %v565
  %1829 = vmatpush1.msra.mxu0 %v564
  %1830 = vmatprep.subr.mxu0 0.0
  %1831 = vmatpush1.msra.mxu0 0.0
  %1832 = vmatprep.subr.mxu0 0.0
  %1833 = vmatpush1.msra.mxu0 0.0
  %1834 = vmatprep.subr.mxu0 0.0
  %1835 = vmatpush1.msra.mxu0 0.0
  %1836 = vmatprep.subr.mxu0 0.0
  %1837 = vmatpush1.msra.mxu0 0.0
  %1838 = vmatprep.subr.mxu0 0.0
  %1839 = vmatpush1.msra.mxu0 0.0
  %1840 = vmatprep.subr.mxu0 0.0
  %1841 = vmatpush1.msra.mxu0 0.0
  %1842 = vmatprep.subr.mxu0 0.0
  %1843 = vmatpush1.msra.mxu0 0.0
  %1844 = vmatprep.subr.mxu0 0.0
  %1845 = vmatpush1.msra.mxu0 0.0
  %1846 = vmatprep.subr.mxu0 0.0
  %1847 = vmatpush1.msra.mxu0 0.0
  %1848 = vmatprep.subr.mxu0 0.0
  %1849 = vmatpush1.msra.mxu0 0.0
  %1850 = vmatprep.subr.mxu0 0.0
  %1851 = vmatpush1.msra.mxu0 0.0
  %1852 = vmatprep.subr.mxu0 0.0
  %1853 = vmatpush1.msra.mxu0 0.0
  %1854 = vmatprep.subr.mxu0 0.0
  %1855 = vmatpush1.msra.mxu0 0.0
  %1856 = vmatprep.subr.mxu0 0.0
  %1857 = vmatpush1.msra.mxu0 0.0
  %1858 = vmatprep.subr.mxu0 0.0
  %1859 = vmatpush1.msra.mxu0 0.0
  %1860 = vmatprep.subr.mxu0 0.0
  %1861 = vmatpush1.msra.mxu0 0.0
  %1862 = vmatprep.subr.mxu0 0.0
  %1863 = vmatpush1.msra.mxu0 0.0
  %1864 = vmatprep.subr.mxu0 0.0
  %1865 = vmatpush1.msra.mxu0 0.0
  %1866 = vmatprep.subr.mxu0 0.0
  %1867 = vmatpush1.msra.mxu0 0.0
  %1868 = vmatprep.subr.mxu0 0.0
  %1869 = vmatpush1.msra.mxu0 0.0
  %1870 = vmatprep.subr.mxu0 0.0
  %1871 = vmatpush1.msra.mxu0 0.0
  %1872 = vmatprep.subr.mxu0 0.0
  %1873 = vmatpush1.msra.mxu0 0.0
  %1874 = vmatprep.subr.mxu0 0.0
  %1875 = vmatpush1.msra.mxu0 0.0
  %1876 = vmatprep.subr.mxu0 0.0
  %1877 = vmatpush1.msra.mxu0 0.0
  %1878 = vmatprep.mubr.f32.mxu0 0.0
  %1879 = vmatmul.mubr.f32.gmra.mrb[0].mxu0 %v1812
  %v1880 = vpop.f32.mrb[0].mxu0
  %v1881 = vadd.f32 %v573, %v1880
  %v1882 = vpop.f32.mrb[0].mxu0
  %v1883 = vadd.f32 %v577, %v1882
  %1884 = vdwg.mxu0
  %1885 = vmatprep.subr.mxu0 %v539
  %1886 = vmatpush1.msra.mxu0 %v538
  %1887 = vmatprep.subr.mxu0 %v543
  %1888 = vmatpush1.msra.mxu0 %v542
  %1889 = vmatprep.subr.mxu0 %v547
  %1890 = vmatpush1.msra.mxu0 %v546
  %1891 = vmatprep.subr.mxu0 %v551
  %1892 = vmatpush1.msra.mxu0 %v550
  %1893 = vmatprep.subr.mxu0 %v555
  %1894 = vmatpush1.msra.mxu0 %v554
  %1895 = vmatprep.subr.mxu0 %v559
  %1896 = vmatpush1.msra.mxu0 %v558
  %1897 = vmatprep.subr.mxu0 %v563
  %1898 = vmatpush1.msra.mxu0 %v562
  %1899 = vmatprep.subr.mxu0 %v567
  %1900 = vmatpush1.msra.mxu0 %v566
  %1901 = vmatprep.subr.mxu0 0.0
  %1902 = vmatpush1.msra.mxu0 0.0
  %1903 = vmatprep.subr.mxu0 0.0
  %1904 = vmatpush1.msra.mxu0 0.0
  %1905 = vmatprep.subr.mxu0 0.0
  %1906 = vmatpush1.msra.mxu0 0.0
  %1907 = vmatprep.subr.mxu0 0.0
  %1908 = vmatpush1.msra.mxu0 0.0
  %1909 = vmatprep.subr.mxu0 0.0
  %1910 = vmatpush1.msra.mxu0 0.0
  %1911 = vmatprep.subr.mxu0 0.0
  %1912 = vmatpush1.msra.mxu0 0.0
  %1913 = vmatprep.subr.mxu0 0.0
  %1914 = vmatpush1.msra.mxu0 0.0
  %1915 = vmatprep.subr.mxu0 0.0
  %1916 = vmatpush1.msra.mxu0 0.0
  %1917 = vmatprep.subr.mxu0 0.0
  %1918 = vmatpush1.msra.mxu0 0.0
  %1919 = vmatprep.subr.mxu0 0.0
  %1920 = vmatpush1.msra.mxu0 0.0
  %1921 = vmatprep.subr.mxu0 0.0
  %1922 = vmatpush1.msra.mxu0 0.0
  %1923 = vmatprep.subr.mxu0 0.0
  %1924 = vmatpush1.msra.mxu0 0.0
  %1925 = vmatprep.subr.mxu0 0.0
  %1926 = vmatpush1.msra.mxu0 0.0
  %1927 = vmatprep.subr.mxu0 0.0
  %1928 = vmatpush1.msra.mxu0 0.0
  %1929 = vmatprep.subr.mxu0 0.0
  %1930 = vmatpush1.msra.mxu0 0.0
  %1931 = vmatprep.subr.mxu0 0.0
  %1932 = vmatpush1.msra.mxu0 0.0
  %1933 = vmatprep.subr.mxu0 0.0
  %1934 = vmatpush1.msra.mxu0 0.0
  %1935 = vmatprep.subr.mxu0 0.0
  %1936 = vmatpush1.msra.mxu0 0.0
  %1937 = vmatprep.subr.mxu0 0.0
  %1938 = vmatpush1.msra.mxu0 0.0
  %1939 = vmatprep.subr.mxu0 0.0
  %1940 = vmatpush1.msra.mxu0 0.0
  %1941 = vmatprep.subr.mxu0 0.0
  %1942 = vmatpush1.msra.mxu0 0.0
  %1943 = vmatprep.subr.mxu0 0.0
  %1944 = vmatpush1.msra.mxu0 0.0
  %1945 = vmatprep.subr.mxu0 0.0
  %1946 = vmatpush1.msra.mxu0 0.0
  %1947 = vmatprep.subr.mxu0 0.0
  %1948 = vmatpush1.msra.mxu0 0.0
  %1949 = vmatprep.mubr.f32.mxu0 0.0
  %1950 = vmatmul.mubr.f32.gmra.mrb[0].mxu0 %v1812
  %v1951 = vpop.f32.mrb[0].mxu0
  %v1952 = vadd.f32 %v581, %v1951
  %v1953 = vpop.f32.mrb[0].mxu0
  %v1954 = vadd.f32 %v585, %v1953
  %1955 = vdwg.mxu0
  %v1956 = vxor.u32 %v1881, 2147483648
  %v1957 = vmul.f32 %v1956, 1.442695
  %v1958 = vpow.pop %v1957
  %v1959 = vadd.f32 %v1958, 1.0
  %v1960 = vrcp.pop %v1959
  %v1961 = vmul.f32 1.0, %v1960
  %v1962 = vxor.u32 %v1883, 2147483648
  %v1963 = vmul.f32 %v1962, 1.442695
  %v1964 = vpow.pop %v1963
  %v1965 = vadd.f32 %v1964, 1.0
  %v1966 = vrcp.pop %v1965
  %v1967 = vmul.f32 1.0, %v1966
  %v1968 = vtanh.pop %v1952
  %v1969 = vxor.u32 %v1954, 2147483648
  %v1970 = vmul.f32 %v1969, 1.442695
  %v1971 = vpow.pop %v1970
  %v1972 = vadd.f32 %v1971, 1.0
  %v1973 = vrcp.pop %v1972
  %v1974 = vmul.f32 1.0, %v1973
  %v1975 = vmul.f32 %v1967, %v1630
  %v1976 = vmul.f32 %v1961, %v1968
  %v1977 = vadd.f32 %v1975, %v1976
  %v1978 = vtanh.pop %v1977
  %v1979 = vmul.f32 %v1974, %v1978
  %v1981 = vsel %vm590, %v1805, 0
  %1983 = vmatprep.subr.mxu0 %v521
  %1984 = vmatpush1.msra.mxu0 %v520
  %1985 = vmatprep.subr.mxu0 %v525
  %1986 = vmatpush1.msra.mxu0 %v524
  %1987 = vmatprep.subr.mxu0 %v529
  %1988 = vmatpush1.msra.mxu0 %v528
  %1989 = vmatprep.subr.mxu0 %v533
  %1990 = vmatpush1.msra.mxu0 %v532
  %1991 = vmatprep.subr.mxu0 0.0
  %1992 = vmatpush1.msra.mxu0 0.0
  %1993 = vmatprep.subr.mxu0 0.0
  %1994 = vmatpush1.msra.mxu0 0.0
  %1995 = vmatprep.subr.mxu0 0.0
  %1996 = vmatpush1.msra.mxu0 0.0
  %1997 = vmatprep.subr.mxu0 0.0
  %1998 = vmatpush1.msra.mxu0 0.0
  %1999 = vmatprep.subr.mxu0 0.0
  %2000 = vmatpush1.msra.mxu0 0.0
  %2001 = vmatprep.subr.mxu0 0.0
  %2002 = vmatpush1.msra.mxu0 0.0
  %2003 = vmatprep.subr.mxu0 0.0
  %2004 = vmatpush1.msra.mxu0 0.0
  %2005 = vmatprep.subr.mxu0 0.0
  %2006 = vmatpush1.msra.mxu0 0.0
  %2007 = vmatprep.subr.mxu0 0.0
  %2008 = vmatpush1.msra.mxu0 0.0
  %2009 = vmatprep.subr.mxu0 0.0
  %2010 = vmatpush1.msra.mxu0 0.0
  %2011 = vmatprep.subr.mxu0 0.0
  %2012 = vmatpush1.msra.mxu0 0.0
  %2013 = vmatprep.subr.mxu0 0.0
  %2014 = vmatpush1.msra.mxu0 0.0
  %2015 = vmatprep.subr.mxu0 0.0
  %2016 = vmatpush1.msra.mxu0 0.0
  %2017 = vmatprep.subr.mxu0 0.0
  %2018 = vmatpush1.msra.mxu0 0.0
  %2019 = vmatprep.subr.mxu0 0.0
  %2020 = vmatpush1.msra.mxu0 0.0
  %2021 = vmatprep.subr.mxu0 0.0
  %2022 = vmatpush1.msra.mxu0 0.0
  %2023 = vmatprep.subr.mxu0 0.0
  %2024 = vmatpush1.msra.mxu0 0.0
  %2025 = vmatprep.subr.mxu0 0.0
  %2026 = vmatpush1.msra.mxu0 0.0
  %2027 = vmatprep.subr.mxu0 0.0
  %2028 = vmatpush1.msra.mxu0 0.0
  %2029 = vmatprep.subr.mxu0 0.0
  %2030 = vmatpush1.msra.mxu0 0.0
  %2031 = vmatprep.subr.mxu0 0.0
  %2032 = vmatpush1.msra.mxu0 0.0
  %2033 = vmatprep.subr.mxu0 0.0
  %2034 = vmatpush1.msra.mxu0 0.0
  %2035 = vmatprep.subr.mxu0 0.0
  %2036 = vmatpush1.msra.mxu0 0.0
  %2037 = vmatprep.subr.mxu0 0.0
  %2038 = vmatpush1.msra.mxu0 0.0
  %2039 = vmatprep.subr.mxu0 0.0
  %2040 = vmatpush1.msra.mxu0 0.0
  %2041 = vmatprep.subr.mxu0 0.0
  %2042 = vmatpush1.msra.mxu0 0.0
  %2043 = vmatprep.subr.mxu0 0.0
  %2044 = vmatpush1.msra.mxu0 0.0
  %2045 = vmatprep.subr.mxu0 0.0
  %2046 = vmatpush1.msra.mxu0 0.0
  %2047 = vmatprep.mubr.f32.mxu0 0.0
  %2048 = vmatmul.mubr.f32.gmra.mrb[0].mxu0 %v1981
  %v2049 = vpop.f32.mrb[0].mxu0
  %v2050 = vadd.f32 0.0, %v2049
  %v2051 = vpop.f32.mrb[0].mxu0
  %v2052 = vadd.f32 0.0, %v2051
  %2053 = vdwg.mxu0
  %2054 = vmatprep.subr.mxu0 %v523
  %2055 = vmatpush1.msra.mxu0 %v522
  %2056 = vmatprep.subr.mxu0 %v527
  %2057 = vmatpush1.msra.mxu0 %v526
  %2058 = vmatprep.subr.mxu0 %v531
  %2059 = vmatpush1.msra.mxu0 %v530
  %2060 = vmatprep.subr.mxu0 %v535
  %2061 = vmatpush1.msra.mxu0 %v534
  %2062 = vmatprep.subr.mxu0 0.0
  %2063 = vmatpush1.msra.mxu0 0.0
  %2064 = vmatprep.subr.mxu0 0.0
  %2065 = vmatpush1.msra.mxu0 0.0
  %2066 = vmatprep.subr.mxu0 0.0
  %2067 = vmatpush1.msra.mxu0 0.0
  %2068 = vmatprep.subr.mxu0 0.0
  %2069 = vmatpush1.msra.mxu0 0.0
  %2070 = vmatprep.subr.mxu0 0.0
  %2071 = vmatpush1.msra.mxu0 0.0
  %2072 = vmatprep.subr.mxu0 0.0
  %2073 = vmatpush1.msra.mxu0 0.0
  %2074 = vmatprep.subr.mxu0 0.0
  %2075 = vmatpush1.msra.mxu0 0.0
  %2076 = vmatprep.subr.mxu0 0.0
  %2077 = vmatpush1.msra.mxu0 0.0
  %2078 = vmatprep.subr.mxu0 0.0
  %2079 = vmatpush1.msra.mxu0 0.0
  %2080 = vmatprep.subr.mxu0 0.0
  %2081 = vmatpush1.msra.mxu0 0.0
  %2082 = vmatprep.subr.mxu0 0.0
  %2083 = vmatpush1.msra.mxu0 0.0
  %2084 = vmatprep.subr.mxu0 0.0
  %2085 = vmatpush1.msra.mxu0 0.0
  %2086 = vmatprep.subr.mxu0 0.0
  %2087 = vmatpush1.msra.mxu0 0.0
  %2088 = vmatprep.subr.mxu0 0.0
  %2089 = vmatpush1.msra.mxu0 0.0
  %2090 = vmatprep.subr.mxu0 0.0
  %2091 = vmatpush1.msra.mxu0 0.0
  %2092 = vmatprep.subr.mxu0 0.0
  %2093 = vmatpush1.msra.mxu0 0.0
  %2094 = vmatprep.subr.mxu0 0.0
  %2095 = vmatpush1.msra.mxu0 0.0
  %2096 = vmatprep.subr.mxu0 0.0
  %2097 = vmatpush1.msra.mxu0 0.0
  %2098 = vmatprep.subr.mxu0 0.0
  %2099 = vmatpush1.msra.mxu0 0.0
  %2100 = vmatprep.subr.mxu0 0.0
  %2101 = vmatpush1.msra.mxu0 0.0
  %2102 = vmatprep.subr.mxu0 0.0
  %2103 = vmatpush1.msra.mxu0 0.0
  %2104 = vmatprep.subr.mxu0 0.0
  %2105 = vmatpush1.msra.mxu0 0.0
  %2106 = vmatprep.subr.mxu0 0.0
  %2107 = vmatpush1.msra.mxu0 0.0
  %2108 = vmatprep.subr.mxu0 0.0
  %2109 = vmatpush1.msra.mxu0 0.0
  %2110 = vmatprep.subr.mxu0 0.0
  %2111 = vmatpush1.msra.mxu0 0.0
  %2112 = vmatprep.subr.mxu0 0.0
  %2113 = vmatpush1.msra.mxu0 0.0
  %2114 = vmatprep.subr.mxu0 0.0
  %2115 = vmatpush1.msra.mxu0 0.0
  %2116 = vmatprep.subr.mxu0 0.0
  %2117 = vmatpush1.msra.mxu0 0.0
  %2118 = vmatprep.mubr.f32.mxu0 0.0
  %2119 = vmatmul.mubr.f32.gmra.mrb[0].mxu0 %v1981
  %v2120 = vpop.f32.mrb[0].mxu0
  %v2121 = vadd.f32 0.0, %v2120
  %v2122 = vpop.f32.mrb[0].mxu0
  %v2123 = vadd.f32 0.0, %v2122
  %2124 = vdwg.mxu0
  %v2125 = vadd.f32 %v385, %v2050
  %v2126 = vadd.f32 %v387, %v2052
  %v2127 = vadd.f32 %v498, %v2121
  %v2128 = vadd.f32 %v500, %v2123
  %v2129 = vxor.u32 %v2125, 2147483648
  %v2130 = vmul.f32 %v2129, 1.442695
  %v2131 = vpow.pop %v2130
  %v2132 = vadd.f32 %v2131, 1.0
  %v2133 = vrcp.pop %v2132
  %v2134 = vmul.f32 1.0, %v2133
  %v2135 = vxor.u32 %v2126, 2147483648
  %v2136 = vmul.f32 %v2135, 1.442695
  %v2137 = vpow.pop %v2136
  %v2138 = vadd.f32 %v2137, 1.0
  %v2139 = vrcp.pop %v2138
  %v2140 = vmul.f32 1.0, %v2139
  %v2141 = vtanh.pop %v2127
  %v2142 = vxor.u32 %v2128, 2147483648
  %v2143 = vmul.f32 %v2142, 1.442695
  %v2144 = vpow.pop %v2143
  %v2145 = vadd.f32 %v2144, 1.0
  %v2146 = vrcp.pop %v2145
  %v2147 = vmul.f32 1.0, %v2146
  %v2148 = vmul.f32 %v2140, %v1803
  %v2149 = vmul.f32 %v2134, %v2141
  %v2150 = vadd.f32 %v2148, %v2149
  %v2151 = vtanh.pop %v2150
  %v2152 = vmul.f32 %v2147, %v2151
  %2154 = vrot.lane.b32.xlu0 %v1979, 32
  %v2155 = vpop.permute.xlu0 %2154
  %v2157 = vsel %vm590, %v2152, %v2155
  %v2159 = vsel %vm769, %v2157, 0
  %2161 = vmatprep.subr.mxu0 %v537
  %2162 = vmatpush1.msra.mxu0 %v536
  %2163 = vmatprep.subr.mxu0 %v541
  %2164 = vmatpush1.msra.mxu0 %v540
  %2165 = vmatprep.subr.mxu0 %v545
  %2166 = vmatpush1.msra.mxu0 %v544
  %2167 = vmatprep.subr.mxu0 %v549
  %2168 = vmatpush1.msra.mxu0 %v548
  %2169 = vmatprep.subr.mxu0 %v553
  %2170 = vmatpush1.msra.mxu0 %v552
  %2171 = vmatprep.subr.mxu0 %v557
  %2172 = vmatpush1.msra.mxu0 %v556
  %2173 = vmatprep.subr.mxu0 %v561
  %2174 = vmatpush1.msra.mxu0 %v560
  %2175 = vmatprep.subr.mxu0 %v565
  %2176 = vmatpush1.msra.mxu0 %v564
  %2177 = vmatprep.subr.mxu0 0.0
  %2178 = vmatpush1.msra.mxu0 0.0
  %2179 = vmatprep.subr.mxu0 0.0
  %2180 = vmatpush1.msra.mxu0 0.0
  %2181 = vmatprep.subr.mxu0 0.0
  %2182 = vmatpush1.msra.mxu0 0.0
  %2183 = vmatprep.subr.mxu0 0.0
  %2184 = vmatpush1.msra.mxu0 0.0
  %2185 = vmatprep.subr.mxu0 0.0
  %2186 = vmatpush1.msra.mxu0 0.0
  %2187 = vmatprep.subr.mxu0 0.0
  %2188 = vmatpush1.msra.mxu0 0.0
  %2189 = vmatprep.subr.mxu0 0.0
  %2190 = vmatpush1.msra.mxu0 0.0
  %2191 = vmatprep.subr.mxu0 0.0
  %2192 = vmatpush1.msra.mxu0 0.0
  %2193 = vmatprep.subr.mxu0 0.0
  %2194 = vmatpush1.msra.mxu0 0.0
  %2195 = vmatprep.subr.mxu0 0.0
  %2196 = vmatpush1.msra.mxu0 0.0
  %2197 = vmatprep.subr.mxu0 0.0
  %2198 = vmatpush1.msra.mxu0 0.0
  %2199 = vmatprep.subr.mxu0 0.0
  %2200 = vmatpush1.msra.mxu0 0.0
  %2201 = vmatprep.subr.mxu0 0.0
  %2202 = vmatpush1.msra.mxu0 0.0
  %2203 = vmatprep.subr.mxu0 0.0
  %2204 = vmatpush1.msra.mxu0 0.0
  %2205 = vmatprep.subr.mxu0 0.0
  %2206 = vmatpush1.msra.mxu0 0.0
  %2207 = vmatprep.subr.mxu0 0.0
  %2208 = vmatpush1.msra.mxu0 0.0
  %2209 = vmatprep.subr.mxu0 0.0
  %2210 = vmatpush1.msra.mxu0 0.0
  %2211 = vmatprep.subr.mxu0 0.0
  %2212 = vmatpush1.msra.mxu0 0.0
  %2213 = vmatprep.subr.mxu0 0.0
  %2214 = vmatpush1.msra.mxu0 0.0
  %2215 = vmatprep.subr.mxu0 0.0
  %2216 = vmatpush1.msra.mxu0 0.0
  %2217 = vmatprep.subr.mxu0 0.0
  %2218 = vmatpush1.msra.mxu0 0.0
  %2219 = vmatprep.subr.mxu0 0.0
  %2220 = vmatpush1.msra.mxu0 0.0
  %2221 = vmatprep.subr.mxu0 0.0
  %2222 = vmatpush1.msra.mxu0 0.0
  %2223 = vmatprep.subr.mxu0 0.0
  %2224 = vmatpush1.msra.mxu0 0.0
  %2225 = vmatprep.mubr.f32.mxu0 0.0
  %2226 = vmatmul.mubr.f32.gmra.mrb[0].mxu0 %v2159
  %v2227 = vpop.f32.mrb[0].mxu0
  %v2228 = vadd.f32 %v573, %v2227
  %v2229 = vpop.f32.mrb[0].mxu0
  %v2230 = vadd.f32 %v577, %v2229
  %2231 = vdwg.mxu0
  %2232 = vmatprep.subr.mxu0 %v539
  %2233 = vmatpush1.msra.mxu0 %v538
  %2234 = vmatprep.subr.mxu0 %v543
  %2235 = vmatpush1.msra.mxu0 %v542
  %2236 = vmatprep.subr.mxu0 %v547
  %2237 = vmatpush1.msra.mxu0 %v546
  %2238 = vmatprep.subr.mxu0 %v551
  %2239 = vmatpush1.msra.mxu0 %v550
  %2240 = vmatprep.subr.mxu0 %v555
  %2241 = vmatpush1.msra.mxu0 %v554
  %2242 = vmatprep.subr.mxu0 %v559
  %2243 = vmatpush1.msra.mxu0 %v558
  %2244 = vmatprep.subr.mxu0 %v563
  %2245 = vmatpush1.msra.mxu0 %v562
  %2246 = vmatprep.subr.mxu0 %v567
  %2247 = vmatpush1.msra.mxu0 %v566
  %2248 = vmatprep.subr.mxu0 0.0
  %2249 = vmatpush1.msra.mxu0 0.0
  %2250 = vmatprep.subr.mxu0 0.0
  %2251 = vmatpush1.msra.mxu0 0.0
  %2252 = vmatprep.subr.mxu0 0.0
  %2253 = vmatpush1.msra.mxu0 0.0
  %2254 = vmatprep.subr.mxu0 0.0
  %2255 = vmatpush1.msra.mxu0 0.0
  %2256 = vmatprep.subr.mxu0 0.0
  %2257 = vmatpush1.msra.mxu0 0.0
  %2258 = vmatprep.subr.mxu0 0.0
  %2259 = vmatpush1.msra.mxu0 0.0
  %2260 = vmatprep.subr.mxu0 0.0
  %2261 = vmatpush1.msra.mxu0 0.0
  %2262 = vmatprep.subr.mxu0 0.0
  %2263 = vmatpush1.msra.mxu0 0.0
  %2264 = vmatprep.subr.mxu0 0.0
  %2265 = vmatpush1.msra.mxu0 0.0
  %2266 = vmatprep.subr.mxu0 0.0
  %2267 = vmatpush1.msra.mxu0 0.0
  %2268 = vmatprep.subr.mxu0 0.0
  %2269 = vmatpush1.msra.mxu0 0.0
  %2270 = vmatprep.subr.mxu0 0.0
  %2271 = vmatpush1.msra.mxu0 0.0
  %2272 = vmatprep.subr.mxu0 0.0
  %2273 = vmatpush1.msra.mxu0 0.0
  %2274 = vmatprep.subr.mxu0 0.0
  %2275 = vmatpush1.msra.mxu0 0.0
  %2276 = vmatprep.subr.mxu0 0.0
  %2277 = vmatpush1.msra.mxu0 0.0
  %2278 = vmatprep.subr.mxu0 0.0
  %2279 = vmatpush1.msra.mxu0 0.0
  %2280 = vmatprep.subr.mxu0 0.0
  %2281 = vmatpush1.msra.mxu0 0.0
  %2282 = vmatprep.subr.mxu0 0.0
  %2283 = vmatpush1.msra.mxu0 0.0
  %2284 = vmatprep.subr.mxu0 0.0
  %2285 = vmatpush1.msra.mxu0 0.0
  %2286 = vmatprep.subr.mxu0 0.0
  %2287 = vmatpush1.msra.mxu0 0.0
  %2288 = vmatprep.subr.mxu0 0.0
  %2289 = vmatpush1.msra.mxu0 0.0
  %2290 = vmatprep.subr.mxu0 0.0
  %2291 = vmatpush1.msra.mxu0 0.0
  %2292 = vmatprep.subr.mxu0 0.0
  %2293 = vmatpush1.msra.mxu0 0.0
  %2294 = vmatprep.subr.mxu0 0.0
  %2295 = vmatpush1.msra.mxu0 0.0
  %2296 = vmatprep.mubr.f32.mxu0 0.0
  %2297 = vmatmul.mubr.f32.gmra.mrb[0].mxu0 %v2159
  %v2298 = vpop.f32.mrb[0].mxu0
  %v2299 = vadd.f32 %v581, %v2298
  %v2300 = vpop.f32.mrb[0].mxu0
  %v2301 = vadd.f32 %v585, %v2300
  %2302 = vdwg.mxu0
  %v2303 = vxor.u32 %v2228, 2147483648
  %v2304 = vmul.f32 %v2303, 1.442695
  %v2305 = vpow.pop %v2304
  %v2306 = vadd.f32 %v2305, 1.0
  %v2307 = vrcp.pop %v2306
  %v2308 = vmul.f32 1.0, %v2307
  %v2309 = vxor.u32 %v2230, 2147483648
  %v2310 = vmul.f32 %v2309, 1.442695
  %v2311 = vpow.pop %v2310
  %v2312 = vadd.f32 %v2311, 1.0
  %v2313 = vrcp.pop %v2312
  %v2314 = vmul.f32 1.0, %v2313
  %v2315 = vtanh.pop %v2299
  %v2316 = vxor.u32 %v2301, 2147483648
  %v2317 = vmul.f32 %v2316, 1.442695
  %v2318 = vpow.pop %v2317
  %v2319 = vadd.f32 %v2318, 1.0
  %v2320 = vrcp.pop %v2319
  %v2321 = vmul.f32 1.0, %v2320
  %v2322 = vmul.f32 %v2314, %v1977
  %v2323 = vmul.f32 %v2308, %v2315
  %v2324 = vadd.f32 %v2322, %v2323
  %v2325 = vtanh.pop %v2324
  %v2326 = vmul.f32 %v2321, %v2325
  %v2328 = vsel %vm590, %v2152, 0
  %2330 = vmatprep.subr.mxu0 %v521
  %2331 = vmatpush1.msra.mxu0 %v520
  %2332 = vmatprep.subr.mxu0 %v525
  %2333 = vmatpush1.msra.mxu0 %v524
  %2334 = vmatprep.subr.mxu0 %v529
  %2335 = vmatpush1.msra.mxu0 %v528
  %2336 = vmatprep.subr.mxu0 %v533
  %2337 = vmatpush1.msra.mxu0 %v532
  %2338 = vmatprep.subr.mxu0 0.0
  %2339 = vmatpush1.msra.mxu0 0.0
  %2340 = vmatprep.subr.mxu0 0.0
  %2341 = vmatpush1.msra.mxu0 0.0
  %2342 = vmatprep.subr.mxu0 0.0
  %2343 = vmatpush1.msra.mxu0 0.0
  %2344 = vmatprep.subr.mxu0 0.0
  %2345 = vmatpush1.msra.mxu0 0.0
  %2346 = vmatprep.subr.mxu0 0.0
  %2347 = vmatpush1.msra.mxu0 0.0
  %2348 = vmatprep.subr.mxu0 0.0
  %2349 = vmatpush1.msra.mxu0 0.0
  %2350 = vmatprep.subr.mxu0 0.0
  %2351 = vmatpush1.msra.mxu0 0.0
  %2352 = vmatprep.subr.mxu0 0.0
  %2353 = vmatpush1.msra.mxu0 0.0
  %2354 = vmatprep.subr.mxu0 0.0
  %2355 = vmatpush1.msra.mxu0 0.0
  %2356 = vmatprep.subr.mxu0 0.0
  %2357 = vmatpush1.msra.mxu0 0.0
  %2358 = vmatprep.subr.mxu0 0.0
  %2359 = vmatpush1.msra.mxu0 0.0
  %2360 = vmatprep.subr.mxu0 0.0
  %2361 = vmatpush1.msra.mxu0 0.0
  %2362 = vmatprep.subr.mxu0 0.0
  %2363 = vmatpush1.msra.mxu0 0.0
  %2364 = vmatprep.subr.mxu0 0.0
  %2365 = vmatpush1.msra.mxu0 0.0
  %2366 = vmatprep.subr.mxu0 0.0
  %2367 = vmatpush1.msra.mxu0 0.0
  %2368 = vmatprep.subr.mxu0 0.0
  %2369 = vmatpush1.msra.mxu0 0.0
  %2370 = vmatprep.subr.mxu0 0.0
  %2371 = vmatpush1.msra.mxu0 0.0
  %2372 = vmatprep.subr.mxu0 0.0
  %2373 = vmatpush1.msra.mxu0 0.0
  %2374 = vmatprep.subr.mxu0 0.0
  %2375 = vmatpush1.msra.mxu0 0.0
  %2376 = vmatprep.subr.mxu0 0.0
  %2377 = vmatpush1.msra.mxu0 0.0
  %2378 = vmatprep.subr.mxu0 0.0
  %2379 = vmatpush1.msra.mxu0 0.0
  %2380 = vmatprep.subr.mxu0 0.0
  %2381 = vmatpush1.msra.mxu0 0.0
  %2382 = vmatprep.subr.mxu0 0.0
  %2383 = vmatpush1.msra.mxu0 0.0
  %2384 = vmatprep.subr.mxu0 0.0
  %2385 = vmatpush1.msra.mxu0 0.0
  %2386 = vmatprep.subr.mxu0 0.0
  %2387 = vmatpush1.msra.mxu0 0.0
  %2388 = vmatprep.subr.mxu0 0.0
  %2389 = vmatpush1.msra.mxu0 0.0
  %2390 = vmatprep.subr.mxu0 0.0
  %2391 = vmatpush1.msra.mxu0 0.0
  %2392 = vmatprep.subr.mxu0 0.0
  %2393 = vmatpush1.msra.mxu0 0.0
  %2394 = vmatprep.mubr.f32.mxu0 0.0
  %2395 = vmatmul.mubr.f32.gmra.mrb[0].mxu0 %v2328
  %v2396 = vpop.f32.mrb[0].mxu0
  %v2397 = vadd.f32 0.0, %v2396
  %v2398 = vpop.f32.mrb[0].mxu0
  %v2399 = vadd.f32 0.0, %v2398
  %2400 = vdwg.mxu0
  %2401 = vmatprep.subr.mxu0 %v523
  %2402 = vmatpush1.msra.mxu0 %v522
  %2403 = vmatprep.subr.mxu0 %v527
  %2404 = vmatpush1.msra.mxu0 %v526
  %2405 = vmatprep.subr.mxu0 %v531
  %2406 = vmatpush1.msra.mxu0 %v530
  %2407 = vmatprep.subr.mxu0 %v535
  %2408 = vmatpush1.msra.mxu0 %v534
  %2409 = vmatprep.subr.mxu0 0.0
  %2410 = vmatpush1.msra.mxu0 0.0
  %2411 = vmatprep.subr.mxu0 0.0
  %2412 = vmatpush1.msra.mxu0 0.0
  %2413 = vmatprep.subr.mxu0 0.0
  %2414 = vmatpush1.msra.mxu0 0.0
  %2415 = vmatprep.subr.mxu0 0.0
  %2416 = vmatpush1.msra.mxu0 0.0
  %2417 = vmatprep.subr.mxu0 0.0
  %2418 = vmatpush1.msra.mxu0 0.0
  %2419 = vmatprep.subr.mxu0 0.0
  %2420 = vmatpush1.msra.mxu0 0.0
  %2421 = vmatprep.subr.mxu0 0.0
  %2422 = vmatpush1.msra.mxu0 0.0
  %2423 = vmatprep.subr.mxu0 0.0
  %2424 = vmatpush1.msra.mxu0 0.0
  %2425 = vmatprep.subr.mxu0 0.0
  %2426 = vmatpush1.msra.mxu0 0.0
  %2427 = vmatprep.subr.mxu0 0.0
  %2428 = vmatpush1.msra.mxu0 0.0
  %2429 = vmatprep.subr.mxu0 0.0
  %2430 = vmatpush1.msra.mxu0 0.0
  %2431 = vmatprep.subr.mxu0 0.0
  %2432 = vmatpush1.msra.mxu0 0.0
  %2433 = vmatprep.subr.mxu0 0.0
  %2434 = vmatpush1.msra.mxu0 0.0
  %2435 = vmatprep.subr.mxu0 0.0
  %2436 = vmatpush1.msra.mxu0 0.0
  %2437 = vmatprep.subr.mxu0 0.0
  %2438 = vmatpush1.msra.mxu0 0.0
  %2439 = vmatprep.subr.mxu0 0.0
  %2440 = vmatpush1.msra.mxu0 0.0
  %2441 = vmatprep.subr.mxu0 0.0
  %2442 = vmatpush1.msra.mxu0 0.0
  %2443 = vmatprep.subr.mxu0 0.0
  %2444 = vmatpush1.msra.mxu0 0.0
  %2445 = vmatprep.subr.mxu0 0.0
  %2446 = vmatpush1.msra.mxu0 0.0
  %2447 = vmatprep.subr.mxu0 0.0
  %2448 = vmatpush1.msra.mxu0 0.0
  %2449 = vmatprep.subr.mxu0 0.0
  %2450 = vmatpush1.msra.mxu0 0.0
  %2451 = vmatprep.subr.mxu0 0.0
  %2452 = vmatpush1.msra.mxu0 0.0
  %2453 = vmatprep.subr.mxu0 0.0
  %2454 = vmatpush1.msra.mxu0 0.0
  %2455 = vmatprep.subr.mxu0 0.0
  %2456 = vmatpush1.msra.mxu0 0.0
  %2457 = vmatprep.subr.mxu0 0.0
  %2458 = vmatpush1.msra.mxu0 0.0
  %2459 = vmatprep.subr.mxu0 0.0
  %2460 = vmatpush1.msra.mxu0 0.0
  %2461 = vmatprep.subr.mxu0 0.0
  %2462 = vmatpush1.msra.mxu0 0.0
  %2463 = vmatprep.subr.mxu0 0.0
  %2464 = vmatpush1.msra.mxu0 0.0
  %2465 = vmatprep.mubr.f32.mxu0 0.0
  %2466 = vmatmul.mubr.f32.gmra.mrb[0].mxu0 %v2328
  %v2467 = vpop.f32.mrb[0].mxu0
  %v2468 = vadd.f32 0.0, %v2467
  %v2469 = vpop.f32.mrb[0].mxu0
  %v2470 = vadd.f32 0.0, %v2469
  %2471 = vdwg.mxu0
  %v2472 = vadd.f32 %v391, %v2397
  %v2473 = vadd.f32 %v393, %v2399
  %v2474 = vadd.f32 %v504, %v2468
  %v2475 = vadd.f32 %v506, %v2470
  %v2476 = vxor.u32 %v2472, 2147483648
  %v2477 = vmul.f32 %v2476, 1.442695
  %v2478 = vpow.pop %v2477
  %v2479 = vadd.f32 %v2478, 1.0
  %v2480 = vrcp.pop %v2479
  %v2481 = vmul.f32 1.0, %v2480
  %v2482 = vxor.u32 %v2473, 2147483648
  %v2483 = vmul.f32 %v2482, 1.442695
  %v2484 = vpow.pop %v2483
  %v2485 = vadd.f32 %v2484, 1.0
  %v2486 = vrcp.pop %v2485
  %v2487 = vmul.f32 1.0, %v2486
  %v2488 = vtanh.pop %v2474
  %v2489 = vxor.u32 %v2475, 2147483648
  %v2490 = vmul.f32 %v2489, 1.442695
  %v2491 = vpow.pop %v2490
  %v2492 = vadd.f32 %v2491, 1.0
  %v2493 = vrcp.pop %v2492
  %v2494 = vmul.f32 1.0, %v2493
  %v2495 = vmul.f32 %v2487, %v2150
  %v2496 = vmul.f32 %v2481, %v2488
  %v2497 = vadd.f32 %v2495, %v2496
  %v2498 = vtanh.pop %v2497
  %v2499 = vmul.f32 %v2494, %v2498
  %2501 = vrot.lane.b32.xlu0 %v2326, 32
  %v2502 = vpop.permute.xlu0 %2501
  %v2504 = vsel %vm590, %v2499, %v2502
  %v2506 = vsel %vm769, %v2504, 0
  %2508 = vmatprep.subr.mxu0 %v537
  %2509 = vmatpush1.msra.mxu0 %v536
  %2510 = vmatprep.subr.mxu0 %v541
  %2511 = vmatpush1.msra.mxu0 %v540
  %2512 = vmatprep.subr.mxu0 %v545
  %2513 = vmatpush1.msra.mxu0 %v544
  %2514 = vmatprep.subr.mxu0 %v549
  %2515 = vmatpush1.msra.mxu0 %v548
  %2516 = vmatprep.subr.mxu0 %v553
  %2517 = vmatpush1.msra.mxu0 %v552
  %2518 = vmatprep.subr.mxu0 %v557
  %2519 = vmatpush1.msra.mxu0 %v556
  %2520 = vmatprep.subr.mxu0 %v561
  %2521 = vmatpush1.msra.mxu0 %v560
  %2522 = vmatprep.subr.mxu0 %v565
  %2523 = vmatpush1.msra.mxu0 %v564
  %2524 = vmatprep.subr.mxu0 0.0
  %2525 = vmatpush1.msra.mxu0 0.0
  %2526 = vmatprep.subr.mxu0 0.0
  %2527 = vmatpush1.msra.mxu0 0.0
  %2528 = vmatprep.subr.mxu0 0.0
  %2529 = vmatpush1.msra.mxu0 0.0
  %2530 = vmatprep.subr.mxu0 0.0
  %2531 = vmatpush1.msra.mxu0 0.0
  %2532 = vmatprep.subr.mxu0 0.0
  %2533 = vmatpush1.msra.mxu0 0.0
  %2534 = vmatprep.subr.mxu0 0.0
  %2535 = vmatpush1.msra.mxu0 0.0
  %2536 = vmatprep.subr.mxu0 0.0
  %2537 = vmatpush1.msra.mxu0 0.0
  %2538 = vmatprep.subr.mxu0 0.0
  %2539 = vmatpush1.msra.mxu0 0.0
  %2540 = vmatprep.subr.mxu0 0.0
  %2541 = vmatpush1.msra.mxu0 0.0
  %2542 = vmatprep.subr.mxu0 0.0
  %2543 = vmatpush1.msra.mxu0 0.0
  %2544 = vmatprep.subr.mxu0 0.0
  %2545 = vmatpush1.msra.mxu0 0.0
  %2546 = vmatprep.subr.mxu0 0.0
  %2547 = vmatpush1.msra.mxu0 0.0
  %2548 = vmatprep.subr.mxu0 0.0
  %2549 = vmatpush1.msra.mxu0 0.0
  %2550 = vmatprep.subr.mxu0 0.0
  %2551 = vmatpush1.msra.mxu0 0.0
  %2552 = vmatprep.subr.mxu0 0.0
  %2553 = vmatpush1.msra.mxu0 0.0
  %2554 = vmatprep.subr.mxu0 0.0
  %2555 = vmatpush1.msra.mxu0 0.0
  %2556 = vmatprep.subr.mxu0 0.0
  %2557 = vmatpush1.msra.mxu0 0.0
  %2558 = vmatprep.subr.mxu0 0.0
  %2559 = vmatpush1.msra.mxu0 0.0
  %2560 = vmatprep.subr.mxu0 0.0
  %2561 = vmatpush1.msra.mxu0 0.0
  %2562 = vmatprep.subr.mxu0 0.0
  %2563 = vmatpush1.msra.mxu0 0.0
  %2564 = vmatprep.subr.mxu0 0.0
  %2565 = vmatpush1.msra.mxu0 0.0
  %2566 = vmatprep.subr.mxu0 0.0
  %2567 = vmatpush1.msra.mxu0 0.0
  %2568 = vmatprep.subr.mxu0 0.0
  %2569 = vmatpush1.msra.mxu0 0.0
  %2570 = vmatprep.subr.mxu0 0.0
  %2571 = vmatpush1.msra.mxu0 0.0
  %2572 = vmatprep.mubr.f32.mxu0 0.0
  %2573 = vmatmul.mubr.f32.gmra.mrb[0].mxu0 %v2506
  %v2574 = vpop.f32.mrb[0].mxu0
  %v2575 = vadd.f32 %v573, %v2574
  %v2576 = vpop.f32.mrb[0].mxu0
  %v2577 = vadd.f32 %v577, %v2576
  %2578 = vdwg.mxu0
  %2579 = vmatprep.subr.mxu0 %v539
  %2580 = vmatpush1.msra.mxu0 %v538
  %2581 = vmatprep.subr.mxu0 %v543
  %2582 = vmatpush1.msra.mxu0 %v542
  %2583 = vmatprep.subr.mxu0 %v547
  %2584 = vmatpush1.msra.mxu0 %v546
  %2585 = vmatprep.subr.mxu0 %v551
  %2586 = vmatpush1.msra.mxu0 %v550
  %2587 = vmatprep.subr.mxu0 %v555
  %2588 = vmatpush1.msra.mxu0 %v554
  %2589 = vmatprep.subr.mxu0 %v559
  %2590 = vmatpush1.msra.mxu0 %v558
  %2591 = vmatprep.subr.mxu0 %v563
  %2592 = vmatpush1.msra.mxu0 %v562
  %2593 = vmatprep.subr.mxu0 %v567
  %2594 = vmatpush1.msra.mxu0 %v566
  %2595 = vmatprep.subr.mxu0 0.0
  %2596 = vmatpush1.msra.mxu0 0.0
  %2597 = vmatprep.subr.mxu0 0.0
  %2598 = vmatpush1.msra.mxu0 0.0
  %2599 = vmatprep.subr.mxu0 0.0
  %2600 = vmatpush1.msra.mxu0 0.0
  %2601 = vmatprep.subr.mxu0 0.0
  %2602 = vmatpush1.msra.mxu0 0.0
  %2603 = vmatprep.subr.mxu0 0.0
  %2604 = vmatpush1.msra.mxu0 0.0
  %2605 = vmatprep.subr.mxu0 0.0
  %2606 = vmatpush1.msra.mxu0 0.0
  %2607 = vmatprep.subr.mxu0 0.0
  %2608 = vmatpush1.msra.mxu0 0.0
  %2609 = vmatprep.subr.mxu0 0.0
  %2610 = vmatpush1.msra.mxu0 0.0
  %2611 = vmatprep.subr.mxu0 0.0
  %2612 = vmatpush1.msra.mxu0 0.0
  %2613 = vmatprep.subr.mxu0 0.0
  %2614 = vmatpush1.msra.mxu0 0.0
  %2615 = vmatprep.subr.mxu0 0.0
  %2616 = vmatpush1.msra.mxu0 0.0
  %2617 = vmatprep.subr.mxu0 0.0
  %2618 = vmatpush1.msra.mxu0 0.0
  %2619 = vmatprep.subr.mxu0 0.0
  %2620 = vmatpush1.msra.mxu0 0.0
  %2621 = vmatprep.subr.mxu0 0.0
  %2622 = vmatpush1.msra.mxu0 0.0
  %2623 = vmatprep.subr.mxu0 0.0
  %2624 = vmatpush1.msra.mxu0 0.0
  %2625 = vmatprep.subr.mxu0 0.0
  %2626 = vmatpush1.msra.mxu0 0.0
  %2627 = vmatprep.subr.mxu0 0.0
  %2628 = vmatpush1.msra.mxu0 0.0
  %2629 = vmatprep.subr.mxu0 0.0
  %2630 = vmatpush1.msra.mxu0 0.0
  %2631 = vmatprep.subr.mxu0 0.0
  %2632 = vmatpush1.msra.mxu0 0.0
  %2633 = vmatprep.subr.mxu0 0.0
  %2634 = vmatpush1.msra.mxu0 0.0
  %2635 = vmatprep.subr.mxu0 0.0
  %2636 = vmatpush1.msra.mxu0 0.0
  %2637 = vmatprep.subr.mxu0 0.0
  %2638 = vmatpush1.msra.mxu0 0.0
  %2639 = vmatprep.subr.mxu0 0.0
  %2640 = vmatpush1.msra.mxu0 0.0
  %2641 = vmatprep.subr.mxu0 0.0
  %2642 = vmatpush1.msra.mxu0 0.0
  %2643 = vmatprep.mubr.f32.mxu0 0.0
  %2644 = vmatmul.mubr.f32.gmra.mrb[0].mxu0 %v2506
  %v2645 = vpop.f32.mrb[0].mxu0
  %v2646 = vadd.f32 %v581, %v2645
  %v2647 = vpop.f32.mrb[0].mxu0
  %v2648 = vadd.f32 %v585, %v2647
  %2649 = vdwg.mxu0
  %v2650 = vxor.u32 %v2575, 2147483648
  %v2651 = vmul.f32 %v2650, 1.442695
  %v2652 = vpow.pop %v2651
  %v2653 = vadd.f32 %v2652, 1.0
  %v2654 = vrcp.pop %v2653
  %v2655 = vmul.f32 1.0, %v2654
  %v2656 = vxor.u32 %v2577, 2147483648
  %v2657 = vmul.f32 %v2656, 1.442695
  %v2658 = vpow.pop %v2657
  %v2659 = vadd.f32 %v2658, 1.0
  %v2660 = vrcp.pop %v2659
  %v2661 = vmul.f32 1.0, %v2660
  %v2662 = vtanh.pop %v2646
  %v2663 = vxor.u32 %v2648, 2147483648
  %v2664 = vmul.f32 %v2663, 1.442695
  %v2665 = vpow.pop %v2664
  %v2666 = vadd.f32 %v2665, 1.0
  %v2667 = vrcp.pop %v2666
  %v2668 = vmul.f32 1.0, %v2667
  %v2669 = vmul.f32 %v2661, %v2324
  %v2670 = vmul.f32 %v2655, %v2662
  %v2671 = vadd.f32 %v2669, %v2670
  %v2672 = vtanh.pop %v2671
  %v2673 = vmul.f32 %v2668, %v2672
  %v2675 = vsel %vm590, %v2499, 0
  %2677 = vmatprep.subr.mxu0 %v521
  %2678 = vmatpush1.msra.mxu0 %v520
  %2679 = vmatprep.subr.mxu0 %v525
  %2680 = vmatpush1.msra.mxu0 %v524
  %2681 = vmatprep.subr.mxu0 %v529
  %2682 = vmatpush1.msra.mxu0 %v528
  %2683 = vmatprep.subr.mxu0 %v533
  %2684 = vmatpush1.msra.mxu0 %v532
  %2685 = vmatprep.subr.mxu0 0.0
  %2686 = vmatpush1.msra.mxu0 0.0
  %2687 = vmatprep.subr.mxu0 0.0
  %2688 = vmatpush1.msra.mxu0 0.0
  %2689 = vmatprep.subr.mxu0 0.0
  %2690 = vmatpush1.msra.mxu0 0.0
  %2691 = vmatprep.subr.mxu0 0.0
  %2692 = vmatpush1.msra.mxu0 0.0
  %2693 = vmatprep.subr.mxu0 0.0
  %2694 = vmatpush1.msra.mxu0 0.0
  %2695 = vmatprep.subr.mxu0 0.0
  %2696 = vmatpush1.msra.mxu0 0.0
  %2697 = vmatprep.subr.mxu0 0.0
  %2698 = vmatpush1.msra.mxu0 0.0
  %2699 = vmatprep.subr.mxu0 0.0
  %2700 = vmatpush1.msra.mxu0 0.0
  %2701 = vmatprep.subr.mxu0 0.0
  %2702 = vmatpush1.msra.mxu0 0.0
  %2703 = vmatprep.subr.mxu0 0.0
  %2704 = vmatpush1.msra.mxu0 0.0
  %2705 = vmatprep.subr.mxu0 0.0
  %2706 = vmatpush1.msra.mxu0 0.0
  %2707 = vmatprep.subr.mxu0 0.0
  %2708 = vmatpush1.msra.mxu0 0.0
  %2709 = vmatprep.subr.mxu0 0.0
  %2710 = vmatpush1.msra.mxu0 0.0
  %2711 = vmatprep.subr.mxu0 0.0
  %2712 = vmatpush1.msra.mxu0 0.0
  %2713 = vmatprep.subr.mxu0 0.0
  %2714 = vmatpush1.msra.mxu0 0.0
  %2715 = vmatprep.subr.mxu0 0.0
  %2716 = vmatpush1.msra.mxu0 0.0
  %2717 = vmatprep.subr.mxu0 0.0
  %2718 = vmatpush1.msra.mxu0 0.0
  %2719 = vmatprep.subr.mxu0 0.0
  %2720 = vmatpush1.msra.mxu0 0.0
  %2721 = vmatprep.subr.mxu0 0.0
  %2722 = vmatpush1.msra.mxu0 0.0
  %2723 = vmatprep.subr.mxu0 0.0
  %2724 = vmatpush1.msra.mxu0 0.0
  %2725 = vmatprep.subr.mxu0 0.0
  %2726 = vmatpush1.msra.mxu0 0.0
  %2727 = vmatprep.subr.mxu0 0.0
  %2728 = vmatpush1.msra.mxu0 0.0
  %2729 = vmatprep.subr.mxu0 0.0
  %2730 = vmatpush1.msra.mxu0 0.0
  %2731 = vmatprep.subr.mxu0 0.0
  %2732 = vmatpush1.msra.mxu0 0.0
  %2733 = vmatprep.subr.mxu0 0.0
  %2734 = vmatpush1.msra.mxu0 0.0
  %2735 = vmatprep.subr.mxu0 0.0
  %2736 = vmatpush1.msra.mxu0 0.0
  %2737 = vmatprep.subr.mxu0 0.0
  %2738 = vmatpush1.msra.mxu0 0.0
  %2739 = vmatprep.subr.mxu0 0.0
  %2740 = vmatpush1.msra.mxu0 0.0
  %2741 = vmatprep.mubr.f32.mxu0 0.0
  %2742 = vmatmul.mubr.f32.gmra.mrb[0].mxu0 %v2675
  %v2743 = vpop.f32.mrb[0].mxu0
  %v2744 = vadd.f32 0.0, %v2743
  %v2745 = vpop.f32.mrb[0].mxu0
  %v2746 = vadd.f32 0.0, %v2745
  %2747 = vdwg.mxu0
  %2748 = vmatprep.subr.mxu0 %v523
  %2749 = vmatpush1.msra.mxu0 %v522
  %2750 = vmatprep.subr.mxu0 %v527
  %2751 = vmatpush1.msra.mxu0 %v526
  %2752 = vmatprep.subr.mxu0 %v531
  %2753 = vmatpush1.msra.mxu0 %v530
  %2754 = vmatprep.subr.mxu0 %v535
  %2755 = vmatpush1.msra.mxu0 %v534
  %2756 = vmatprep.subr.mxu0 0.0
  %2757 = vmatpush1.msra.mxu0 0.0
  %2758 = vmatprep.subr.mxu0 0.0
  %2759 = vmatpush1.msra.mxu0 0.0
  %2760 = vmatprep.subr.mxu0 0.0
  %2761 = vmatpush1.msra.mxu0 0.0
  %2762 = vmatprep.subr.mxu0 0.0
  %2763 = vmatpush1.msra.mxu0 0.0
  %2764 = vmatprep.subr.mxu0 0.0
  %2765 = vmatpush1.msra.mxu0 0.0
  %2766 = vmatprep.subr.mxu0 0.0
  %2767 = vmatpush1.msra.mxu0 0.0
  %2768 = vmatprep.subr.mxu0 0.0
  %2769 = vmatpush1.msra.mxu0 0.0
  %2770 = vmatprep.subr.mxu0 0.0
  %2771 = vmatpush1.msra.mxu0 0.0
  %2772 = vmatprep.subr.mxu0 0.0
  %2773 = vmatpush1.msra.mxu0 0.0
  %2774 = vmatprep.subr.mxu0 0.0
  %2775 = vmatpush1.msra.mxu0 0.0
  %2776 = vmatprep.subr.mxu0 0.0
  %2777 = vmatpush1.msra.mxu0 0.0
  %2778 = vmatprep.subr.mxu0 0.0
  %2779 = vmatpush1.msra.mxu0 0.0
  %2780 = vmatprep.subr.mxu0 0.0
  %2781 = vmatpush1.msra.mxu0 0.0
  %2782 = vmatprep.subr.mxu0 0.0
  %2783 = vmatpush1.msra.mxu0 0.0
  %2784 = vmatprep.subr.mxu0 0.0
  %2785 = vmatpush1.msra.mxu0 0.0
  %2786 = vmatprep.subr.mxu0 0.0
  %2787 = vmatpush1.msra.mxu0 0.0
  %2788 = vmatprep.subr.mxu0 0.0
  %2789 = vmatpush1.msra.mxu0 0.0
  %2790 = vmatprep.subr.mxu0 0.0
  %2791 = vmatpush1.msra.mxu0 0.0
  %2792 = vmatprep.subr.mxu0 0.0
  %2793 = vmatpush1.msra.mxu0 0.0
  %2794 = vmatprep.subr.mxu0 0.0
  %2795 = vmatpush1.msra.mxu0 0.0
  %2796 = vmatprep.subr.mxu0 0.0
  %2797 = vmatpush1.msra.mxu0 0.0
  %2798 = vmatprep.subr.mxu0 0.0
  %2799 = vmatpush1.msra.mxu0 0.0
  %2800 = vmatprep.subr.mxu0 0.0
  %2801 = vmatpush1.msra.mxu0 0.0
  %2802 = vmatprep.subr.mxu0 0.0
  %2803 = vmatpush1.msra.mxu0 0.0
  %2804 = vmatprep.subr.mxu0 0.0
  %2805 = vmatpush1.msra.mxu0 0.0
  %2806 = vmatprep.subr.mxu0 0.0
  %2807 = vmatpush1.msra.mxu0 0.0
  %2808 = vmatprep.subr.mxu0 0.0
  %2809 = vmatpush1.msra.mxu0 0.0
  %2810 = vmatprep.subr.mxu0 0.0
  %2811 = vmatpush1.msra.mxu0 0.0
  %2812 = vmatprep.mubr.f32.mxu0 0.0
  %2813 = vmatmul.mubr.f32.gmra.mrb[0].mxu0 %v2675
  %v2814 = vpop.f32.mrb[0].mxu0
  %v2815 = vadd.f32 0.0, %v2814
  %v2816 = vpop.f32.mrb[0].mxu0
  %v2817 = vadd.f32 0.0, %v2816
  %2818 = vdwg.mxu0
  %v2819 = vadd.f32 %v397, %v2744
  %v2820 = vadd.f32 %v399, %v2746
  %v2821 = vadd.f32 %v510, %v2815
  %v2822 = vadd.f32 %v512, %v2817
  %v2823 = vxor.u32 %v2819, 2147483648
  %v2824 = vmul.f32 %v2823, 1.442695
  %v2825 = vpow.pop %v2824
  %v2826 = vadd.f32 %v2825, 1.0
  %v2827 = vrcp.pop %v2826
  %v2828 = vmul.f32 1.0, %v2827
  %v2829 = vxor.u32 %v2820, 2147483648
  %v2830 = vmul.f32 %v2829, 1.442695
  %v2831 = vpow.pop %v2830
  %v2832 = vadd.f32 %v2831, 1.0
  %v2833 = vrcp.pop %v2832
  %v2834 = vmul.f32 1.0, %v2833
  %v2835 = vtanh.pop %v2821
  %v2836 = vxor.u32 %v2822, 2147483648
  %v2837 = vmul.f32 %v2836, 1.442695
  %v2838 = vpow.pop %v2837
  %v2839 = vadd.f32 %v2838, 1.0
  %v2840 = vrcp.pop %v2839
  %v2841 = vmul.f32 1.0, %v2840
  %v2842 = vmul.f32 %v2834, %v2497
  %v2843 = vmul.f32 %v2828, %v2835
  %v2844 = vadd.f32 %v2842, %v2843
  %v2845 = vtanh.pop %v2844
  %v2846 = vmul.f32 %v2841, %v2845
  %2848 = vrot.lane.b32.xlu0 %v2673, 32
  %v2849 = vpop.permute.xlu0 %2848
  %v2851 = vsel %vm590, %v2846, %v2849
  %v2853 = vsel %vm769, %v2851, 0
  %2855 = vmatprep.subr.mxu0 %v537
  %2856 = vmatpush1.msra.mxu0 %v536
  %2857 = vmatprep.subr.mxu0 %v541
  %2858 = vmatpush1.msra.mxu0 %v540
  %2859 = vmatprep.subr.mxu0 %v545
  %2860 = vmatpush1.msra.mxu0 %v544
  %2861 = vmatprep.subr.mxu0 %v549
  %2862 = vmatpush1.msra.mxu0 %v548
  %2863 = vmatprep.subr.mxu0 %v553
  %2864 = vmatpush1.msra.mxu0 %v552
  %2865 = vmatprep.subr.mxu0 %v557
  %2866 = vmatpush1.msra.mxu0 %v556
  %2867 = vmatprep.subr.mxu0 %v561
  %2868 = vmatpush1.msra.mxu0 %v560
  %2869 = vmatprep.subr.mxu0 %v565
  %2870 = vmatpush1.msra.mxu0 %v564
  %2871 = vmatprep.subr.mxu0 0.0
  %2872 = vmatpush1.msra.mxu0 0.0
  %2873 = vmatprep.subr.mxu0 0.0
  %2874 = vmatpush1.msra.mxu0 0.0
  %2875 = vmatprep.subr.mxu0 0.0
  %2876 = vmatpush1.msra.mxu0 0.0
  %2877 = vmatprep.subr.mxu0 0.0
  %2878 = vmatpush1.msra.mxu0 0.0
  %2879 = vmatprep.subr.mxu0 0.0
  %2880 = vmatpush1.msra.mxu0 0.0
  %2881 = vmatprep.subr.mxu0 0.0
  %2882 = vmatpush1.msra.mxu0 0.0
  %2883 = vmatprep.subr.mxu0 0.0
  %2884 = vmatpush1.msra.mxu0 0.0
  %2885 = vmatprep.subr.mxu0 0.0
  %2886 = vmatpush1.msra.mxu0 0.0
  %2887 = vmatprep.subr.mxu0 0.0
  %2888 = vmatpush1.msra.mxu0 0.0
  %2889 = vmatprep.subr.mxu0 0.0
  %2890 = vmatpush1.msra.mxu0 0.0
  %2891 = vmatprep.subr.mxu0 0.0
  %2892 = vmatpush1.msra.mxu0 0.0
  %2893 = vmatprep.subr.mxu0 0.0
  %2894 = vmatpush1.msra.mxu0 0.0
  %2895 = vmatprep.subr.mxu0 0.0
  %2896 = vmatpush1.msra.mxu0 0.0
  %2897 = vmatprep.subr.mxu0 0.0
  %2898 = vmatpush1.msra.mxu0 0.0
  %2899 = vmatprep.subr.mxu0 0.0
  %2900 = vmatpush1.msra.mxu0 0.0
  %2901 = vmatprep.subr.mxu0 0.0
  %2902 = vmatpush1.msra.mxu0 0.0
  %2903 = vmatprep.subr.mxu0 0.0
  %2904 = vmatpush1.msra.mxu0 0.0
  %2905 = vmatprep.subr.mxu0 0.0
  %2906 = vmatpush1.msra.mxu0 0.0
  %2907 = vmatprep.subr.mxu0 0.0
  %2908 = vmatpush1.msra.mxu0 0.0
  %2909 = vmatprep.subr.mxu0 0.0
  %2910 = vmatpush1.msra.mxu0 0.0
  %2911 = vmatprep.subr.mxu0 0.0
  %2912 = vmatpush1.msra.mxu0 0.0
  %2913 = vmatprep.subr.mxu0 0.0
  %2914 = vmatpush1.msra.mxu0 0.0
  %2915 = vmatprep.subr.mxu0 0.0
  %2916 = vmatpush1.msra.mxu0 0.0
  %2917 = vmatprep.subr.mxu0 0.0
  %2918 = vmatpush1.msra.mxu0 0.0
  %2919 = vmatprep.mubr.f32.mxu0 0.0
  %2920 = vmatmul.mubr.f32.gmra.mrb[0].mxu0 %v2853
  %v2921 = vpop.f32.mrb[0].mxu0
  %v2922 = vadd.f32 %v573, %v2921
  %v2923 = vpop.f32.mrb[0].mxu0
  %v2924 = vadd.f32 %v577, %v2923
  %2925 = vdwg.mxu0
  %2926 = vmatprep.subr.mxu0 %v539
  %2927 = vmatpush1.msra.mxu0 %v538
  %2928 = vmatprep.subr.mxu0 %v543
  %2929 = vmatpush1.msra.mxu0 %v542
  %2930 = vmatprep.subr.mxu0 %v547
  %2931 = vmatpush1.msra.mxu0 %v546
  %2932 = vmatprep.subr.mxu0 %v551
  %2933 = vmatpush1.msra.mxu0 %v550
  %2934 = vmatprep.subr.mxu0 %v555
  %2935 = vmatpush1.msra.mxu0 %v554
  %2936 = vmatprep.subr.mxu0 %v559
  %2937 = vmatpush1.msra.mxu0 %v558
  %2938 = vmatprep.subr.mxu0 %v563
  %2939 = vmatpush1.msra.mxu0 %v562
  %2940 = vmatprep.subr.mxu0 %v567
  %2941 = vmatpush1.msra.mxu0 %v566
  %2942 = vmatprep.subr.mxu0 0.0
  %2943 = vmatpush1.msra.mxu0 0.0
  %2944 = vmatprep.subr.mxu0 0.0
  %2945 = vmatpush1.msra.mxu0 0.0
  %2946 = vmatprep.subr.mxu0 0.0
  %2947 = vmatpush1.msra.mxu0 0.0
  %2948 = vmatprep.subr.mxu0 0.0
  %2949 = vmatpush1.msra.mxu0 0.0
  %2950 = vmatprep.subr.mxu0 0.0
  %2951 = vmatpush1.msra.mxu0 0.0
  %2952 = vmatprep.subr.mxu0 0.0
  %2953 = vmatpush1.msra.mxu0 0.0
  %2954 = vmatprep.subr.mxu0 0.0
  %2955 = vmatpush1.msra.mxu0 0.0
  %2956 = vmatprep.subr.mxu0 0.0
  %2957 = vmatpush1.msra.mxu0 0.0
  %2958 = vmatprep.subr.mxu0 0.0
  %2959 = vmatpush1.msra.mxu0 0.0
  %2960 = vmatprep.subr.mxu0 0.0
  %2961 = vmatpush1.msra.mxu0 0.0
  %2962 = vmatprep.subr.mxu0 0.0
  %2963 = vmatpush1.msra.mxu0 0.0
  %2964 = vmatprep.subr.mxu0 0.0
  %2965 = vmatpush1.msra.mxu0 0.0
  %2966 = vmatprep.subr.mxu0 0.0
  %2967 = vmatpush1.msra.mxu0 0.0
  %2968 = vmatprep.subr.mxu0 0.0
  %2969 = vmatpush1.msra.mxu0 0.0
  %2970 = vmatprep.subr.mxu0 0.0
  %2971 = vmatpush1.msra.mxu0 0.0
  %2972 = vmatprep.subr.mxu0 0.0
  %2973 = vmatpush1.msra.mxu0 0.0
  %2974 = vmatprep.subr.mxu0 0.0
  %2975 = vmatpush1.msra.mxu0 0.0
  %2976 = vmatprep.subr.mxu0 0.0
  %2977 = vmatpush1.msra.mxu0 0.0
  %2978 = vmatprep.subr.mxu0 0.0
  %2979 = vmatpush1.msra.mxu0 0.0
  %2980 = vmatprep.subr.mxu0 0.0
  %2981 = vmatpush1.msra.mxu0 0.0
  %2982 = vmatprep.subr.mxu0 0.0
  %2983 = vmatpush1.msra.mxu0 0.0
  %2984 = vmatprep.subr.mxu0 0.0
  %2985 = vmatpush1.msra.mxu0 0.0
  %2986 = vmatprep.subr.mxu0 0.0
  %2987 = vmatpush1.msra.mxu0 0.0
  %2988 = vmatprep.subr.mxu0 0.0
  %2989 = vmatpush1.msra.mxu0 0.0
  %2990 = vmatprep.mubr.f32.mxu0 0.0
  %2991 = vmatmul.mubr.f32.gmra.mrb[0].mxu0 %v2853
  %v2992 = vpop.f32.mrb[0].mxu0
  %v2993 = vadd.f32 %v581, %v2992
  %v2994 = vpop.f32.mrb[0].mxu0
  %v2995 = vadd.f32 %v585, %v2994
  %2996 = vdwg.mxu0
  %v2997 = vxor.u32 %v2922, 2147483648
  %v2998 = vmul.f32 %v2997, 1.442695
  %v2999 = vpow.pop %v2998
  %v3000 = vadd.f32 %v2999, 1.0
  %v3001 = vrcp.pop %v3000
  %v3002 = vmul.f32 1.0, %v3001
  %v3003 = vxor.u32 %v2924, 2147483648
  %v3004 = vmul.f32 %v3003, 1.442695
  %v3005 = vpow.pop %v3004
  %v3006 = vadd.f32 %v3005, 1.0
  %v3007 = vrcp.pop %v3006
  %v3008 = vmul.f32 1.0, %v3007
  %v3009 = vtanh.pop %v2993
  %v3010 = vxor.u32 %v2995, 2147483648
  %v3011 = vmul.f32 %v3010, 1.442695
  %v3012 = vpow.pop %v3011
  %v3013 = vadd.f32 %v3012, 1.0
  %v3014 = vrcp.pop %v3013
  %v3015 = vmul.f32 1.0, %v3014
  %v3016 = vmul.f32 %v3008, %v2671
  %v3017 = vmul.f32 %v3002, %v3009
  %v3018 = vadd.f32 %v3016, %v3017
  %v3019 = vtanh.pop %v3018
  %v3020 = vmul.f32 %v3015, %v3019
  %v3022 = vsel %vm590, %v2846, 0
  %3024 = vmatprep.subr.mxu0 %v521
  %3025 = vmatpush1.msra.mxu0 %v520
  %3026 = vmatprep.subr.mxu0 %v525
  %3027 = vmatpush1.msra.mxu0 %v524
  %3028 = vmatprep.subr.mxu0 %v529
  %3029 = vmatpush1.msra.mxu0 %v528
  %3030 = vmatprep.subr.mxu0 %v533
  %3031 = vmatpush1.msra.mxu0 %v532
  %3032 = vmatprep.subr.mxu0 0.0
  %3033 = vmatpush1.msra.mxu0 0.0
  %3034 = vmatprep.subr.mxu0 0.0
  %3035 = vmatpush1.msra.mxu0 0.0
  %3036 = vmatprep.subr.mxu0 0.0
  %3037 = vmatpush1.msra.mxu0 0.0
  %3038 = vmatprep.subr.mxu0 0.0
  %3039 = vmatpush1.msra.mxu0 0.0
  %3040 = vmatprep.subr.mxu0 0.0
  %3041 = vmatpush1.msra.mxu0 0.0
  %3042 = vmatprep.subr.mxu0 0.0
  %3043 = vmatpush1.msra.mxu0 0.0
  %3044 = vmatprep.subr.mxu0 0.0
  %3045 = vmatpush1.msra.mxu0 0.0
  %3046 = vmatprep.subr.mxu0 0.0
  %3047 = vmatpush1.msra.mxu0 0.0
  %3048 = vmatprep.subr.mxu0 0.0
  %3049 = vmatpush1.msra.mxu0 0.0
  %3050 = vmatprep.subr.mxu0 0.0
  %3051 = vmatpush1.msra.mxu0 0.0
  %3052 = vmatprep.subr.mxu0 0.0
  %3053 = vmatpush1.msra.mxu0 0.0
  %3054 = vmatprep.subr.mxu0 0.0
  %3055 = vmatpush1.msra.mxu0 0.0
  %3056 = vmatprep.subr.mxu0 0.0
  %3057 = vmatpush1.msra.mxu0 0.0
  %3058 = vmatprep.subr.mxu0 0.0
  %3059 = vmatpush1.msra.mxu0 0.0
  %3060 = vmatprep.subr.mxu0 0.0
  %3061 = vmatpush1.msra.mxu0 0.0
  %3062 = vmatprep.subr.mxu0 0.0
  %3063 = vmatpush1.msra.mxu0 0.0
  %3064 = vmatprep.subr.mxu0 0.0
  %3065 = vmatpush1.msra.mxu0 0.0
  %3066 = vmatprep.subr.mxu0 0.0
  %3067 = vmatpush1.msra.mxu0 0.0
  %3068 = vmatprep.subr.mxu0 0.0
  %3069 = vmatpush1.msra.mxu0 0.0
  %3070 = vmatprep.subr.mxu0 0.0
  %3071 = vmatpush1.msra.mxu0 0.0
  %3072 = vmatprep.subr.mxu0 0.0
  %3073 = vmatpush1.msra.mxu0 0.0
  %3074 = vmatprep.subr.mxu0 0.0
  %3075 = vmatpush1.msra.mxu0 0.0
  %3076 = vmatprep.subr.mxu0 0.0
  %3077 = vmatpush1.msra.mxu0 0.0
  %3078 = vmatprep.subr.mxu0 0.0
  %3079 = vmatpush1.msra.mxu0 0.0
  %3080 = vmatprep.subr.mxu0 0.0
  %3081 = vmatpush1.msra.mxu0 0.0
  %3082 = vmatprep.subr.mxu0 0.0
  %3083 = vmatpush1.msra.mxu0 0.0
  %3084 = vmatprep.subr.mxu0 0.0
  %3085 = vmatpush1.msra.mxu0 0.0
  %3086 = vmatprep.subr.mxu0 0.0
  %3087 = vmatpush1.msra.mxu0 0.0
  %3088 = vmatprep.mubr.f32.mxu0 0.0
  %3089 = vmatmul.mubr.f32.gmra.mrb[0].mxu0 %v3022
  %v3090 = vpop.f32.mrb[0].mxu0
  %v3091 = vadd.f32 0.0, %v3090
  %v3092 = vpop.f32.mrb[0].mxu0
  %v3093 = vadd.f32 0.0, %v3092
  %3094 = vdwg.mxu0
  %3095 = vmatprep.subr.mxu0 %v523
  %3096 = vmatpush1.msra.mxu0 %v522
  %3097 = vmatprep.subr.mxu0 %v527
  %3098 = vmatpush1.msra.mxu0 %v526
  %3099 = vmatprep.subr.mxu0 %v531
  %3100 = vmatpush1.msra.mxu0 %v530
  %3101 = vmatprep.subr.mxu0 %v535
  %3102 = vmatpush1.msra.mxu0 %v534
  %3103 = vmatprep.subr.mxu0 0.0
  %3104 = vmatpush1.msra.mxu0 0.0
  %3105 = vmatprep.subr.mxu0 0.0
  %3106 = vmatpush1.msra.mxu0 0.0
  %3107 = vmatprep.subr.mxu0 0.0
  %3108 = vmatpush1.msra.mxu0 0.0
  %3109 = vmatprep.subr.mxu0 0.0
  %3110 = vmatpush1.msra.mxu0 0.0
  %3111 = vmatprep.subr.mxu0 0.0
  %3112 = vmatpush1.msra.mxu0 0.0
  %3113 = vmatprep.subr.mxu0 0.0
  %3114 = vmatpush1.msra.mxu0 0.0
  %3115 = vmatprep.subr.mxu0 0.0
  %3116 = vmatpush1.msra.mxu0 0.0
  %3117 = vmatprep.subr.mxu0 0.0
  %3118 = vmatpush1.msra.mxu0 0.0
  %3119 = vmatprep.subr.mxu0 0.0
  %3120 = vmatpush1.msra.mxu0 0.0
  %3121 = vmatprep.subr.mxu0 0.0
  %3122 = vmatpush1.msra.mxu0 0.0
  %3123 = vmatprep.subr.mxu0 0.0
  %3124 = vmatpush1.msra.mxu0 0.0
  %3125 = vmatprep.subr.mxu0 0.0
  %3126 = vmatpush1.msra.mxu0 0.0
  %3127 = vmatprep.subr.mxu0 0.0
  %3128 = vmatpush1.msra.mxu0 0.0
  %3129 = vmatprep.subr.mxu0 0.0
  %3130 = vmatpush1.msra.mxu0 0.0
  %3131 = vmatprep.subr.mxu0 0.0
  %3132 = vmatpush1.msra.mxu0 0.0
  %3133 = vmatprep.subr.mxu0 0.0
  %3134 = vmatpush1.msra.mxu0 0.0
  %3135 = vmatprep.subr.mxu0 0.0
  %3136 = vmatpush1.msra.mxu0 0.0
  %3137 = vmatprep.subr.mxu0 0.0
  %3138 = vmatpush1.msra.mxu0 0.0
  %3139 = vmatprep.subr.mxu0 0.0
  %3140 = vmatpush1.msra.mxu0 0.0
  %3141 = vmatprep.subr.mxu0 0.0
  %3142 = vmatpush1.msra.mxu0 0.0
  %3143 = vmatprep.subr.mxu0 0.0
  %3144 = vmatpush1.msra.mxu0 0.0
  %3145 = vmatprep.subr.mxu0 0.0
  %3146 = vmatpush1.msra.mxu0 0.0
  %3147 = vmatprep.subr.mxu0 0.0
  %3148 = vmatpush1.msra.mxu0 0.0
  %3149 = vmatprep.subr.mxu0 0.0
  %3150 = vmatpush1.msra.mxu0 0.0
  %3151 = vmatprep.subr.mxu0 0.0
  %3152 = vmatpush1.msra.mxu0 0.0
  %3153 = vmatprep.subr.mxu0 0.0
  %3154 = vmatpush1.msra.mxu0 0.0
  %3155 = vmatprep.subr.mxu0 0.0
  %3156 = vmatpush1.msra.mxu0 0.0
  %3157 = vmatprep.subr.mxu0 0.0
  %3158 = vmatpush1.msra.mxu0 0.0
  %3159 = vmatprep.mubr.f32.mxu0 0.0
  %3160 = vmatmul.mubr.f32.gmra.mrb[0].mxu0 %v3022
  %v3161 = vpop.f32.mrb[0].mxu0
  %v3162 = vadd.f32 0.0, %v3161
  %v3163 = vpop.f32.mrb[0].mxu0
  %v3164 = vadd.f32 0.0, %v3163
  %3165 = vdwg.mxu0
  %v3166 = vadd.f32 %v403, %v3091
  %v3167 = vadd.f32 %v405, %v3093
  %v3168 = vadd.f32 %v516, %v3162
  %v3169 = vadd.f32 %v518, %v3164
  %v3170 = vxor.u32 %v3166, 2147483648
  %v3171 = vmul.f32 %v3170, 1.442695
  %v3172 = vpow.pop %v3171
  %v3173 = vadd.f32 %v3172, 1.0
  %v3174 = vrcp.pop %v3173
  %v3175 = vmul.f32 1.0, %v3174
  %v3176 = vxor.u32 %v3167, 2147483648
  %v3177 = vmul.f32 %v3176, 1.442695
  %v3178 = vpow.pop %v3177
  %v3179 = vadd.f32 %v3178, 1.0
  %v3180 = vrcp.pop %v3179
  %v3181 = vmul.f32 1.0, %v3180
  %v3182 = vtanh.pop %v3168
  %v3183 = vxor.u32 %v3169, 2147483648
  %v3184 = vmul.f32 %v3183, 1.442695
  %v3185 = vpow.pop %v3184
  %v3186 = vadd.f32 %v3185, 1.0
  %v3187 = vrcp.pop %v3186
  %v3188 = vmul.f32 1.0, %v3187
  %v3189 = vmul.f32 %v3181, %v2844
  %v3190 = vmul.f32 %v3175, %v3182
  %v3191 = vadd.f32 %v3189, %v3190
  %v3192 = vtanh.pop %v3191
  %v3193 = vmul.f32 %v3188, %v3192
  %3195 = vrot.lane.b32.xlu0 %v3020, 32
  %v3196 = vpop.permute.xlu0 %3195
  %v3198 = vsel %vm590, %v3193, %v3196
  %v3200 = vsel %vm769, %v3198, 0
  %3202 = vmatprep.subr.mxu0 %v537
  %3203 = vmatpush1.msra.mxu0 %v536
  %3204 = vmatprep.subr.mxu0 %v541
  %3205 = vmatpush1.msra.mxu0 %v540
  %3206 = vmatprep.subr.mxu0 %v545
  %3207 = vmatpush1.msra.mxu0 %v544
  %3208 = vmatprep.subr.mxu0 %v549
  %3209 = vmatpush1.msra.mxu0 %v548
  %3210 = vmatprep.subr.mxu0 %v553
  %3211 = vmatpush1.msra.mxu0 %v552
  %3212 = vmatprep.subr.mxu0 %v557
  %3213 = vmatpush1.msra.mxu0 %v556
  %3214 = vmatprep.subr.mxu0 %v561
  %3215 = vmatpush1.msra.mxu0 %v560
  %3216 = vmatprep.subr.mxu0 %v565
  %3217 = vmatpush1.msra.mxu0 %v564
  %3218 = vmatprep.subr.mxu0 0.0
  %3219 = vmatpush1.msra.mxu0 0.0
  %3220 = vmatprep.subr.mxu0 0.0
  %3221 = vmatpush1.msra.mxu0 0.0
  %3222 = vmatprep.subr.mxu0 0.0
  %3223 = vmatpush1.msra.mxu0 0.0
  %3224 = vmatprep.subr.mxu0 0.0
  %3225 = vmatpush1.msra.mxu0 0.0
  %3226 = vmatprep.subr.mxu0 0.0
  %3227 = vmatpush1.msra.mxu0 0.0
  %3228 = vmatprep.subr.mxu0 0.0
  %3229 = vmatpush1.msra.mxu0 0.0
  %3230 = vmatprep.subr.mxu0 0.0
  %3231 = vmatpush1.msra.mxu0 0.0
  %3232 = vmatprep.subr.mxu0 0.0
  %3233 = vmatpush1.msra.mxu0 0.0
  %3234 = vmatprep.subr.mxu0 0.0
  %3235 = vmatpush1.msra.mxu0 0.0
  %3236 = vmatprep.subr.mxu0 0.0
  %3237 = vmatpush1.msra.mxu0 0.0
  %3238 = vmatprep.subr.mxu0 0.0
  %3239 = vmatpush1.msra.mxu0 0.0
  %3240 = vmatprep.subr.mxu0 0.0
  %3241 = vmatpush1.msra.mxu0 0.0
  %3242 = vmatprep.subr.mxu0 0.0
  %3243 = vmatpush1.msra.mxu0 0.0
  %3244 = vmatprep.subr.mxu0 0.0
  %3245 = vmatpush1.msra.mxu0 0.0
  %3246 = vmatprep.subr.mxu0 0.0
  %3247 = vmatpush1.msra.mxu0 0.0
  %3248 = vmatprep.subr.mxu0 0.0
  %3249 = vmatpush1.msra.mxu0 0.0
  %3250 = vmatprep.subr.mxu0 0.0
  %3251 = vmatpush1.msra.mxu0 0.0
  %3252 = vmatprep.subr.mxu0 0.0
  %3253 = vmatpush1.msra.mxu0 0.0
  %3254 = vmatprep.subr.mxu0 0.0
  %3255 = vmatpush1.msra.mxu0 0.0
  %3256 = vmatprep.subr.mxu0 0.0
  %3257 = vmatpush1.msra.mxu0 0.0
  %3258 = vmatprep.subr.mxu0 0.0
  %3259 = vmatpush1.msra.mxu0 0.0
  %3260 = vmatprep.subr.mxu0 0.0
  %3261 = vmatpush1.msra.mxu0 0.0
  %3262 = vmatprep.subr.mxu0 0.0
  %3263 = vmatpush1.msra.mxu0 0.0
  %3264 = vmatprep.subr.mxu0 0.0
  %3265 = vmatpush1.msra.mxu0 0.0
  %3266 = vmatprep.mubr.f32.mxu0 0.0
  %3267 = vmatmul.mubr.f32.gmra.mrb[0].mxu0 %v3200
  %v3268 = vpop.f32.mrb[0].mxu0
  %v3269 = vadd.f32 %v573, %v3268
  %v3270 = vpop.f32.mrb[0].mxu0
  %v3271 = vadd.f32 %v577, %v3270
  %3272 = vdwg.mxu0
  %3273 = vmatprep.subr.mxu0 %v539
  %3274 = vmatpush1.msra.mxu0 %v538
  %3275 = vmatprep.subr.mxu0 %v543
  %3276 = vmatpush1.msra.mxu0 %v542
  %3277 = vmatprep.subr.mxu0 %v547
  %3278 = vmatpush1.msra.mxu0 %v546
  %3279 = vmatprep.subr.mxu0 %v551
  %3280 = vmatpush1.msra.mxu0 %v550
  %3281 = vmatprep.subr.mxu0 %v555
  %3282 = vmatpush1.msra.mxu0 %v554
  %3283 = vmatprep.subr.mxu0 %v559
  %3284 = vmatpush1.msra.mxu0 %v558
  %3285 = vmatprep.subr.mxu0 %v563
  %3286 = vmatpush1.msra.mxu0 %v562
  %3287 = vmatprep.subr.mxu0 %v567
  %3288 = vmatpush1.msra.mxu0 %v566
  %3289 = vmatprep.subr.mxu0 0.0
  %3290 = vmatpush1.msra.mxu0 0.0
  %3291 = vmatprep.subr.mxu0 0.0
  %3292 = vmatpush1.msra.mxu0 0.0
  %3293 = vmatprep.subr.mxu0 0.0
  %3294 = vmatpush1.msra.mxu0 0.0
  %3295 = vmatprep.subr.mxu0 0.0
  %3296 = vmatpush1.msra.mxu0 0.0
  %3297 = vmatprep.subr.mxu0 0.0
  %3298 = vmatpush1.msra.mxu0 0.0
  %3299 = vmatprep.subr.mxu0 0.0
  %3300 = vmatpush1.msra.mxu0 0.0
  %3301 = vmatprep.subr.mxu0 0.0
  %3302 = vmatpush1.msra.mxu0 0.0
  %3303 = vmatprep.subr.mxu0 0.0
  %3304 = vmatpush1.msra.mxu0 0.0
  %3305 = vmatprep.subr.mxu0 0.0
  %3306 = vmatpush1.msra.mxu0 0.0
  %3307 = vmatprep.subr.mxu0 0.0
  %3308 = vmatpush1.msra.mxu0 0.0
  %3309 = vmatprep.subr.mxu0 0.0
  %3310 = vmatpush1.msra.mxu0 0.0
  %3311 = vmatprep.subr.mxu0 0.0
  %3312 = vmatpush1.msra.mxu0 0.0
  %3313 = vmatprep.subr.mxu0 0.0
  %3314 = vmatpush1.msra.mxu0 0.0
  %3315 = vmatprep.subr.mxu0 0.0
  %3316 = vmatpush1.msra.mxu0 0.0
  %3317 = vmatprep.subr.mxu0 0.0
  %3318 = vmatpush1.msra.mxu0 0.0
  %3319 = vmatprep.subr.mxu0 0.0
  %3320 = vmatpush1.msra.mxu0 0.0
  %3321 = vmatprep.subr.mxu0 0.0
  %3322 = vmatpush1.msra.mxu0 0.0
  %3323 = vmatprep.subr.mxu0 0.0
  %3324 = vmatpush1.msra.mxu0 0.0
  %3325 = vmatprep.subr.mxu0 0.0
  %3326 = vmatpush1.msra.mxu0 0.0
  %3327 = vmatprep.subr.mxu0 0.0
  %3328 = vmatpush1.msra.mxu0 0.0
  %3329 = vmatprep.subr.mxu0 0.0
  %3330 = vmatpush1.msra.mxu0 0.0
  %3331 = vmatprep.subr.mxu0 0.0
  %3332 = vmatpush1.msra.mxu0 0.0
  %3333 = vmatprep.subr.mxu0 0.0
  %3334 = vmatpush1.msra.mxu0 0.0
  %3335 = vmatprep.subr.mxu0 0.0
  %3336 = vmatpush1.msra.mxu0 0.0
  %3337 = vmatprep.mubr.f32.mxu0 0.0
  %3338 = vmatmul.mubr.f32.gmra.mrb[0].mxu0 %v3200
  %v3339 = vpop.f32.mrb[0].mxu0
  %v3340 = vadd.f32 %v581, %v3339
  %v3341 = vpop.f32.mrb[0].mxu0
  %v3342 = vadd.f32 %v585, %v3341
  %3343 = vdwg.mxu0
  %v3344 = vxor.u32 %v3269, 2147483648
  %v3345 = vmul.f32 %v3344, 1.442695
  %v3346 = vpow.pop %v3345
  %v3347 = vadd.f32 %v3346, 1.0
  %v3348 = vrcp.pop %v3347
  %v3349 = vmul.f32 1.0, %v3348
  %v3350 = vxor.u32 %v3271, 2147483648
  %v3351 = vmul.f32 %v3350, 1.442695
  %v3352 = vpow.pop %v3351
  %v3353 = vadd.f32 %v3352, 1.0
  %v3354 = vrcp.pop %v3353
  %v3355 = vmul.f32 1.0, %v3354
  %v3356 = vtanh.pop %v3340
  %v3357 = vxor.u32 %v3342, 2147483648
  %v3358 = vmul.f32 %v3357, 1.442695
  %v3359 = vpow.pop %v3358
  %v3360 = vadd.f32 %v3359, 1.0
  %v3361 = vrcp.pop %v3360
  %v3362 = vmul.f32 1.0, %v3361
  %v3363 = vmul.f32 %v3355, %v3018
  %v3364 = vmul.f32 %v3349, %v3356
  %v3365 = vadd.f32 %v3363, %v3364
  %v3366 = vtanh.pop %v3365
  %v3367 = vmul.f32 %v3362, %v3366
  %3368 = vst [vmem:[%s12] sm:$0xff] %v3193
  %s3369 = scalar_lea.vmem %s12, 8
  %3370 = vst [vmem:[%s3369] sm:$0xff] %v3367
  %3371 = vst [vmem:[%s13] sm:$0xff] %v3191
  %s3372 = scalar_lea.vmem %s13, 8
  %3373 = vst [vmem:[%s3372] sm:$0xff] %v3365
  %v3374 = vld [vmem:[%s9] sm:$0xff]
  %v3375 = vld [vmem:[%s9 + $0x8] sm:$0xff]
  %v3376 = vld [vmem:[%s9 + $0x10] sm:$0xff]
  %v3377 = vld [vmem:[%s9 + $0x18] sm:$0xff]
  %v3378 = vld [vmem:[%s9 + $0x20] sm:$0xff]
  %v3379 = vld [vmem:[%s9 + $0x28] sm:$0xff]
  %v3380 = vld [vmem:[%s9 + $0x30] sm:$0xff]
  %v3381 = vld [vmem:[%s9 + $0x38] sm:$0xff]
  %v3382 = vld [vmem:[%s9 + $0x40] sm:$0xff]
  %v3383 = vld [vmem:[%s9 + $0x48] sm:$0xff]
  %v3384 = vld [vmem:[%s9 + $0x50] sm:$0xff]
  %v3385 = vld [vmem:[%s9 + $0x58] sm:$0xff]
  %v3386 = vld [vmem:[%s9 + $0x60] sm:$0xff]
  %v3387 = vld [vmem:[%s9 + $0x68] sm:$0xff]
  %v3388 = vld [vmem:[%s9 + $0x70] sm:$0xff]
  %v3389 = vld [vmem:[%s9 + $0x78] sm:$0xff]
  %v3390 = vld [vmem:[%s10] sm:$0x1]
  %v3392 = vlaneseq
  %v3393 = vshrl.u32 %v3392, 7
  %v3394 = vsub.s32 0, %v3393
  %v3395 = vrot.slane %v3390, %v3394
  %3397 = vmatprep.subr.mxu0 0.0
  %3398 = vmatpush1.msra.mxu0 %v3374
  %3399 = vmatprep.subr.mxu0 0.0
  %3400 = vmatpush1.msra.mxu0 %v3375
  %3401 = vmatprep.subr.mxu0 0.0
  %3402 = vmatpush1.msra.mxu0 %v3376
  %3403 = vmatprep.subr.mxu0 0.0
  %3404 = vmatpush1.msra.mxu0 %v3377
  %3405 = vmatprep.subr.mxu0 0.0
  %3406 = vmatpush1.msra.mxu0 %v3378
  %3407 = vmatprep.subr.mxu0 0.0
  %3408 = vmatpush1.msra.mxu0 %v3379
  %3409 = vmatprep.subr.mxu0 0.0
  %3410 = vmatpush1.msra.mxu0 %v3380
  %3411 = vmatprep.subr.mxu0 0.0
  %3412 = vmatpush1.msra.mxu0 %v3381
  %3413 = vmatprep.subr.mxu0 0.0
  %3414 = vmatpush1.msra.mxu0 %v3382
  %3415 = vmatprep.subr.mxu0 0.0
  %3416 = vmatpush1.msra.mxu0 %v3383
  %3417 = vmatprep.subr.mxu0 0.0
  %3418 = vmatpush1.msra.mxu0 %v3384
  %3419 = vmatprep.subr.mxu0 0.0
  %3420 = vmatpush1.msra.mxu0 %v3385
  %3421 = vmatprep.subr.mxu0 0.0
  %3422 = vmatpush1.msra.mxu0 %v3386
  %3423 = vmatprep.subr.mxu0 0.0
  %3424 = vmatpush1.msra.mxu0 %v3387
  %3425 = vmatprep.subr.mxu0 0.0
  %3426 = vmatpush1.msra.mxu0 %v3388
  %3427 = vmatprep.subr.mxu0 0.0
  %3428 = vmatpush1.msra.mxu0 %v3389
  %3429 = vmatprep.subr.mxu0 0.0
  %3430 = vmatpush1.msra.mxu0 0.0
  %3431 = vmatprep.subr.mxu0 0.0
  %3432 = vmatpush1.msra.mxu0 0.0
  %3433 = vmatprep.subr.mxu0 0.0
  %3434 = vmatpush1.msra.mxu0 0.0
  %3435 = vmatprep.subr.mxu0 0.0
  %3436 = vmatpush1.msra.mxu0 0.0
  %3437 = vmatprep.subr.mxu0 0.0
  %3438 = vmatpush1.msra.mxu0 0.0
  %3439 = vmatprep.subr.mxu0 0.0
  %3440 = vmatpush1.msra.mxu0 0.0
  %3441 = vmatprep.subr.mxu0 0.0
  %3442 = vmatpush1.msra.mxu0 0.0
  %3443 = vmatprep.subr.mxu0 0.0
  %3444 = vmatpush1.msra.mxu0 0.0
  %3445 = vmatprep.subr.mxu0 0.0
  %3446 = vmatpush1.msra.mxu0 0.0
  %3447 = vmatprep.subr.mxu0 0.0
  %3448 = vmatpush1.msra.mxu0 0.0
  %3449 = vmatprep.subr.mxu0 0.0
  %3450 = vmatpush1.msra.mxu0 0.0
  %3451 = vmatprep.subr.mxu0 0.0
  %3452 = vmatpush1.msra.mxu0 0.0
  %3453 = vmatprep.subr.mxu0 0.0
  %3454 = vmatpush1.msra.mxu0 0.0
  %3455 = vmatprep.subr.mxu0 0.0
  %3456 = vmatpush1.msra.mxu0 0.0
  %3457 = vmatprep.subr.mxu0 0.0
  %3458 = vmatpush1.msra.mxu0 0.0
  %3459 = vmatprep.subr.mxu0 0.0
  %3460 = vmatpush1.msra.mxu0 0.0
  %3461 = vmatprep.mubr.f32.mxu0 0.0
  %3462 = vmatmul.mubr.f32.gmra.mrb[0].mxu0 %v938
  %v3463 = vpop.f32.mrb[0].mxu0
  %v3464 = vadd.f32 %v3395, %v3463
  %v3465 = vpop.f32.mrb[0].mxu0
  %3466 = vmatprep.mubr.f32.mxu0 0.0
  %3467 = vmatmul.mubr.f32.gmra.mrb[0].mxu0 %v1285
  %v3468 = vpop.f32.mrb[0].mxu0
  %v3469 = vadd.f32 %v3395, %v3468
  %v3470 = vpop.f32.mrb[0].mxu0
  %3471 = vmatprep.mubr.f32.mxu0 0.0
  %3472 = vmatmul.mubr.f32.gmra.mrb[0].mxu0 %v1632
  %v3473 = vpop.f32.mrb[0].mxu0
  %v3474 = vadd.f32 %v3395, %v3473
  %v3475 = vpop.f32.mrb[0].mxu0
  %3476 = vmatprep.mubr.f32.mxu0 0.0
  %3477 = vmatmul.mubr.f32.gmra.mrb[0].mxu0 %v1979
  %v3478 = vpop.f32.mrb[0].mxu0
  %v3479 = vadd.f32 %v3395, %v3478
  %v3480 = vpop.f32.mrb[0].mxu0
  %3481 = vmatprep.mubr.f32.mxu0 0.0
  %3482 = vmatmul.mubr.f32.gmra.mrb[0].mxu0 %v2326
  %v3483 = vpop.f32.mrb[0].mxu0
  %v3484 = vadd.f32 %v3395, %v3483
  %v3485 = vpop.f32.mrb[0].mxu0
  %3486 = vmatprep.mubr.f32.mxu0 0.0
  %3487 = vmatmul.mubr.f32.gmra.mrb[0].mxu0 %v2673
  %v3488 = vpop.f32.mrb[0].mxu0
  %v3489 = vadd.f32 %v3395, %v3488
  %v3490 = vpop.f32.mrb[0].mxu0
  %3491 = vmatprep.mubr.f32.mxu0 0.0
  %3492 = vmatmul.mubr.f32.gmra.mrb[0].mxu0 %v3020
  %v3493 = vpop.f32.mrb[0].mxu0
  %v3494 = vadd.f32 %v3395, %v3493
  %v3495 = vpop.f32.mrb[0].mxu0
  %3496 = vmatprep.mubr.f32.mxu0 0.0
  %3497 = vmatmul.mubr.f32.gmra.mrb[0].mxu0 %v3367
  %v3498 = vpop.f32.mrb[0].mxu0
  %v3499 = vadd.f32 %v3395, %v3498
  %v3500 = vpop.f32.mrb[0].mxu0
  %3501 = vdwg.mxu0
  %v3502 = vlaneseq
  %v3503 = vand.u32 %v3502, 127
  %vm3504 = vcmp.lt.s32.totalorder %v3503, 16
  %vm3505 = vcmp.ge.s32.totalorder %v3503, 48
  %vm3506 = vcmp.lt.s32.totalorder %v3503, 80
  %vm3507 = vmand %vm3505, %vm3506
  %vm3508 = vcmp.ge.s32.totalorder %v3503, 80
  %vm3509 = vcmp.lt.s32.totalorder %v3503, 96
  %vm3510 = vmand %vm3508, %vm3509
  %vm3511 = vcmp.ge.s32.totalorder %v3503, 96
  %vm3512 = vcmp.lt.s32.totalorder %v3503, 100
  %vm3513 = vmand %vm3511, %vm3512
  %v3514 = vmul.f32 %v3464, 1.442695
  %v3515 = vpow.pop %v3514
  %v3516 = vmul.f32 %v3469, 1.442695
  %v3517 = vpow.pop %v3516
  %v3518 = vmul.f32 %v3474, 1.442695
  %v3519 = vpow.pop %v3518
  %v3520 = vmul.f32 %v3479, 1.442695
  %v3521 = vpow.pop %v3520
  %v3522 = vmul.f32 %v3484, 1.442695
  %v3523 = vpow.pop %v3522
  %v3524 = vmul.f32 %v3489, 1.442695
  %v3525 = vpow.pop %v3524
  %v3526 = vmul.f32 %v3494, 1.442695
  %v3527 = vpow.pop %v3526
  %v3528 = vmul.f32 %v3499, 1.442695
  %v3529 = vpow.pop %v3528
  %v3530 = vtanh.pop %v3464
  %v3531 = vtanh.pop %v3469
  %v3532 = vtanh.pop %v3474
  %v3533 = vtanh.pop %v3479
  %v3534 = vtanh.pop %v3484
  %v3535 = vtanh.pop %v3489
  %v3536 = vtanh.pop %v3494
  %v3537 = vtanh.pop %v3499
  %v3538 = vsel %vm3510, %v3530, %v3464
  %v3539 = vsel %vm3510, %v3531, %v3469
  %v3540 = vsel %vm3510, %v3532, %v3474
  %v3541 = vsel %vm3510, %v3533, %v3479
  %v3542 = vsel %vm3510, %v3534, %v3484
  %v3543 = vsel %vm3510, %v3535, %v3489
  %v3544 = vsel %vm3510, %v3536, %v3494
  %v3545 = vsel %vm3510, %v3537, %v3499
  %v3546 = vsel %vm3507, %v3515, %v3538
  %v3547 = vsel %vm3507, %v3517, %v3539
  %v3548 = vsel %vm3507, %v3519, %v3540
  %v3549 = vsel %vm3507, %v3521, %v3541
  %v3550 = vsel %vm3507, %v3523, %v3542
  %v3551 = vsel %vm3507, %v3525, %v3543
  %v3552 = vsel %vm3507, %v3527, %v3544
  %v3553 = vsel %vm3507, %v3529, %v3545
  %v3554 = vsel %vm3504, %v3464, -1e+30
  %v3555 = vsel %vm3504, %v3469, -1e+30
  %v3556 = vsel %vm3504, %v3474, -1e+30
  %v3557 = vsel %vm3504, %v3479, -1e+30
  %v3558 = vsel %vm3504, %v3484, -1e+30
  %v3559 = vsel %vm3504, %v3489, -1e+30
  %v3560 = vsel %vm3504, %v3494, -1e+30
  %v3561 = vsel %vm3504, %v3499, -1e+30
  %3562 = vmax.xlane.f32.xlu0 %v3554
  %v3563 = vpop.xlane.xlu0 %3562
  %3564 = vmax.xlane.f32.xlu0 %v3555
  %v3565 = vpop.xlane.xlu0 %3564
  %3566 = vmax.xlane.f32.xlu0 %v3556
  %v3567 = vpop.xlane.xlu0 %3566
  %3568 = vmax.xlane.f32.xlu0 %v3557
  %v3569 = vpop.xlane.xlu0 %3568
  %3570 = vmax.xlane.f32.xlu0 %v3558
  %v3571 = vpop.xlane.xlu0 %3570
  %3572 = vmax.xlane.f32.xlu0 %v3559
  %v3573 = vpop.xlane.xlu0 %3572
  %3574 = vmax.xlane.f32.xlu0 %v3560
  %v3575 = vpop.xlane.xlu0 %3574
  %3576 = vmax.xlane.f32.xlu0 %v3561
  %v3577 = vpop.xlane.xlu0 %3576
  %v3578 = vsub.f32 %v3464, %v3563
  %v3579 = vsub.f32 %v3469, %v3565
  %v3580 = vsub.f32 %v3474, %v3567
  %v3581 = vsub.f32 %v3479, %v3569
  %v3582 = vsub.f32 %v3484, %v3571
  %v3583 = vsub.f32 %v3489, %v3573
  %v3584 = vsub.f32 %v3494, %v3575
  %v3585 = vsub.f32 %v3499, %v3577
  %v3586 = vmul.f32 %v3578, 1.442695
  %v3587 = vpow.pop %v3586
  %v3588 = vmul.f32 %v3579, 1.442695
  %v3589 = vpow.pop %v3588
  %v3590 = vmul.f32 %v3580, 1.442695
  %v3591 = vpow.pop %v3590
  %v3592 = vmul.f32 %v3581, 1.442695
  %v3593 = vpow.pop %v3592
  %v3594 = vmul.f32 %v3582, 1.442695
  %v3595 = vpow.pop %v3594
  %v3596 = vmul.f32 %v3583, 1.442695
  %v3597 = vpow.pop %v3596
  %v3598 = vmul.f32 %v3584, 1.442695
  %v3599 = vpow.pop %v3598
  %v3600 = vmul.f32 %v3585, 1.442695
  %v3601 = vpow.pop %v3600
  %v3602 = vsel %vm3504, %v3587, 0.0
  %v3603 = vsel %vm3504, %v3589, 0.0
  %v3604 = vsel %vm3504, %v3591, 0.0
  %v3605 = vsel %vm3504, %v3593, 0.0
  %v3606 = vsel %vm3504, %v3595, 0.0
  %v3607 = vsel %vm3504, %v3597, 0.0
  %v3608 = vsel %vm3504, %v3599, 0.0
  %v3609 = vsel %vm3504, %v3601, 0.0
  %3610 = vadd.xlane.f32.xlu0 %v3602
  %v3611 = vpop.xlane.xlu0 %3610
  %3612 = vadd.xlane.f32.xlu0 %v3603
  %v3613 = vpop.xlane.xlu0 %3612
  %3614 = vadd.xlane.f32.xlu0 %v3604
  %v3615 = vpop.xlane.xlu0 %3614
  %3616 = vadd.xlane.f32.xlu0 %v3605
  %v3617 = vpop.xlane.xlu0 %3616
  %3618 = vadd.xlane.f32.xlu0 %v3606
  %v3619 = vpop.xlane.xlu0 %3618
  %3620 = vadd.xlane.f32.xlu0 %v3607
  %v3621 = vpop.xlane.xlu0 %3620
  %3622 = vadd.xlane.f32.xlu0 %v3608
  %v3623 = vpop.xlane.xlu0 %3622
  %3624 = vadd.xlane.f32.xlu0 %v3609
  %v3625 = vpop.xlane.xlu0 %3624
  %v3626 = vrcp.pop %v3611
  %v3627 = vmul.f32 %v3602, %v3626
  %v3628 = vrcp.pop %v3613
  %v3629 = vmul.f32 %v3603, %v3628
  %v3630 = vrcp.pop %v3615
  %v3631 = vmul.f32 %v3604, %v3630
  %v3632 = vrcp.pop %v3617
  %v3633 = vmul.f32 %v3605, %v3632
  %v3634 = vrcp.pop %v3619
  %v3635 = vmul.f32 %v3606, %v3634
  %v3636 = vrcp.pop %v3621
  %v3637 = vmul.f32 %v3607, %v3636
  %v3638 = vrcp.pop %v3623
  %v3639 = vmul.f32 %v3608, %v3638
  %v3640 = vrcp.pop %v3625
  %v3641 = vmul.f32 %v3609, %v3640
  %v3642 = vsel %vm3513, %v3464, -1e+30
  %v3643 = vsel %vm3513, %v3469, -1e+30
  %v3644 = vsel %vm3513, %v3474, -1e+30
  %v3645 = vsel %vm3513, %v3479, -1e+30
  %v3646 = vsel %vm3513, %v3484, -1e+30
  %v3647 = vsel %vm3513, %v3489, -1e+30
  %v3648 = vsel %vm3513, %v3494, -1e+30
  %v3649 = vsel %vm3513, %v3499, -1e+30
  %3650 = vmax.xlane.f32.xlu0 %v3642
  %v3651 = vpop.xlane.xlu0 %3650
  %3652 = vmax.xlane.f32.xlu0 %v3643
  %v3653 = vpop.xlane.xlu0 %3652
  %3654 = vmax.xlane.f32.xlu0 %v3644
  %v3655 = vpop.xlane.xlu0 %3654
  %3656 = vmax.xlane.f32.xlu0 %v3645
  %v3657 = vpop.xlane.xlu0 %3656
  %3658 = vmax.xlane.f32.xlu0 %v3646
  %v3659 = vpop.xlane.xlu0 %3658
  %3660 = vmax.xlane.f32.xlu0 %v3647
  %v3661 = vpop.xlane.xlu0 %3660
  %3662 = vmax.xlane.f32.xlu0 %v3648
  %v3663 = vpop.xlane.xlu0 %3662
  %3664 = vmax.xlane.f32.xlu0 %v3649
  %v3665 = vpop.xlane.xlu0 %3664
  %v3666 = vsub.f32 %v3464, %v3651
  %v3667 = vsub.f32 %v3469, %v3653
  %v3668 = vsub.f32 %v3474, %v3655
  %v3669 = vsub.f32 %v3479, %v3657
  %v3670 = vsub.f32 %v3484, %v3659
  %v3671 = vsub.f32 %v3489, %v3661
  %v3672 = vsub.f32 %v3494, %v3663
  %v3673 = vsub.f32 %v3499, %v3665
  %v3674 = vmul.f32 %v3666, 1.442695
  %v3675 = vpow.pop %v3674
  %v3676 = vmul.f32 %v3667, 1.442695
  %v3677 = vpow.pop %v3676
  %v3678 = vmul.f32 %v3668, 1.442695
  %v3679 = vpow.pop %v3678
  %v3680 = vmul.f32 %v3669, 1.442695
  %v3681 = vpow.pop %v3680
  %v3682 = vmul.f32 %v3670, 1.442695
  %v3683 = vpow.pop %v3682
  %v3684 = vmul.f32 %v3671, 1.442695
  %v3685 = vpow.pop %v3684
  %v3686 = vmul.f32 %v3672, 1.442695
  %v3687 = vpow.pop %v3686
  %v3688 = vmul.f32 %v3673, 1.442695
  %v3689 = vpow.pop %v3688
  %v3690 = vsel %vm3513, %v3675, 0.0
  %v3691 = vsel %vm3513, %v3677, 0.0
  %v3692 = vsel %vm3513, %v3679, 0.0
  %v3693 = vsel %vm3513, %v3681, 0.0
  %v3694 = vsel %vm3513, %v3683, 0.0
  %v3695 = vsel %vm3513, %v3685, 0.0
  %v3696 = vsel %vm3513, %v3687, 0.0
  %v3697 = vsel %vm3513, %v3689, 0.0
  %3698 = vadd.xlane.f32.xlu0 %v3690
  %v3699 = vpop.xlane.xlu0 %3698
  %3700 = vadd.xlane.f32.xlu0 %v3691
  %v3701 = vpop.xlane.xlu0 %3700
  %3702 = vadd.xlane.f32.xlu0 %v3692
  %v3703 = vpop.xlane.xlu0 %3702
  %3704 = vadd.xlane.f32.xlu0 %v3693
  %v3705 = vpop.xlane.xlu0 %3704
  %3706 = vadd.xlane.f32.xlu0 %v3694
  %v3707 = vpop.xlane.xlu0 %3706
  %3708 = vadd.xlane.f32.xlu0 %v3695
  %v3709 = vpop.xlane.xlu0 %3708
  %3710 = vadd.xlane.f32.xlu0 %v3696
  %v3711 = vpop.xlane.xlu0 %3710
  %3712 = vadd.xlane.f32.xlu0 %v3697
  %v3713 = vpop.xlane.xlu0 %3712
  %v3714 = vrcp.pop %v3699
  %v3715 = vmul.f32 %v3690, %v3714
  %v3716 = vrcp.pop %v3701
  %v3717 = vmul.f32 %v3691, %v3716
  %v3718 = vrcp.pop %v3703
  %v3719 = vmul.f32 %v3692, %v3718
  %v3720 = vrcp.pop %v3705
  %v3721 = vmul.f32 %v3693, %v3720
  %v3722 = vrcp.pop %v3707
  %v3723 = vmul.f32 %v3694, %v3722
  %v3724 = vrcp.pop %v3709
  %v3725 = vmul.f32 %v3695, %v3724
  %v3726 = vrcp.pop %v3711
  %v3727 = vmul.f32 %v3696, %v3726
  %v3728 = vrcp.pop %v3713
  %v3729 = vmul.f32 %v3697, %v3728
  %v3730 = vsel %vm3513, %v3715, %v3546
  %v3731 = vsel %vm3513, %v3717, %v3547
  %v3732 = vsel %vm3513, %v3719, %v3548
  %v3733 = vsel %vm3513, %v3721, %v3549
  %v3734 = vsel %vm3513, %v3723, %v3550
  %v3735 = vsel %vm3513, %v3725, %v3551
  %v3736 = vsel %vm3513, %v3727, %v3552
  %v3737 = vsel %vm3513, %v3729, %v3553
  %v3738 = vsel %vm3504, %v3627, %v3730
  %v3739 = vsel %vm3504, %v3629, %v3731
  %v3740 = vsel %vm3504, %v3631, %v3732
  %v3741 = vsel %vm3504, %v3633, %v3733
  %v3742 = vsel %vm3504, %v3635, %v3734
  %v3743 = vsel %vm3504, %v3637, %v3735
  %v3744 = vsel %vm3504, %v3639, %v3736
  %v3745 = vsel %vm3504, %v3641, %v3737
  %3746 = vst [vmem:[%s11] sm:$0xff] %v3738
  %3747 = vst [vmem:[%s11 + $0x8] sm:$0xff] %v3739
  %3748 = vst [vmem:[%s11 + $0x10] sm:$0xff] %v3740
  %3749 = vst [vmem:[%s11 + $0x18] sm:$0xff] %v3741
  %3750 = vst [vmem:[%s11 + $0x20] sm:$0xff] %v3742
  %3751 = vst [vmem:[%s11 + $0x28] sm:$0xff] %v3743
  %3752 = vst [vmem:[%s11 + $0x30] sm:$0xff] %v3744
  %3753 = vst [vmem:[%s11 + $0x38] sm:$0xff] %v3745
  // Predicated region
  $region46: #{_lambda_.1} parent=0 // pred_check
    _
  $region47: #{_lambda_.1} parent=0 // pred_check_branch
    %3755 = sbr.rel (0) target = $region49
  $region48: #{_lambda_.1} parent=0 // pred_region
    _
  $region49: #{_lambda_.1} parent=0 // pred_fallthru
    _
  // Predicated region
  $region50: #{_lambda_.1} parent=0 // pred_check
    _
  $region51: #{_lambda_.1} parent=0 // pred_check_branch
    %3757 = sbr.rel (0) target = $region53
  $region52: #{_lambda_.1} parent=0 // pred_region
    _
  $region53: #{_lambda_.1} parent=0 // pred_fallthru
    _
  // Predicated region
  $region54: #{_lambda_.1} parent=0 // pred_check
    _
  $region55: #{_lambda_.1} parent=0 // pred_check_branch
    %3759 = sbr.rel (0) target = $region57
  $region56: #{_lambda_.1} parent=0 // pred_region
    _
  $region57: #{_lambda_.1} parent=0 // pred_fallthru
    _
  // Predicated region
  $region58: #{_lambda_.1} parent=0 // pred_check
    _
  $region59: #{_lambda_.1} parent=0 // pred_check_branch
    %3761 = sbr.rel (0) target = $region61
  $region60: #{_lambda_.1} parent=0 // pred_region
    _
  $region61: #{_lambda_.1} parent=0 // pred_fallthru
    _
  // Predicated region
  $region62: #{_lambda_.1} parent=0 // pred_check
    _
  $region63: #{_lambda_.1} parent=0 // pred_check_branch
    %3763 = sbr.rel (0) target = $region65
  $region64: #{_lambda_.1} parent=0 // pred_region
    _
  $region65: #{_lambda_.1} parent=0 // pred_fallthru
    _
  // Predicated region
  $region66: #{_lambda_.1} parent=0 // pred_check
    _
  $region67: #{_lambda_.1} parent=0 // pred_check_branch
    %3765 = sbr.rel (0) target = $region69
  $region68: #{_lambda_.1} parent=0 // pred_region
    _
  $region69: #{_lambda_.1} parent=0 // pred_fallthru
    _

</llo_original>
